<compile_context>
chip_gen: v7x
topology: tpu7x:2x2x1
jax: 0.10.0
libtpu: 0.0.40
codegen_flags: <defaults>
</compile_context>

<pallas_src>
import functools

import jax
import jax.numpy as jnp
from jax import lax
from jax.experimental import pallas as pl
from jax.experimental.pallas import tpu as pltpu

LANE_GROUP = 4  # pack 4 conv-output rows (4 x 32 ch) into one 128-lane row


def _round_up(x, m):
    return ((x + m - 1) // m) * m


def _choose_tile(M, tile_m, row_align=16, min_tiles=2):
    """Balanced row-tile choice.

    - number of tiles is balanced (no nearly-empty trailing tile),
    - at least `min_tiles` tiles when there is enough real work, so the
      "parallel" grid axis can shard across both v7x TensorCores,
    - tile rows aligned to 16 (bf16 sublane packing).
    """
    ntiles = pl.cdiv(M, tile_m)
    if M >= 2 * row_align:
        ntiles = max(ntiles, min_tiles)
    tm = _round_up(pl.cdiv(M, ntiles), row_align)
    Mp = _round_up(M, tm)
    return tm, Mp


# ----------------------------- Pallas kernels ------------------------------ #

def _matmul_shift_relu_kernel(x_ref, w_ref, shift_ref, o_ref):
    # y = relu((x @ w_scaled) + shift); BN scale already folded into w.
    y = jnp.dot(x_ref[...], w_ref[...], preferred_element_type=jnp.float32)
    o_ref[...] = jnp.maximum(y + shift_ref[...], 0.0).astype(o_ref.dtype)


def matmul_shift_relu(x, w, shift, *, tile_m=1024, out_dtype=jnp.bfloat16):
    """x: (M, K) bf16, w: (K, N) bf16 (BN-scale folded), shift: (1, N) f32.

    Returns relu(x @ w + shift) as (M, N) `out_dtype`.  M is tiled on a
    "parallel" grid axis; K and N stay whole per step.

    For the conv layers the caller packs LANE_GROUP=4 patch rows per matrix
    row, so tile_m=1024 here corresponds to 4096 patch rows (~6.3 MiB bf16 for
    the widest K=3200 layer; ~13 MiB double-buffered — well under the 32 MiB
    scoped VMEM limit on every generation, past the ~86% HBM-roofline plateau).
    """
    M, K = x.shape
    K2, N = w.shape
    assert K == K2
    tm, Mp = _choose_tile(M, tile_m)
    if Mp != M:
        x = jnp.pad(x, ((0, Mp - M), (0, 0)))

    bytes_accessed = (Mp * K * x.dtype.itemsize
                      + K * N * w.dtype.itemsize
                      + N * 4
                      + Mp * N * jnp.dtype(out_dtype).itemsize)
    cost = pl.CostEstimate(flops=2 * Mp * K * N, transcendentals=0,
                           bytes_accessed=bytes_accessed)

    out = pl.pallas_call(
        _matmul_shift_relu_kernel,
        out_shape=jax.ShapeDtypeStruct((Mp, N), out_dtype),
        grid=(Mp // tm,),
        in_specs=[
            pl.BlockSpec((tm, K), lambda i: (i, 0)),
            # Constant index_map => Pallas DMAs the weights/shift only once.
            pl.BlockSpec((K, N), lambda i: (0, 0)),
            pl.BlockSpec((1, N), lambda i: (0, 0)),
        ],
        out_specs=pl.BlockSpec((tm, N), lambda i: (i, 0)),
        compiler_params=pltpu.CompilerParams(
            dimension_semantics=("parallel",),
            vmem_limit_bytes=32 * 1024 * 1024,
        ),
        cost_estimate=cost,
    )(x, w, shift)
    return out[:M] if Mp != M else out


def _fc_tail_kernel(h_ref, w4_ref, s4_ref, wfc1_ref, sfc_ref, wpre_ref,
                    wout_ref, b_ref, o_ref):
    # conv4 + bn4 + relu : one 4x4 patch per image == (tm,512)@(512,64)
    h64 = jnp.dot(h_ref[...], w4_ref[...], preferred_element_type=jnp.float32)
    h64 = jnp.maximum(h64 + s4_ref[...], 0.0)
    # fc1 + bn_fc + relu (BN scale folded into the weight)
    h1 = jnp.dot(h64.astype(wfc1_ref.dtype), wfc1_ref[...],
                 preferred_element_type=jnp.float32)
    h1 = jnp.maximum(h1 + sfc_ref[...], 0.0)
    # pre = [h1 @ W_xent_pre , h1 @ W_iic_pre]   (concatenated weights)
    pre = jnp.dot(h1.astype(wpre_ref.dtype), wpre_ref[...],
                  preferred_element_type=jnp.float32)
    # logits = pre @ blockdiag(W_xent, W_iic) + [b_xent, b_iic]  -> (tm, 6)
    # kept fully in f32 (tiny matmul; preserves logits precision).
    logits = jnp.dot(pre, wout_ref[...], preferred_element_type=jnp.float32)
    logits = logits + b_ref[...]
    # Two grouped softmaxes (cols 0:3 = xent head, cols 3:6 = iic head),
    # done with lane masks (no lane slicing / concat needed).
    col = lax.broadcasted_iota(jnp.int32, logits.shape, 1)
    in_h0 = col < 3
    neg = jnp.float32(-1e30)
    m0 = jnp.max(jnp.where(in_h0, logits, neg), axis=-1, keepdims=True)
    m1 = jnp.max(jnp.where(in_h0, neg, logits), axis=-1, keepdims=True)
    e = jnp.exp(logits - jnp.where(in_h0, m0, m1))
    s0 = jnp.sum(jnp.where(in_h0, e, 0.0), axis=-1, keepdims=True)
    s1 = jnp.sum(jnp.where(in_h0, 0.0, e), axis=-1, keepdims=True)
    o_ref[...] = (e / jnp.where(in_h0, s0, s1)).astype(o_ref.dtype)


def fc_tail(h512, w4, s4, w_fc1, s_fc, w_pre, w_out, b_out, *, tile_m=2048):
    """Fused conv4 + classifier tail.

    h512: (B, 512) bf16 (flattened conv3 output, NHWC order = (i, j, c)).
    Returns (x_iic (B,3), x_alt (B,3)) softmax probabilities.
    """
    B, K = h512.shape
    C4 = w4.shape[1]        # 64
    D = w_fc1.shape[1]      # prefinal (256)
    D2 = w_pre.shape[1]     # 2*prefinal (512)
    C2 = w_out.shape[1]     # 6
    tm, Bp = _choose_tile(B, tile_m)
    if Bp != B:
        h512 = jnp.pad(h512, ((0, Bp - B), (0, 0)))

    flops = 2 * Bp * (K * C4 + C4 * D + D * D2 + D2 * C2)
    bytes_accessed = (Bp * K * 2 + K * C4 * 2 + C4 * 4 + C4 * D * 2 + D * 4
                      + D * D2 * 2 + D2 * C2 * 4 + C2 * 4 + Bp * C2 * 4)
    cost = pl.CostEstimate(flops=flops, transcendentals=Bp * C2,
                           bytes_accessed=bytes_accessed)

    out = pl.pallas_call(
        _fc_tail_kernel,
        out_shape=jax.ShapeDtypeStruct((Bp, C2), jnp.float32),
        grid=(Bp // tm,),
        in_specs=[
            pl.BlockSpec((tm, K), lambda i: (i, 0)),
            pl.BlockSpec((K, C4), lambda i: (0, 0)),
            pl.BlockSpec((1, C4), lambda i: (0, 0)),
            pl.BlockSpec((C4, D), lambda i: (0, 0)),
            pl.BlockSpec((1, D), lambda i: (0, 0)),
            pl.BlockSpec((D, D2), lambda i: (0, 0)),
            pl.BlockSpec((D2, C2), lambda i: (0, 0)),
            pl.BlockSpec((1, C2), lambda i: (0, 0)),
        ],
        out_specs=pl.BlockSpec((tm, C2), lambda i: (i, 0)),
        compiler_params=pltpu.CompilerParams(
            dimension_semantics=("parallel",),
            vmem_limit_bytes=32 * 1024 * 1024,
        ),
        cost_estimate=cost,
    )(h512, w4, s4, w_fc1, s_fc, w_pre, w_out, b_out)
    probs = out[:B]
    x_alt = probs[:, 0:3]   # fc_xent head
    x_iic = probs[:, 3:6]   # fc2 (iic) head
    return x_iic, x_alt     # matches PyTorch's `return (x, x_alt)`


# ------------------------------- glue (JAX) -------------------------------- #

def im2col(x_nhwc, kh, kw, stride):
    """Extract valid-conv patches. Returns (B*Ho*Wo, kh*kw*C), Ho, Wo."""
    B, H, W, C = x_nhwc.shape
    Ho = (H - kh) // stride + 1
    Wo = (W - kw) // stride + 1
    cols = []
    for i in range(kh):
        for j in range(kw):
            cols.append(
                x_nhwc[:, i:i + stride * Ho:stride, j:j + stride * Wo:stride, :])
    p = jnp.stack(cols, axis=3)  # (B, Ho, Wo, kh*kw, C)
    return p.reshape(B * Ho * Wo, kh * kw * C), Ho, Wo


def conv_bn_relu(x_nhwc, w_big, shift_big, kh, kw, stride):
    """Conv2d(bias=False) + BN(eval, folded) + ReLU via im2col -> Pallas.

    Lane-dense packing: LANE_GROUP patch rows are folded into one matrix row
    (free row-major reshape in XLA) and multiplied by a block-diagonal weight
    so the kernel stores full 128-lane rows (unmasked vst) instead of masked
    32-lane partial stores.
    """
    B = x_nhwc.shape[0]
    cols, Ho, Wo = im2col(x_nhwc, kh, kw, stride)          # (M, K) bf16
    M, K = cols.shape
    Cout = w_big.shape[1] // LANE_GROUP
    assert M % LANE_GROUP == 0
    cols4 = cols.reshape(M // LANE_GROUP, LANE_GROUP * K)  # free reshape
    y4 = matmul_shift_relu(cols4, w_big, shift_big)        # (M/4, 4*Cout) bf16
    return y4.reshape(B, Ho, Wo, Cout)                     # free reshape


def fold_bn(gamma, beta, mean, var, eps=1e-5):
    scale = gamma / jnp.sqrt(var + eps)
    shift = beta - mean * scale
    return scale, shift


def prepare_params(params):
    """One-time layout prep: fold BN scale into weights, transpose to (K, N),
    build block-diagonal lane-dense conv weights, cast to bf16, and
    concatenate / block-diagonalize the head weights."""

    def conv_prep(w_oihw, bn):
        scale, shift = bn
        Cout, Cin, kh, kw = w_oihw.shape
        # (Cout, Cin, kh, kw) -> (kh, kw, Cin, Cout) -> (kh*kw*Cin, Cout)
        # matches the (i, j, c) column ordering produced by im2col.
        w_mat = jnp.transpose(w_oihw, (2, 3, 1, 0)).reshape(kh * kw * Cin, Cout)
        w_mat = w_mat * scale[None, :]
        # Block-diagonal (4K, 4*Cout) so the kernel output tile is (tm, 128).
        w_big = jnp.kron(jnp.eye(LANE_GROUP, dtype=w_mat.dtype), w_mat)
        shift_big = jnp.tile(shift.reshape(1, Cout), (1, LANE_GROUP))
        return (w_big.astype(jnp.bfloat16),
                shift_big.astype(jnp.float32), kh, kw)

    prepped = {}
    for idx in (1, 2, 3):
        prepped[f"conv{idx}"] = conv_prep(params[f"conv{idx}_w"],
                                          params[f"bn{idx}"])

    # conv4 (fused into the FC tail): one 4x4 patch per image -> (512, 64).
    scale4, shift4 = params["bn4"]
    Cout4, Cin4, kh4, kw4 = params["conv4_w"].shape
    w4 = jnp.transpose(params["conv4_w"], (2, 3, 1, 0)).reshape(
        kh4 * kw4 * Cin4, Cout4)
    prepped["conv4_w"] = (w4 * scale4[None, :]).astype(jnp.bfloat16)
    prepped["conv4_shift"] = shift4.reshape(1, Cout4).astype(jnp.float32)

    scale_fc, shift_fc = params["bn_fc"]
    prepped["fc1_w"] = (params["fc1_w"].T * scale_fc[None, :]).astype(jnp.bfloat16)
    prepped["fc_shift"] = shift_fc.reshape(1, -1).astype(jnp.float32)

    # Concatenated head pre-weights: (256, 512).
    prepped["w_pre"] = jnp.concatenate(
        [params["fc_xent_pre_w"].T, params["fc_iic_pre_w"].T],
        axis=1).astype(jnp.bfloat16)

    # Block-diagonal final weights: (512, 6); cols 0:3 = xent, 3:6 = iic.
    # Kept in f32 (tiny) for logits precision.
    D = params["fc_xent_pre_w"].shape[0]
    w_out = jnp.zeros((2 * D, 6), jnp.float32)
    w_out = w_out.at[:D, 0:3].set(params["fc_xent_w"].T)
    w_out = w_out.at[D:, 3:6].set(params["fc2_w"].T)
    prepped["w_out"] = w_out
    prepped["b_out"] = jnp.concatenate(
        [params["fc_xent_b"], params["fc2_b"]]).reshape(1, 6).astype(jnp.float32)
    return prepped


def init_params(key, prefinal=256):
    keys = iter(jax.random.split(key, 40))

    def w(shape, std=0.05):
        return std * jax.random.normal(next(keys), shape, dtype=jnp.float32)

    def bn(c):
        gamma = 1.0 + 0.1 * jax.random.normal(next(keys), (c,), dtype=jnp.float32)
        beta = 0.1 * jax.random.normal(next(keys), (c,), dtype=jnp.float32)
        mean = 0.1 * jax.random.normal(next(keys), (c,), dtype=jnp.float32)
        var = 1.0 + 0.1 * jnp.abs(
            jax.random.normal(next(keys), (c,), dtype=jnp.float32))
        return fold_bn(gamma, beta, mean, var)

    return {
        "conv1_w": w((32, 1, 5, 5)),   "bn1": bn(32),
        "conv2_w": w((32, 32, 5, 5)),  "bn2": bn(32),
        "conv3_w": w((32, 32, 5, 5)),  "bn3": bn(32),
        "conv4_w": w((64, 32, 4, 4)),  "bn4": bn(64),
        "fc1_w": w((prefinal, 64)),    "bn_fc": bn(prefinal),
        "fc_xent_pre_w": w((prefinal, prefinal)),
        "fc_iic_pre_w": w((prefinal, prefinal)),
        "fc_xent_w": w((3, prefinal)), "fc_xent_b": w((3,)),
        "fc2_w": w((3, prefinal)),     "fc2_b": w((3,)),
    }


def netx_forward(prepped, x_nchw):
    # NCHW -> NHWC, cast to bf16 BEFORE im2col (halves conv1 gather bytes).
    x = jnp.transpose(x_nchw, (0, 2, 3, 1)).astype(jnp.bfloat16)
    x = conv_bn_relu(x, *prepped["conv1"], stride=2)   # (B,12,12,32)
    x = conv_bn_relu(x, *prepped["conv2"], stride=1)   # (B, 8, 8,32)
    x = conv_bn_relu(x, *prepped["conv3"], stride=1)   # (B, 4, 4,32)
    B = x.shape[0]
    h = x.reshape(B, -1)                               # (B, 512) bf16
    # Fused: conv4+bn4+relu + fc1+bn_fc+relu + both heads + both softmaxes.
    x_iic, x_alt = fc_tail(h, prepped["conv4_w"], prepped["conv4_shift"],
                           prepped["fc1_w"], prepped["fc_shift"],
                           prepped["w_pre"], prepped["w_out"], prepped["b_out"])
    return x_iic, x_alt


if __name__ == "__main__":
    key = jax.random.PRNGKey(0)
    pkey, xkey = jax.random.split(key)
    raw_params = init_params(pkey)
    prepped = prepare_params(raw_params)     # one-time layout / BN-fold prep
    # MNIST-style input: the architecture requires 28x28 to reach 1x1 spatial.
    x = jax.random.normal(xkey, (2, 1, 28, 28), dtype=jnp.float32)

    fwd = jax.jit(functools.partial(netx_forward, prepped))
    x_iic, x_alt = fwd(x)
    jax.block_until_ready((x_iic, x_alt))

    assert x_iic.shape == (2, 3) and x_alt.shape == (2, 3)
    # Softmax rows must sum to 1.
    assert jnp.allclose(jnp.sum(x_iic, axis=1), 1.0, atol=1e-5)
    assert jnp.allclose(jnp.sum(x_alt, axis=1), 1.0, atol=1e-5)
    print("KERNEL_OK")
</pallas_src>

<mosaic_0001>
module attributes {stable_mosaic.version = 11 : i64} {
  func.func @_matmul_shift_relu_kernel(%arg0: i32, %arg1: memref<48x100xbf16, #tpu.memory_space<vmem>>, %arg2: memref<100x128xbf16, #tpu.memory_space<vmem>>, %arg3: memref<1x128xf32, #tpu.memory_space<vmem>>, %arg4: memref<48x128xbf16, #tpu.memory_space<vmem>>) attributes {dimension_semantics = [#tpu.dimension_semantics<parallel>], iteration_bounds = array<i64: 2>, scalar_prefetch = 0 : i64, scratch_operands = 0 : i64, tpu.core_type = #tpu.core_type<tc>, window_params = [{transform_indices = @transform_0, window_bounds = array<i64: 48, 100>}, {pipeline_mode = #tpu.pipeline_mode<synchronous>, transform_indices = @transform_1, window_bounds = array<i64: 100, 128>}, {pipeline_mode = #tpu.pipeline_mode<synchronous>, transform_indices = @transform_2, window_bounds = array<i64: 1, 128>}, {transform_indices = @transform_3, window_bounds = array<i64: 48, 128>}]} {
    %c0 = arith.constant 0 : index
    %c0_0 = arith.constant 0 : index
    %0 = vector.load %arg1[%c0, %c0_0] : memref<48x100xbf16, #tpu.memory_space<vmem>>, vector<48x100xbf16>
    %c0_1 = arith.constant 0 : index
    %c0_2 = arith.constant 0 : index
    %1 = vector.load %arg2[%c0_1, %c0_2] : memref<100x128xbf16, #tpu.memory_space<vmem>>, vector<100x128xbf16>
    %cst = arith.constant dense<0.000000e+00> : vector<48x128xf32>
    %2 = tpu.matmul %0, %1, %cst {dimension_numbers = #tpu.dot_dimension_numbers<[1], [0], [0], [1], [0, 0, 1, 1], [], []>} : vector<48x100xbf16>, vector<100x128xbf16>, vector<48x128xf32> -> vector<48x128xf32>
    %c0_3 = arith.constant 0 : index
    %c0_4 = arith.constant 0 : index
    %3 = vector.load %arg3[%c0_3, %c0_4] : memref<1x128xf32, #tpu.memory_space<vmem>>, vector<1x128xf32>
    %4 = vector.broadcast %3 : vector<1x128xf32> to vector<48x128xf32>
    %5 = arith.addf %2, %4 : vector<48x128xf32>
    %cst_5 = arith.constant 0.000000e+00 : f32
    %6 = vector.broadcast %cst_5 : f32 to vector<48x128xf32>
    %7 = arith.maximumf %5, %6 : vector<48x128xf32>
    %8 = arith.truncf %7 : vector<48x128xf32> to vector<48x128xbf16>
    %c0_6 = arith.constant 0 : index
    %c0_7 = arith.constant 0 : index
    %9 = vector.load %arg4[%c0_6, %c0_7] : memref<48x128xbf16, #tpu.memory_space<vmem>>, vector<48x128xbf16>
    tpu.vector_store %arg4[%c0_6, %c0_7], %8 {strides = array<i32>} : memref<48x128xbf16, #tpu.memory_space<vmem>>, vector<48x128xbf16>,
    return
  }
  func.func @transform_0(%arg0: i32) -> (i32, i32) {
    %c0_i32 = arith.constant 0 : i32
    %c0_i32_0 = arith.constant 0 : i32
    return %arg0, %c0_i32 : i32, i32
  }
  func.func @transform_1(%arg0: i32) -> (i32, i32) {
    %c0_i32 = arith.constant 0 : i32
    %c0_i32_0 = arith.constant 0 : i32
    %c0_i32_1 = arith.constant 0 : i32
    return %c0_i32, %c0_i32_0 : i32, i32
  }
  func.func @transform_2(%arg0: i32) -> (i32, i32) {
    %c0_i32 = arith.constant 0 : i32
    %c0_i32_0 = arith.constant 0 : i32
    %c0_i32_1 = arith.constant 0 : i32
    return %c0_i32, %c0_i32_0 : i32, i32
  }
  func.func @transform_3(%arg0: i32) -> (i32, i32) {
    %c0_i32 = arith.constant 0 : i32
    %c0_i32_0 = arith.constant 0 : i32
    return %arg0, %c0_i32 : i32, i32
  }
}

module attributes {stable_mosaic.version = 11 : i64} {
  func.func @_matmul_shift_relu_kernel(%arg0: i32, %arg1: memref<16x3200xbf16, #tpu.memory_space<vmem>>, %arg2: memref<3200x128xbf16, #tpu.memory_space<vmem>>, %arg3: memref<1x128xf32, #tpu.memory_space<vmem>>, %arg4: memref<16x128xbf16, #tpu.memory_space<vmem>>) attributes {dimension_semantics = [#tpu.dimension_semantics<parallel>], iteration_bounds = array<i64: 2>, scalar_prefetch = 0 : i64, scratch_operands = 0 : i64, tpu.core_type = #tpu.core_type<tc>, window_params = [{transform_indices = @transform_0, window_bounds = array<i64: 16, 3200>}, {pipeline_mode = #tpu.pipeline_mode<synchronous>, transform_indices = @transform_1, window_bounds = array<i64: 3200, 128>}, {pipeline_mode = #tpu.pipeline_mode<synchronous>, transform_indices = @transform_2, window_bounds = array<i64: 1, 128>}, {transform_indices = @transform_3, window_bounds = array<i64: 16, 128>}]} {
    %c0 = arith.constant 0 : index
    %c0_0 = arith.constant 0 : index
    %0 = vector.load %arg1[%c0, %c0_0] : memref<16x3200xbf16, #tpu.memory_space<vmem>>, vector<16x3200xbf16>
    %c0_1 = arith.constant 0 : index
    %c0_2 = arith.constant 0 : index
    %1 = vector.load %arg2[%c0_1, %c0_2] : memref<3200x128xbf16, #tpu.memory_space<vmem>>, vector<3200x128xbf16>
    %cst = arith.constant dense<0.000000e+00> : vector<16x128xf32>
    %2 = tpu.matmul %0, %1, %cst {dimension_numbers = #tpu.dot_dimension_numbers<[1], [0], [0], [1], [0, 0, 1, 1], [], []>} : vector<16x3200xbf16>, vector<3200x128xbf16>, vector<16x128xf32> -> vector<16x128xf32>
    %c0_3 = arith.constant 0 : index
    %c0_4 = arith.constant 0 : index
    %3 = vector.load %arg3[%c0_3, %c0_4] : memref<1x128xf32, #tpu.memory_space<vmem>>, vector<1x128xf32>
    %4 = vector.broadcast %3 : vector<1x128xf32> to vector<16x128xf32>
    %5 = arith.addf %2, %4 : vector<16x128xf32>
    %cst_5 = arith.constant 0.000000e+00 : f32
    %6 = vector.broadcast %cst_5 : f32 to vector<16x128xf32>
    %7 = arith.maximumf %5, %6 : vector<16x128xf32>
    %8 = arith.truncf %7 : vector<16x128xf32> to vector<16x128xbf16>
    %c0_6 = arith.constant 0 : index
    %c0_7 = arith.constant 0 : index
    %9 = vector.load %arg4[%c0_6, %c0_7] : memref<16x128xbf16, #tpu.memory_space<vmem>>, vector<16x128xbf16>
    tpu.vector_store %arg4[%c0_6, %c0_7], %8 {strides = array<i32>} : memref<16x128xbf16, #tpu.memory_space<vmem>>, vector<16x128xbf16>,
    return
  }
  func.func @transform_0(%arg0: i32) -> (i32, i32) {
    %c0_i32 = arith.constant 0 : i32
    %c0_i32_0 = arith.constant 0 : i32
    return %arg0, %c0_i32 : i32, i32
  }
  func.func @transform_1(%arg0: i32) -> (i32, i32) {
    %c0_i32 = arith.constant 0 : i32
    %c0_i32_0 = arith.constant 0 : i32
    %c0_i32_1 = arith.constant 0 : i32
    return %c0_i32, %c0_i32_0 : i32, i32
  }
  func.func @transform_2(%arg0: i32) -> (i32, i32) {
    %c0_i32 = arith.constant 0 : i32
    %c0_i32_0 = arith.constant 0 : i32
    %c0_i32_1 = arith.constant 0 : i32
    return %c0_i32, %c0_i32_0 : i32, i32
  }
  func.func @transform_3(%arg0: i32) -> (i32, i32) {
    %c0_i32 = arith.constant 0 : i32
    %c0_i32_0 = arith.constant 0 : i32
    return %arg0, %c0_i32 : i32, i32
  }
}

module attributes {stable_mosaic.version = 11 : i64} {
  func.func @_matmul_shift_relu_kernel(%arg0: i32, %arg1: memref<16x3200xbf16, #tpu.memory_space<vmem>>, %arg2: memref<3200x128xbf16, #tpu.memory_space<vmem>>, %arg3: memref<1x128xf32, #tpu.memory_space<vmem>>, %arg4: memref<16x128xbf16, #tpu.memory_space<vmem>>) attributes {dimension_semantics = [#tpu.dimension_semantics<parallel>], iteration_bounds = array<i64: 1>, scalar_prefetch = 0 : i64, scratch_operands = 0 : i64, tpu.core_type = #tpu.core_type<tc>, window_params = [{transform_indices = @transform_0, window_bounds = array<i64: 16, 3200>}, {pipeline_mode = #tpu.pipeline_mode<synchronous>, transform_indices = @transform_1, window_bounds = array<i64: 3200, 128>}, {pipeline_mode = #tpu.pipeline_mode<synchronous>, transform_indices = @transform_2, window_bounds = array<i64: 1, 128>}, {transform_indices = @transform_3, window_bounds = array<i64: 16, 128>}]} {
    %c0 = arith.constant 0 : index
    %c0_0 = arith.constant 0 : index
    %0 = vector.load %arg1[%c0, %c0_0] : memref<16x3200xbf16, #tpu.memory_space<vmem>>, vector<16x3200xbf16>
    %c0_1 = arith.constant 0 : index
    %c0_2 = arith.constant 0 : index
    %1 = vector.load %arg2[%c0_1, %c0_2] : memref<3200x128xbf16, #tpu.memory_space<vmem>>, vector<3200x128xbf16>
    %cst = arith.constant dense<0.000000e+00> : vector<16x128xf32>
    %2 = tpu.matmul %0, %1, %cst {dimension_numbers = #tpu.dot_dimension_numbers<[1], [0], [0], [1], [0, 0, 1, 1], [], []>} : vector<16x3200xbf16>, vector<3200x128xbf16>, vector<16x128xf32> -> vector<16x128xf32>
    %c0_3 = arith.constant 0 : index
    %c0_4 = arith.constant 0 : index
    %3 = vector.load %arg3[%c0_3, %c0_4] : memref<1x128xf32, #tpu.memory_space<vmem>>, vector<1x128xf32>
    %4 = vector.broadcast %3 : vector<1x128xf32> to vector<16x128xf32>
    %5 = arith.addf %2, %4 : vector<16x128xf32>
    %cst_5 = arith.constant 0.000000e+00 : f32
    %6 = vector.broadcast %cst_5 : f32 to vector<16x128xf32>
    %7 = arith.maximumf %5, %6 : vector<16x128xf32>
    %8 = arith.truncf %7 : vector<16x128xf32> to vector<16x128xbf16>
    %c0_6 = arith.constant 0 : index
    %c0_7 = arith.constant 0 : index
    %9 = vector.load %arg4[%c0_6, %c0_7] : memref<16x128xbf16, #tpu.memory_space<vmem>>, vector<16x128xbf16>
    tpu.vector_store %arg4[%c0_6, %c0_7], %8 {strides = array<i32>} : memref<16x128xbf16, #tpu.memory_space<vmem>>, vector<16x128xbf16>,
    return
  }
  func.func @transform_0(%arg0: i32) -> (i32, i32) {
    %c0_i32 = arith.constant 0 : i32
    %c0_i32_0 = arith.constant 0 : i32
    return %arg0, %c0_i32 : i32, i32
  }
  func.func @transform_1(%arg0: i32) -> (i32, i32) {
    %c0_i32 = arith.constant 0 : i32
    %c0_i32_0 = arith.constant 0 : i32
    %c0_i32_1 = arith.constant 0 : i32
    return %c0_i32, %c0_i32_0 : i32, i32
  }
  func.func @transform_2(%arg0: i32) -> (i32, i32) {
    %c0_i32 = arith.constant 0 : i32
    %c0_i32_0 = arith.constant 0 : i32
    %c0_i32_1 = arith.constant 0 : i32
    return %c0_i32, %c0_i32_0 : i32, i32
  }
  func.func @transform_3(%arg0: i32) -> (i32, i32) {
    %c0_i32 = arith.constant 0 : i32
    %c0_i32_0 = arith.constant 0 : i32
    return %arg0, %c0_i32 : i32, i32
  }
}

module attributes {stable_mosaic.version = 11 : i64} {
  func.func @_fc_tail_kernel(%arg0: i32, %arg1: memref<16x512xbf16, #tpu.memory_space<vmem>>, %arg2: memref<512x64xbf16, #tpu.memory_space<vmem>>, %arg3: memref<1x64xf32, #tpu.memory_space<vmem>>, %arg4: memref<64x256xbf16, #tpu.memory_space<vmem>>, %arg5: memref<1x256xf32, #tpu.memory_space<vmem>>, %arg6: memref<256x512xbf16, #tpu.memory_space<vmem>>, %arg7: memref<512x6xf32, #tpu.memory_space<vmem>>, %arg8: memref<1x6xf32, #tpu.memory_space<vmem>>, %arg9: memref<16x6xf32, #tpu.memory_space<vmem>>) attributes {dimension_semantics = [#tpu.dimension_semantics<parallel>], iteration_bounds = array<i64: 1>, scalar_prefetch = 0 : i64, scratch_operands = 0 : i64, tpu.core_type = #tpu.core_type<tc>, window_params = [{transform_indices = @transform_0, window_bounds = array<i64: 16, 512>}, {pipeline_mode = #tpu.pipeline_mode<synchronous>, transform_indices = @transform_1, window_bounds = array<i64: 512, 64>}, {pipeline_mode = #tpu.pipeline_mode<synchronous>, transform_indices = @transform_2, window_bounds = array<i64: 1, 64>}, {pipeline_mode = #tpu.pipeline_mode<synchronous>, transform_indices = @transform_3, window_bounds = array<i64: 64, 256>}, {pipeline_mode = #tpu.pipeline_mode<synchronous>, transform_indices = @transform_4, window_bounds = array<i64: 1, 256>}, {pipeline_mode = #tpu.pipeline_mode<synchronous>, transform_indices = @transform_5, window_bounds = array<i64: 256, 512>}, {pipeline_mode = #tpu.pipeline_mode<synchronous>, transform_indices = @transform_6, window_bounds = array<i64: 512, 6>}, {pipeline_mode = #tpu.pipeline_mode<synchronous>, transform_indices = @transform_7, window_bounds = array<i64: 1, 6>}, {transform_indices = @transform_8, window_bounds = array<i64: 16, 6>}]} {
    %c0 = arith.constant 0 : index
    %c0_0 = arith.constant 0 : index
    %0 = vector.load %arg1[%c0, %c0_0] : memref<16x512xbf16, #tpu.memory_space<vmem>>, vector<16x512xbf16>
    %c0_1 = arith.constant 0 : index
    %c0_2 = arith.constant 0 : index
    %1 = vector.load %arg2[%c0_1, %c0_2] : memref<512x64xbf16, #tpu.memory_space<vmem>>, vector<512x64xbf16>
    %cst = arith.constant dense<0.000000e+00> : vector<16x64xf32>
    %2 = tpu.matmul %0, %1, %cst {dimension_numbers = #tpu.dot_dimension_numbers<[1], [0], [0], [1], [0, 0, 1, 1], [], []>} : vector<16x512xbf16>, vector<512x64xbf16>, vector<16x64xf32> -> vector<16x64xf32>
    %c0_3 = arith.constant 0 : index
    %c0_4 = arith.constant 0 : index
    %3 = vector.load %arg3[%c0_3, %c0_4] : memref<1x64xf32, #tpu.memory_space<vmem>>, vector<1x64xf32>
    %4 = vector.broadcast %3 : vector<1x64xf32> to vector<16x64xf32>
    %5 = arith.addf %2, %4 : vector<16x64xf32>
    %cst_5 = arith.constant 0.000000e+00 : f32
    %6 = vector.broadcast %cst_5 : f32 to vector<16x64xf32>
    %7 = arith.maximumf %5, %6 : vector<16x64xf32>
    %8 = arith.truncf %7 : vector<16x64xf32> to vector<16x64xbf16>
    %c0_6 = arith.constant 0 : index
    %c0_7 = arith.constant 0 : index
    %9 = vector.load %arg4[%c0_6, %c0_7] : memref<64x256xbf16, #tpu.memory_space<vmem>>, vector<64x256xbf16>
    %cst_8 = arith.constant dense<0.000000e+00> : vector<16x256xf32>
    %10 = tpu.matmul %8, %9, %cst_8 {dimension_numbers = #tpu.dot_dimension_numbers<[1], [0], [0], [1], [0, 0, 1, 1], [], []>} : vector<16x64xbf16>, vector<64x256xbf16>, vector<16x256xf32> -> vector<16x256xf32>
    %c0_9 = arith.constant 0 : index
    %c0_10 = arith.constant 0 : index
    %11 = vector.load %arg5[%c0_9, %c0_10] : memref<1x256xf32, #tpu.memory_space<vmem>>, vector<1x256xf32>
    %12 = vector.broadcast %11 : vector<1x256xf32> to vector<16x256xf32>
    %13 = arith.addf %10, %12 : vector<16x256xf32>
    %cst_11 = arith.constant 0.000000e+00 : f32
    %14 = vector.broadcast %cst_11 : f32 to vector<16x256xf32>
    %15 = arith.maximumf %13, %14 : vector<16x256xf32>
    %16 = arith.truncf %15 : vector<16x256xf32> to vector<16x256xbf16>
    %c0_12 = arith.constant 0 : index
    %c0_13 = arith.constant 0 : index
    %17 = vector.load %arg6[%c0_12, %c0_13] : memref<256x512xbf16, #tpu.memory_space<vmem>>, vector<256x512xbf16>
    %cst_14 = arith.constant dense<0.000000e+00> : vector<16x512xf32>
    %18 = tpu.matmul %16, %17, %cst_14 {dimension_numbers = #tpu.dot_dimension_numbers<[1], [0], [0], [1], [0, 0, 1, 1], [], []>} : vector<16x256xbf16>, vector<256x512xbf16>, vector<16x512xf32> -> vector<16x512xf32>
    %c0_15 = arith.constant 0 : index
    %c0_16 = arith.constant 0 : index
    %19 = vector.load %arg7[%c0_15, %c0_16] : memref<512x6xf32, #tpu.memory_space<vmem>>, vector<512x6xf32>
    %cst_17 = arith.constant dense<0.000000e+00> : vector<16x6xf32>
    %20 = tpu.matmul %18, %19, %cst_17 {dimension_numbers = #tpu.dot_dimension_numbers<[1], [0], [0], [1], [0, 0, 1, 1], [], []>} : vector<16x512xf32>, vector<512x6xf32>, vector<16x6xf32> -> vector<16x6xf32>
    %c0_18 = arith.constant 0 : index
    %c0_19 = arith.constant 0 : index
    %21 = vector.load %arg8[%c0_18, %c0_19] : memref<1x6xf32, #tpu.memory_space<vmem>>, vector<1x6xf32>
    %22 = vector.broadcast %21 : vector<1x6xf32> to vector<16x6xf32>
    %23 = arith.addf %20, %22 : vector<16x6xf32>
    %24 = tpu.iota {dimensions = array<i32: 1>} : vector<16x6xi32>
    %c3_i32 = arith.constant 3 : i32
    %25 = vector.broadcast %c3_i32 : i32 to vector<16x6xi32>
    %26 = arith.cmpi slt, %24, %25 : vector<16x6xi32>
    %cst_20 = arith.constant -1.000000e+30 : f32
    %27 = vector.broadcast %cst_20 : f32 to vector<16x6xf32>
    %28 = arith.select %26, %23, %27 : vector<16x6xi1>, vector<16x6xf32>
    %cst_21 = arith.constant dense<0xFF800000> : vector<16xf32>
    %29 = vector.multi_reduction <maximumf>, %28, %cst_21 [1] : vector<16x6xf32> to vector<16xf32>
    %30 = vector.shape_cast %29 : vector<16xf32> to vector<16x1xf32>
    %cst_22 = arith.constant -1.000000e+30 : f32
    %31 = vector.broadcast %cst_22 : f32 to vector<16x6xf32>
    %32 = arith.select %26, %31, %23 : vector<16x6xi1>, vector<16x6xf32>
    %cst_23 = arith.constant dense<0xFF800000> : vector<16xf32>
    %33 = vector.multi_reduction <maximumf>, %32, %cst_23 [1] : vector<16x6xf32> to vector<16xf32>
    %34 = vector.shape_cast %33 : vector<16xf32> to vector<16x1xf32>
    %35 = vector.shape_cast %30 : vector<16x1xf32> to vector<16x1xf32>
    %36 = vector.broadcast %35 : vector<16x1xf32> to vector<16x6xf32>
    %37 = vector.shape_cast %34 : vector<16x1xf32> to vector<16x1xf32>
    %38 = vector.broadcast %37 : vector<16x1xf32> to vector<16x6xf32>
    %39 = arith.select %26, %36, %38 : vector<16x6xi1>, vector<16x6xf32>
    %40 = arith.subf %23, %39 : vector<16x6xf32>
    %41 = math.exp %40 : vector<16x6xf32>
    %cst_24 = arith.constant 0.000000e+00 : f32
    %42 = vector.broadcast %cst_24 : f32 to vector<16x6xf32>
    %43 = arith.select %26, %41, %42 : vector<16x6xi1>, vector<16x6xf32>
    %cst_25 = arith.constant dense<0.000000e+00> : vector<16xf32>
    %44 = vector.multi_reduction <add>, %43, %cst_25 [1] : vector<16x6xf32> to vector<16xf32>
    %45 = vector.shape_cast %44 : vector<16xf32> to vector<16x1xf32>
    %cst_26 = arith.constant 0.000000e+00 : f32
    %46 = vector.broadcast %cst_26 : f32 to vector<16x6xf32>
    %47 = arith.select %26, %46, %41 : vector<16x6xi1>, vector<16x6xf32>
    %cst_27 = arith.constant dense<0.000000e+00> : vector<16xf32>
    %48 = vector.multi_reduction <add>, %47, %cst_27 [1] : vector<16x6xf32> to vector<16xf32>
    %49 = vector.shape_cast %48 : vector<16xf32> to vector<16x1xf32>
    %50 = vector.shape_cast %45 : vector<16x1xf32> to vector<16x1xf32>
    %51 = vector.broadcast %50 : vector<16x1xf32> to vector<16x6xf32>
    %52 = vector.shape_cast %49 : vector<16x1xf32> to vector<16x1xf32>
    %53 = vector.broadcast %52 : vector<16x1xf32> to vector<16x6xf32>
    %54 = arith.select %26, %51, %53 : vector<16x6xi1>, vector<16x6xf32>
    %55 = arith.divf %41, %54 : vector<16x6xf32>
    %c0_28 = arith.constant 0 : index
    %c0_29 = arith.constant 0 : index
    %56 = vector.load %arg9[%c0_28, %c0_29] : memref<16x6xf32, #tpu.memory_space<vmem>>, vector<16x6xf32>
    tpu.vector_store %arg9[%c0_28, %c0_29], %55 {strides = array<i32>} : memref<16x6xf32, #tpu.memory_space<vmem>>, vector<16x6xf32>,
    return
  }
  func.func @transform_0(%arg0: i32) -> (i32, i32) {
    %c0_i32 = arith.constant 0 : i32
    %c0_i32_0 = arith.constant 0 : i32
    return %arg0, %c0_i32 : i32, i32
  }
  func.func @transform_1(%arg0: i32) -> (i32, i32) {
    %c0_i32 = arith.constant 0 : i32
    %c0_i32_0 = arith.constant 0 : i32
    %c0_i32_1 = arith.constant 0 : i32
    return %c0_i32, %c0_i32_0 : i32, i32
  }
  func.func @transform_2(%arg0: i32) -> (i32, i32) {
    %c0_i32 = arith.constant 0 : i32
    %c0_i32_0 = arith.constant 0 : i32
    %c0_i32_1 = arith.constant 0 : i32
    return %c0_i32, %c0_i32_0 : i32, i32
  }
  func.func @transform_3(%arg0: i32) -> (i32, i32) {
    %c0_i32 = arith.constant 0 : i32
    %c0_i32_0 = arith.constant 0 : i32
    %c0_i32_1 = arith.constant 0 : i32
    return %c0_i32, %c0_i32_0 : i32, i32
  }
  func.func @transform_4(%arg0: i32) -> (i32, i32) {
    %c0_i32 = arith.constant 0 : i32
    %c0_i32_0 = arith.constant 0 : i32
    %c0_i32_1 = arith.constant 0 : i32
    return %c0_i32, %c0_i32_0 : i32, i32
  }
  func.func @transform_5(%arg0: i32) -> (i32, i32) {
    %c0_i32 = arith.constant 0 : i32
    %c0_i32_0 = arith.constant 0 : i32
    %c0_i32_1 = arith.constant 0 : i32
    return %c0_i32, %c0_i32_0 : i32, i32
  }
  func.func @transform_6(%arg0: i32) -> (i32, i32) {
    %c0_i32 = arith.constant 0 : i32
    %c0_i32_0 = arith.constant 0 : i32
    %c0_i32_1 = arith.constant 0 : i32
    return %c0_i32, %c0_i32_0 : i32, i32
  }
  func.func @transform_7(%arg0: i32) -> (i32, i32) {
    %c0_i32 = arith.constant 0 : i32
    %c0_i32_0 = arith.constant 0 : i32
    %c0_i32_1 = arith.constant 0 : i32
    return %c0_i32, %c0_i32_0 : i32, i32
  }
  func.func @transform_8(%arg0: i32) -> (i32, i32) {
    %c0_i32 = arith.constant 0 : i32
    %c0_i32_0 = arith.constant 0 : i32
    return %arg0, %c0_i32 : i32, i32
  }
}

</mosaic_0001>

<llo_original>
// kernel: netx_forward.4
$region0: #{netx_forward.4}
  #allocation0 [shape = 'u32[]', space=smem, size = 0x4, offset = 0x4, fixed_abs, tag = 'smem constant byte address 0x4 - core index']
  #allocation1 [shape = 'u32[144,128]{1,0:T(1,128)}', space=vmem, size = 0x12000, scoped, tag = 'internal scratch']
  %s0 = inlined_call_operand.vmem [shape: bf16[96,100], index: 0, kind: input, shape index: {}]
  %s1 = inlined_call_operand.vmem [shape: bf16[100,128], index: 1, kind: input, shape index: {}]
  %s2 = inlined_call_operand.vmem [shape: f32[1,128], index: 2, kind: input, shape index: {}]
  %s3 = inlined_call_operand.vmem [shape: bf16[96,128], index: 3, kind: output, shape index: {}]
  %s4 = sld [smem:[#allocation0]]
  $region45: #{netx_forward.4} parent=0
    _
  %s6 = ssub.s32 1, %s4
  %s7 = scalar_select 0, %s6, %s4
  loop: start=0, step=1, limit=4
  $region2: #{netx_forward.4} parent=0 // loop_pre_header
    _
  $region3: #{netx_forward.4} parent=0 // loop_header
    %s9 = sphi 0, %s13
    %p10 = scmp.ge.s32.totalorder %s9, 4
    %s19 = sphi 0, %s21
    %s22 = sphi 0, %s19
    %s23 = sphi 0, %s22
    %s39 = sphi 0, %s23
    %s43 = sphi 0, %s43
    %s45 = sphi 0, %s43
    %s46 = sphi 0, %s45
    %s60 = sphi 0, %s46
    %s64 = sphi 0, %s64
    %s66 = sphi 0, %s64
    %s67 = sphi 0, %s66
    %s81 = sphi 0, %s67
    %s87 = sphi 0, %s89
    %s90 = sphi 0, %s87
    %s91 = sphi 0, %s90
    %s107 = sphi 0, %s91
  $region4: #{netx_forward.4} parent=0 // loop_header_branch
    %12 = sbr.rel (%p10) target = $region8
  $region5: #{netx_forward.4} parent=0 // loop_body
    %s14 = ssub.s32 %s9, 1
    %s15 = ssub.s32 %s9, 2
    %s16 = sadd.s32 %s9, 1
    %s17 = ssub.s32 %s9, %s16
    %p18 = scmp.eq.s32.totalorder %s17, 0
    %s20 = sadd.s32 %s19, 1
    %s21 = scalar_select %p18, %s19, %s20
    %p24 = pneg %p18
    %p25 = scmp.eq.s32.totalorder %s9, 1
    %p26 = por %p24, %p25
    %p27 = scmp.ne.s32.totalorder %s19, %s22
    %p28 = scmp.eq.s32.totalorder %s9, 0
    %p29 = por %p27, %p28
    %p30 = scmp.ne.s32.totalorder %s19, %s22
    %p31 = scmp.eq.s32.totalorder %s14, 1
    %p32 = por %p30, %p31
    %p33 = scmp.ne.s32.totalorder %s22, %s23
    %p34 = scmp.eq.s32.totalorder %s14, 0
    %p35 = por %p33, %p34
    %p36 = scmp.ne.s32.totalorder %s22, %s23
    %p37 = scmp.eq.s32.totalorder %s15, 1
    %p38 = por %p36, %p37
    %p40 = scmp.ne.s32.totalorder %s23, %s39
    %p41 = scmp.eq.s32.totalorder %s15, 0
    %p42 = por %p40, %p41
    %s44 = sadd.s32 %s43, 1
    %p47 = scmp.eq.s32.totalorder %s9, 1
    %p48 = scmp.ne.s32.totalorder %s43, %s45
    %p49 = scmp.eq.s32.totalorder %s9, 0
    %p50 = por %p48, %p49
    %p51 = scmp.ne.s32.totalorder %s43, %s45
    %p52 = scmp.eq.s32.totalorder %s14, 1
    %p53 = por %p51, %p52
    %p54 = scmp.ne.s32.totalorder %s45, %s46
    %p55 = scmp.eq.s32.totalorder %s14, 0
    %p56 = por %p54, %p55
    %p57 = scmp.ne.s32.totalorder %s45, %s46
    %p58 = scmp.eq.s32.totalorder %s15, 1
    %p59 = por %p57, %p58
    %p61 = scmp.ne.s32.totalorder %s46, %s60
    %p62 = scmp.eq.s32.totalorder %s15, 0
    %p63 = por %p61, %p62
    %s65 = sadd.s32 %s64, 1
    %p68 = scmp.eq.s32.totalorder %s9, 1
    %p69 = scmp.ne.s32.totalorder %s64, %s66
    %p70 = scmp.eq.s32.totalorder %s9, 0
    %p71 = por %p69, %p70
    %p72 = scmp.ne.s32.totalorder %s64, %s66
    %p73 = scmp.eq.s32.totalorder %s14, 1
    %p74 = por %p72, %p73
    %p75 = scmp.ne.s32.totalorder %s66, %s67
    %p76 = scmp.eq.s32.totalorder %s14, 0
    %p77 = por %p75, %p76
    %p78 = scmp.ne.s32.totalorder %s66, %s67
    %p79 = scmp.eq.s32.totalorder %s15, 1
    %p80 = por %p78, %p79
    %p82 = scmp.ne.s32.totalorder %s67, %s81
    %p83 = scmp.eq.s32.totalorder %s15, 0
    %p84 = por %p82, %p83
    %s85 = ssub.s32 %s9, %s16
    %p86 = scmp.eq.s32.totalorder %s85, 0
    %s88 = sadd.s32 %s87, 1
    %s89 = scalar_select %p86, %s87, %s88
    %p92 = pneg %p86
    %p93 = scmp.eq.s32.totalorder %s9, 1
    %p94 = por %p92, %p93
    %p95 = scmp.ne.s32.totalorder %s87, %s90
    %p96 = scmp.eq.s32.totalorder %s9, 0
    %p97 = por %p95, %p96
    %p98 = scmp.ne.s32.totalorder %s87, %s90
    %p99 = scmp.eq.s32.totalorder %s14, 1
    %p100 = por %p98, %p99
    %p101 = scmp.ne.s32.totalorder %s90, %s91
    %p102 = scmp.eq.s32.totalorder %s14, 0
    %p103 = por %p101, %p102
    %p104 = scmp.ne.s32.totalorder %s90, %s91
    %p105 = scmp.eq.s32.totalorder %s15, 1
    %p106 = por %p104, %p105
    %p108 = scmp.ne.s32.totalorder %s91, %s107
    %p109 = scmp.eq.s32.totalorder %s15, 0
    %p110 = por %p108, %p109
    %p111 = scmp.le.s32.totalorder 1, %s9
    %p112 = scmp.lt.s32.totalorder %s9, 3
    %p113 = pnand %p111, %p112
    %p114 = pneg %p113
    // Predicated region
    $region9: #{netx_forward.4} parent=5 // pred_check
      _
    $region10: #{netx_forward.4} parent=5 // pred_check_branch
      %116 = sbr.rel (%p113) target = $region12
    $region11: #{netx_forward.4} parent=5 // pred_region
      %s117 = ssub.s32 %s9, 1
      // Predicated region
      $region13: #{netx_forward.4} parent=11 // pred_check
        %p118 = pneg %p56
      $region14: #{netx_forward.4} parent=11 // pred_check_branch
        %120 = sbr.rel (%p118) target = $region16
      $region15: #{netx_forward.4} parent=11 // pred_region
        _
      $region16: #{netx_forward.4} parent=11 // pred_fallthru
        _
      // Predicated region
      $region17: #{netx_forward.4} parent=11 // pred_check
        %p121 = pneg %p77
      $region18: #{netx_forward.4} parent=11 // pred_check_branch
        %123 = sbr.rel (%p121) target = $region20
      $region19: #{netx_forward.4} parent=11 // pred_region
        _
      $region20: #{netx_forward.4} parent=11 // pred_fallthru
        _
    $region12: #{netx_forward.4} parent=5 // pred_fallthru
      _
    %p124 = scmp.lt.s32.totalorder %s9, 2
    // Predicated region
    $region21: #{netx_forward.4} parent=5 // pred_check
      %p125 = pneg %p124
    $region22: #{netx_forward.4} parent=5 // pred_check_branch
      %127 = sbr.rel (%p125) target = $region24
    $region23: #{netx_forward.4} parent=5 // pred_region
      // Predicated region
      $region25: #{netx_forward.4} parent=23 // pred_check
        %p128 = pneg %p29
      $region26: #{netx_forward.4} parent=23 // pred_check_branch
        %130 = sbr.rel (%p128) target = $region28
      $region27: #{netx_forward.4} parent=23 // pred_region
        %s131 = smul.u32 6, %s9
        %p132 = scmp.lt.s32.totalorder %s131, 11
        %s133 = scalar_select %p132, %s131, 11
        %s134 = smul.addr %s133, 4
        %s135 = scalar_lea.vmem %s0, %s134
        %s136 = smul.u32 6, %s9
      $region28: #{netx_forward.4} parent=23 // pred_fallthru
        _
    $region24: #{netx_forward.4} parent=5 // pred_fallthru
      _
    %p137 = scmp.le.s32.totalorder 1, %s9
    %p138 = scmp.lt.s32.totalorder %s9, 3
    %p139 = pnand %p137, %p138
    %p140 = pneg %p139
    // Predicated region
    $region29: #{netx_forward.4} parent=5 // pred_check
      _
    $region30: #{netx_forward.4} parent=5 // pred_check_branch
      %142 = sbr.rel (%p139) target = $region32
    $region31: #{netx_forward.4} parent=5 // pred_region
      %s143 = ssub.s32 %s9, 1
      %s144 = smul.u32 6, %s14
      %p145 = scmp.lt.s32.totalorder %s144, 11
      %s146 = scalar_select %p145, %s144, 11
      %s147 = smul.addr %s146, 4
      %s148 = scalar_lea.vmem %s0, %s147
      %p149 = pneg %p35
      %p150 = pneg %p32
      %p151 = pneg %p56
      %p152 = pneg %p53
      %p153 = pneg %p77
      %p154 = pneg %p74
      %p155 = pneg %p103
      %p156 = pneg %p100
      %s157 = smul.u32 6, %s14
      %p158 = scmp.lt.s32.totalorder %s157, 11
      %s159 = scalar_select %p158, %s157, 11
      %s160 = smul.addr %s159, 4
      %s161 = scalar_lea.vmem %s3, %s160
      %s162 = smul.u32 6, %s14
      %p163 = scmp.lt.s32.totalorder %s162, 11
      %s164 = scalar_select %p163, %s162, 11
      %s165 = smul.addr %s164, 4
      %s166 = scalar_lea.vmem %s0, %s165
      %s167 = smul.u32 6, %s14
      %s168 = smul.u32 6, %s14
      %p169 = scmp.lt.s32.totalorder %s168, 11
      %s170 = scalar_select %p169, %s168, 11
      %s171 = smul.addr %s170, 4
      %s172 = scalar_lea.vmem %s3, %s171
      %s173 = smul.u32 6, %s14
      %v175 = vld [vmem:[%s166] sm:$0xf]
      %v176 = vld [vmem:[%s166 + $0x4] sm:$0xf]
      %v177 = vld [vmem:[%s166 + $0x8] sm:$0xf]
      %v178 = vld [vmem:[%s166 + $0xc] sm:$0xf]
      %v179 = vld [vmem:[%s166 + $0x10] sm:$0xf]
      %v180 = vld [vmem:[%s166 + $0x14] sm:$0xf]
      %v181 = vld [vmem:[%s1] sm:$0xf]
      %v182 = vld [vmem:[%s1 + $0x4] sm:$0xf]
      %v183 = vld [vmem:[%s1 + $0x8] sm:$0xf]
      %v184 = vld [vmem:[%s1 + $0xc] sm:$0xf]
      %v185 = vld [vmem:[%s1 + $0x10] sm:$0xf]
      %v186 = vld [vmem:[%s1 + $0x14] sm:$0xf]
      %v187 = vld [vmem:[%s1 + $0x18] sm:$0xf]
      %v188 = vld [vmem:[%s1 + $0x1c] sm:$0xf]
      %v189 = vld [vmem:[%s1 + $0x20] sm:$0xf]
      %v190 = vld [vmem:[%s1 + $0x24] sm:$0xf]
      %v191 = vld [vmem:[%s1 + $0x28] sm:$0xf]
      %v192 = vld [vmem:[%s1 + $0x2c] sm:$0xf]
      %v193 = vld [vmem:[%s1 + $0x30] sm:$0x3]
      %v194 = vld [vmem:[%s2] sm:$0x1]
      %v196 = vlaneseq
      %v197 = vshrl.u32 %v196, 7
      %v198 = vsub.s32 0, %v197
      %v199 = vrot.slane %v194, %v198
      %v207 = vunpack.c.l.b16 %v175
      %v208 = vunpack.c.l.b16 %v176
      %v209 = vunpack.c.l.b16 %v177
      %v210 = vunpack.c.l.b16 %v178
      %v211 = vunpack.c.l.b16 %v179
      %v212 = vunpack.c.l.b16 %v180
      %v213 = vpack.c.b16 %v208, %v207
      %v214 = vpack.c.b16 %v210, %v209
      %v215 = vpack.c.b16 %v212, %v211
      %v229 = vunpack.c.l.b16 %v181
      %v230 = vunpack.c.l.b16 %v182
      %v231 = vunpack.c.l.b16 %v183
      %v232 = vunpack.c.l.b16 %v184
      %v233 = vunpack.c.l.b16 %v185
      %v234 = vunpack.c.l.b16 %v186
      %v235 = vunpack.c.l.b16 %v187
      %v236 = vunpack.c.l.b16 %v188
      %v237 = vunpack.c.l.b16 %v189
      %v238 = vunpack.c.l.b16 %v190
      %v239 = vunpack.c.l.b16 %v191
      %v240 = vunpack.c.l.b16 %v192
      %v241 = vunpack.c.l.b16 %v193
      %v242 = vpack.c.b16 %v230, %v229
      %v243 = vpack.c.b16 %v232, %v231
      %v244 = vpack.c.b16 %v234, %v233
      %v245 = vpack.c.b16 %v236, %v235
      %v246 = vpack.c.b16 %v238, %v237
      %v247 = vpack.c.b16 %v240, %v239
      %v248 = vpack.c.b16 %v241, %v241
      %vm255 = vcmask 818176
      %v257 = vsel %vm255, %v213, 0
      %v260 = vsel %vm255, %v214, 0
      %v263 = vsel %vm255, %v215, 0
      %vm265 = vcmask 1041408
      %v267 = vsel %vm265, %v248, 0
      %269 = vmatprep.subr.bf16.mxu0 0
      %270 = vmatpush1.bf16.msra.mxu0 %v242
      %271 = vmatprep.subr.bf16.mxu0 0
      %272 = vmatpush1.bf16.msra.mxu0 %v243
      %273 = vmatprep.subr.bf16.mxu0 0
      %274 = vmatpush1.bf16.msra.mxu0 %v244
      %275 = vmatprep.subr.bf16.mxu0 0
      %276 = vmatpush1.bf16.msra.mxu0 %v245
      %277 = vmatprep.subr.bf16.mxu0 0
      %278 = vmatpush1.bf16.msra.mxu0 %v246
      %279 = vmatprep.subr.bf16.mxu0 0
      %280 = vmatpush1.bf16.msra.mxu0 %v247
      %281 = vmatprep.subr.bf16.mxu0 0
      %282 = vmatpush1.bf16.msra.mxu0 %v267
      %283 = vmatprep.subr.bf16.mxu0 0
      %284 = vmatpush1.bf16.msra.mxu0 0
      %285 = vmatprep.subr.bf16.mxu0 0
      %286 = vmatpush1.bf16.msra.mxu0 0
      %287 = vmatprep.subr.bf16.mxu0 0
      %288 = vmatpush1.bf16.msra.mxu0 0
      %289 = vmatprep.subr.bf16.mxu0 0
      %290 = vmatpush1.bf16.msra.mxu0 0
      %291 = vmatprep.subr.bf16.mxu0 0
      %292 = vmatpush1.bf16.msra.mxu0 0
      %293 = vmatprep.subr.bf16.mxu0 0
      %294 = vmatpush1.bf16.msra.mxu0 0
      %295 = vmatprep.subr.bf16.mxu0 0
      %296 = vmatpush1.bf16.msra.mxu0 0
      %297 = vmatprep.subr.bf16.mxu0 0
      %298 = vmatpush1.bf16.msra.mxu0 0
      %299 = vmatprep.subr.bf16.mxu0 0
      %300 = vmatpush1.bf16.msra.mxu0 0
      %301 = vmatprep.mubr.bf16.mxu0 0
      %302 = vmatmul.mubr.bf16.gmra.mrb[0].mxu0 %v257
      %v303 = vpop.f32.mrb[0].mxu0
      %v304 = vadd.f32 %v199, %v303
      %v305 = vpop.f32.mrb[0].mxu0
      %v306 = vpop.f32.mrb[0].mxu0
      %v307 = vadd.f32 %v199, %v306
      %v308 = vpop.f32.mrb[0].mxu0
      %309 = vmatprep.mubr.bf16.mxu0 0
      %310 = vmatmul.mubr.bf16.gmra.mrb[0].mxu0 %v260
      %v311 = vpop.f32.mrb[0].mxu0
      %v312 = vadd.f32 %v199, %v311
      %v313 = vpop.f32.mrb[0].mxu0
      %v314 = vpop.f32.mrb[0].mxu0
      %v315 = vadd.f32 %v199, %v314
      %v316 = vpop.f32.mrb[0].mxu0
      %317 = vmatprep.mubr.bf16.mxu0 0
      %318 = vmatmul.mubr.bf16.gmra.mrb[0].mxu0 %v263
      %v319 = vpop.f32.mrb[0].mxu0
      %v320 = vadd.f32 %v199, %v319
      %v321 = vpop.f32.mrb[0].mxu0
      %v322 = vpop.f32.mrb[0].mxu0
      %v323 = vadd.f32 %v199, %v322
      %v324 = vpop.f32.mrb[0].mxu0
      %325 = vdwg.mxu0
      %v326 = vmax.f32 %v304, 0.0
      %v327 = vmax.f32 %v307, 0.0
      %v328 = vmax.f32 %v312, 0.0
      %v329 = vmax.f32 %v315, 0.0
      %v330 = vmax.f32 %v320, 0.0
      %v331 = vmax.f32 %v323, 0.0
      %v332 = vpack.c.bf16 %v327, %v326
      %v333 = vpack.c.bf16 %v329, %v328
      %v334 = vpack.c.bf16 %v331, %v330
      %v338 = vunpack.c.l.b16 %v332
      %v339 = vunpack.c.h.b16 %v332
      %v340 = vunpack.c.l.b16 %v333
      %v341 = vunpack.c.h.b16 %v333
      %v342 = vunpack.c.l.b16 %v334
      %v343 = vunpack.c.h.b16 %v334
      %v344 = vpack.c.b16 %v338, %v338
      %v345 = vpack.c.b16 %v339, %v339
      %v346 = vpack.c.b16 %v340, %v340
      %v347 = vpack.c.b16 %v341, %v341
      %v348 = vpack.c.b16 %v342, %v342
      %v349 = vpack.c.b16 %v343, %v343
      %356 = vst [vmem:[%s172] sm:$0xf] %v344
      %357 = vst [vmem:[%s172 + $0x4] sm:$0xf] %v345
      %358 = vst [vmem:[%s172 + $0x8] sm:$0xf] %v346
      %359 = vst [vmem:[%s172 + $0xc] sm:$0xf] %v347
      %360 = vst [vmem:[%s172 + $0x10] sm:$0xf] %v348
      %361 = vst [vmem:[%s172 + $0x14] sm:$0xf] %v349
      %s362 = smul.u32 6, %s14
      %p363 = scmp.lt.s32.totalorder %s362, 11
      %s364 = scalar_select %p363, %s362, 11
      %s365 = smul.addr %s364, 4
      %s366 = scalar_lea.vmem %s3, %s365
      // Predicated region
      $region33: #{netx_forward.4} parent=31 // pred_check
        %p367 = pneg %p100
      $region34: #{netx_forward.4} parent=31 // pred_check_branch
        %369 = sbr.rel (%p367) target = $region36
      $region35: #{netx_forward.4} parent=31 // pred_region
        %s370 = smul.u32 6, %s14
      $region36: #{netx_forward.4} parent=31 // pred_fallthru
        _
    $region32: #{netx_forward.4} parent=5 // pred_fallthru
      _
    %p371 = scmp.le.s32.totalorder 2, %s9
    // Predicated region
    $region37: #{netx_forward.4} parent=5 // pred_check
      %p372 = pneg %p371
    $region38: #{netx_forward.4} parent=5 // pred_check_branch
      %374 = sbr.rel (%p372) target = $region40
    $region39: #{netx_forward.4} parent=5 // pred_region
      %s375 = ssub.s32 %s9, 2
      // Predicated region
      $region41: #{netx_forward.4} parent=39 // pred_check
        %p376 = pneg %p106
      $region42: #{netx_forward.4} parent=39 // pred_check_branch
        %378 = sbr.rel (%p376) target = $region44
      $region43: #{netx_forward.4} parent=39 // pred_region
        %s379 = smul.u32 6, %s15
        %p380 = scmp.lt.s32.totalorder %s379, 11
        %s381 = scalar_select %p380, %s379, 11
        %s382 = smul.addr %s381, 4
        %s383 = scalar_lea.vmem %s3, %s382
      $region44: #{netx_forward.4} parent=39 // pred_fallthru
        _
    $region40: #{netx_forward.4} parent=5 // pred_fallthru
      _
  $region6: #{netx_forward.4} parent=0 // loop_footer
    %s13 = sadd.s32 1, %s9
  $region7: #{netx_forward.4} parent=0 // loop_footer_branch
    %8 = sbr.rel target = $region3
  $region8: #{netx_forward.4} parent=0 // loop_exit
    _

// kernel: netx_forward.5
$region0: #{netx_forward.5}
  #allocation0 [shape = 'u32[]', space=smem, size = 0x4, offset = 0x4, fixed_abs, tag = 'smem constant byte address 0x4 - core index']
  #allocation1 [shape = 'u32[144,128]{1,0:T(1,128)}', space=vmem, size = 0x12000, scoped, tag = 'internal scratch']
  %s0 = inlined_call_operand.vmem [shape: bf16[32,3200], index: 0, kind: input, shape index: {}]
  %s1 = inlined_call_operand.vmem [shape: bf16[3200,128], index: 1, kind: input, shape index: {}]
  %s2 = inlined_call_operand.vmem [shape: f32[1,128], index: 2, kind: input, shape index: {}]
  %s3 = inlined_call_operand.vmem [shape: bf16[32,128], index: 3, kind: output, shape index: {}]
  %s4 = sld [smem:[#allocation0]]
  $region45: #{netx_forward.5} parent=0
    _
  %s6 = ssub.s32 1, %s4
  %s7 = scalar_select 0, %s6, %s4
  loop: start=0, step=1, limit=4
  $region2: #{netx_forward.5} parent=0 // loop_pre_header
    _
  $region3: #{netx_forward.5} parent=0 // loop_header
    %s9 = sphi 0, %s13
    %p10 = scmp.ge.s32.totalorder %s9, 4
    %s19 = sphi 0, %s21
    %s22 = sphi 0, %s19
    %s23 = sphi 0, %s22
    %s39 = sphi 0, %s23
    %s43 = sphi 0, %s43
    %s45 = sphi 0, %s43
    %s46 = sphi 0, %s45
    %s60 = sphi 0, %s46
    %s64 = sphi 0, %s64
    %s66 = sphi 0, %s64
    %s67 = sphi 0, %s66
    %s81 = sphi 0, %s67
    %s87 = sphi 0, %s89
    %s90 = sphi 0, %s87
    %s91 = sphi 0, %s90
    %s107 = sphi 0, %s91
  $region4: #{netx_forward.5} parent=0 // loop_header_branch
    %12 = sbr.rel (%p10) target = $region8
  $region5: #{netx_forward.5} parent=0 // loop_body
    %s14 = ssub.s32 %s9, 1
    %s15 = ssub.s32 %s9, 2
    %s16 = sadd.s32 %s9, 1
    %s17 = ssub.s32 %s9, %s16
    %p18 = scmp.eq.s32.totalorder %s17, 0
    %s20 = sadd.s32 %s19, 1
    %s21 = scalar_select %p18, %s19, %s20
    %p24 = pneg %p18
    %p25 = scmp.eq.s32.totalorder %s9, 1
    %p26 = por %p24, %p25
    %p27 = scmp.ne.s32.totalorder %s19, %s22
    %p28 = scmp.eq.s32.totalorder %s9, 0
    %p29 = por %p27, %p28
    %p30 = scmp.ne.s32.totalorder %s19, %s22
    %p31 = scmp.eq.s32.totalorder %s14, 1
    %p32 = por %p30, %p31
    %p33 = scmp.ne.s32.totalorder %s22, %s23
    %p34 = scmp.eq.s32.totalorder %s14, 0
    %p35 = por %p33, %p34
    %p36 = scmp.ne.s32.totalorder %s22, %s23
    %p37 = scmp.eq.s32.totalorder %s15, 1
    %p38 = por %p36, %p37
    %p40 = scmp.ne.s32.totalorder %s23, %s39
    %p41 = scmp.eq.s32.totalorder %s15, 0
    %p42 = por %p40, %p41
    %s44 = sadd.s32 %s43, 1
    %p47 = scmp.eq.s32.totalorder %s9, 1
    %p48 = scmp.ne.s32.totalorder %s43, %s45
    %p49 = scmp.eq.s32.totalorder %s9, 0
    %p50 = por %p48, %p49
    %p51 = scmp.ne.s32.totalorder %s43, %s45
    %p52 = scmp.eq.s32.totalorder %s14, 1
    %p53 = por %p51, %p52
    %p54 = scmp.ne.s32.totalorder %s45, %s46
    %p55 = scmp.eq.s32.totalorder %s14, 0
    %p56 = por %p54, %p55
    %p57 = scmp.ne.s32.totalorder %s45, %s46
    %p58 = scmp.eq.s32.totalorder %s15, 1
    %p59 = por %p57, %p58
    %p61 = scmp.ne.s32.totalorder %s46, %s60
    %p62 = scmp.eq.s32.totalorder %s15, 0
    %p63 = por %p61, %p62
    %s65 = sadd.s32 %s64, 1
    %p68 = scmp.eq.s32.totalorder %s9, 1
    %p69 = scmp.ne.s32.totalorder %s64, %s66
    %p70 = scmp.eq.s32.totalorder %s9, 0
    %p71 = por %p69, %p70
    %p72 = scmp.ne.s32.totalorder %s64, %s66
    %p73 = scmp.eq.s32.totalorder %s14, 1
    %p74 = por %p72, %p73
    %p75 = scmp.ne.s32.totalorder %s66, %s67
    %p76 = scmp.eq.s32.totalorder %s14, 0
    %p77 = por %p75, %p76
    %p78 = scmp.ne.s32.totalorder %s66, %s67
    %p79 = scmp.eq.s32.totalorder %s15, 1
    %p80 = por %p78, %p79
    %p82 = scmp.ne.s32.totalorder %s67, %s81
    %p83 = scmp.eq.s32.totalorder %s15, 0
    %p84 = por %p82, %p83
    %s85 = ssub.s32 %s9, %s16
    %p86 = scmp.eq.s32.totalorder %s85, 0
    %s88 = sadd.s32 %s87, 1
    %s89 = scalar_select %p86, %s87, %s88
    %p92 = pneg %p86
    %p93 = scmp.eq.s32.totalorder %s9, 1
    %p94 = por %p92, %p93
    %p95 = scmp.ne.s32.totalorder %s87, %s90
    %p96 = scmp.eq.s32.totalorder %s9, 0
    %p97 = por %p95, %p96
    %p98 = scmp.ne.s32.totalorder %s87, %s90
    %p99 = scmp.eq.s32.totalorder %s14, 1
    %p100 = por %p98, %p99
    %p101 = scmp.ne.s32.totalorder %s90, %s91
    %p102 = scmp.eq.s32.totalorder %s14, 0
    %p103 = por %p101, %p102
    %p104 = scmp.ne.s32.totalorder %s90, %s91
    %p105 = scmp.eq.s32.totalorder %s15, 1
    %p106 = por %p104, %p105
    %p108 = scmp.ne.s32.totalorder %s91, %s107
    %p109 = scmp.eq.s32.totalorder %s15, 0
    %p110 = por %p108, %p109
    %p111 = scmp.le.s32.totalorder 1, %s9
    %p112 = scmp.lt.s32.totalorder %s9, 3
    %p113 = pnand %p111, %p112
    %p114 = pneg %p113
    // Predicated region
    $region9: #{netx_forward.5} parent=5 // pred_check
      _
    $region10: #{netx_forward.5} parent=5 // pred_check_branch
      %116 = sbr.rel (%p113) target = $region12
    $region11: #{netx_forward.5} parent=5 // pred_region
      %s117 = ssub.s32 %s9, 1
      // Predicated region
      $region13: #{netx_forward.5} parent=11 // pred_check
        %p118 = pneg %p56
      $region14: #{netx_forward.5} parent=11 // pred_check_branch
        %120 = sbr.rel (%p118) target = $region16
      $region15: #{netx_forward.5} parent=11 // pred_region
        _
      $region16: #{netx_forward.5} parent=11 // pred_fallthru
        _
      // Predicated region
      $region17: #{netx_forward.5} parent=11 // pred_check
        %p121 = pneg %p77
      $region18: #{netx_forward.5} parent=11 // pred_check_branch
        %123 = sbr.rel (%p121) target = $region20
      $region19: #{netx_forward.5} parent=11 // pred_region
        _
      $region20: #{netx_forward.5} parent=11 // pred_fallthru
        _
    $region12: #{netx_forward.5} parent=5 // pred_fallthru
      _
    %p124 = scmp.lt.s32.totalorder %s9, 2
    // Predicated region
    $region21: #{netx_forward.5} parent=5 // pred_check
      %p125 = pneg %p124
    $region22: #{netx_forward.5} parent=5 // pred_check_branch
      %127 = sbr.rel (%p125) target = $region24
    $region23: #{netx_forward.5} parent=5 // pred_region
      // Predicated region
      $region25: #{netx_forward.5} parent=23 // pred_check
        %p128 = pneg %p29
      $region26: #{netx_forward.5} parent=23 // pred_check_branch
        %130 = sbr.rel (%p128) target = $region28
      $region27: #{netx_forward.5} parent=23 // pred_region
        %s131 = smul.u32 2, %s9
        %p132 = scmp.lt.s32.totalorder %s131, 3
        %s133 = scalar_select %p132, %s131, 3
        %s134 = smul.addr %s133, 25
        %s135 = smul.addr %s134, 4
        %s136 = scalar_lea.vmem %s0, %s135
        %s137 = smul.u32 2, %s9
      $region28: #{netx_forward.5} parent=23 // pred_fallthru
        _
    $region24: #{netx_forward.5} parent=5 // pred_fallthru
      _
    %p138 = scmp.le.s32.totalorder 1, %s9
    %p139 = scmp.lt.s32.totalorder %s9, 3
    %p140 = pnand %p138, %p139
    %p141 = pneg %p140
    // Predicated region
    $region29: #{netx_forward.5} parent=5 // pred_check
      _
    $region30: #{netx_forward.5} parent=5 // pred_check_branch
      %143 = sbr.rel (%p140) target = $region32
    $region31: #{netx_forward.5} parent=5 // pred_region
      %s144 = ssub.s32 %s9, 1
      %s145 = smul.u32 2, %s14
      %p146 = scmp.lt.s32.totalorder %s145, 3
      %s147 = scalar_select %p146, %s145, 3
      %s148 = smul.addr %s147, 25
      %s149 = smul.addr %s148, 4
      %s150 = scalar_lea.vmem %s0, %s149
      %p151 = pneg %p35
      %p152 = pneg %p32
      %p153 = pneg %p56
      %p154 = pneg %p53
      %p155 = pneg %p77
      %p156 = pneg %p74
      %p157 = pneg %p103
      %p158 = pneg %p100
      %s159 = smul.u32 2, %s14
      %p160 = scmp.lt.s32.totalorder %s159, 3
      %s161 = scalar_select %p160, %s159, 3
      %s162 = smul.addr %s161, 4
      %s163 = scalar_lea.vmem %s3, %s162
      %s164 = smul.u32 2, %s14
      %p165 = scmp.lt.s32.totalorder %s164, 3
      %s166 = scalar_select %p165, %s164, 3
      %s167 = smul.addr %s166, 25
      %s168 = smul.addr %s167, 4
      %s169 = scalar_lea.vmem %s0, %s168
      %s170 = smul.u32 2, %s14
      %s171 = smul.u32 2, %s14
      %p172 = scmp.lt.s32.totalorder %s171, 3
      %s173 = scalar_select %p172, %s171, 3
      %s174 = smul.addr %s173, 4
      %s175 = scalar_lea.vmem %s3, %s174
      %s176 = smul.u32 2, %s14
      %v178 = vld [vmem:[%s169] sm:$0xff]
      %v179 = vld [vmem:[%s169 + $0x8] sm:$0xff]
      %v180 = vld [vmem:[%s169 + $0x10] sm:$0xff]
      %v181 = vld [vmem:[%s169 + $0x18] sm:$0xff]
      %v182 = vld [vmem:[%s169 + $0x20] sm:$0xff]
      %v183 = vld [vmem:[%s169 + $0x28] sm:$0xff]
      %v184 = vld [vmem:[%s169 + $0x30] sm:$0xff]
      %v185 = vld [vmem:[%s169 + $0x38] sm:$0xff]
      %v186 = vld [vmem:[%s169 + $0x40] sm:$0xff]
      %v187 = vld [vmem:[%s169 + $0x48] sm:$0xff]
      %v188 = vld [vmem:[%s169 + $0x50] sm:$0xff]
      %v189 = vld [vmem:[%s169 + $0x58] sm:$0xff]
      %v190 = vld [vmem:[%s169 + $0x60] sm:$0xf]
      %v191 = vld [vmem:[%s169 + $0x64] sm:$0xff]
      %v192 = vld [vmem:[%s169 + $0x6c] sm:$0xff]
      %v193 = vld [vmem:[%s169 + $0x74] sm:$0xff]
      %v194 = vld [vmem:[%s169 + $0x7c] sm:$0xff]
      %v195 = vld [vmem:[%s169 + $0x84] sm:$0xff]
      %v196 = vld [vmem:[%s169 + $0x8c] sm:$0xff]
      %v197 = vld [vmem:[%s169 + $0x94] sm:$0xff]
      %v198 = vld [vmem:[%s169 + $0x9c] sm:$0xff]
      %v199 = vld [vmem:[%s169 + $0xa4] sm:$0xff]
      %v200 = vld [vmem:[%s169 + $0xac] sm:$0xff]
      %v201 = vld [vmem:[%s169 + $0xb4] sm:$0xff]
      %v202 = vld [vmem:[%s169 + $0xbc] sm:$0xff]
      %v203 = vld [vmem:[%s169 + $0xc4] sm:$0xf]
      %v204 = vld [vmem:[%s1] sm:$0xf]
      %v205 = vld [vmem:[%s1 + $0x4] sm:$0xf]
      %v206 = vld [vmem:[%s1 + $0x8] sm:$0xf]
      %v207 = vld [vmem:[%s1 + $0xc] sm:$0xf]
      %v208 = vld [vmem:[%s1 + $0x10] sm:$0xf]
      %v209 = vld [vmem:[%s1 + $0x14] sm:$0xf]
      %v210 = vld [vmem:[%s1 + $0x18] sm:$0xf]
      %v211 = vld [vmem:[%s1 + $0x1c] sm:$0xf]
      %v212 = vld [vmem:[%s1 + $0x20] sm:$0xf]
      %v213 = vld [vmem:[%s1 + $0x24] sm:$0xf]
      %v214 = vld [vmem:[%s1 + $0x28] sm:$0xf]
      %v215 = vld [vmem:[%s1 + $0x2c] sm:$0xf]
      %v216 = vld [vmem:[%s1 + $0x30] sm:$0xf]
      %v217 = vld [vmem:[%s1 + $0x34] sm:$0xf]
      %v218 = vld [vmem:[%s1 + $0x38] sm:$0xf]
      %v219 = vld [vmem:[%s1 + $0x3c] sm:$0xf]
      %v220 = vld [vmem:[%s1 + $0x40] sm:$0xf]
      %v221 = vld [vmem:[%s1 + $0x44] sm:$0xf]
      %v222 = vld [vmem:[%s1 + $0x48] sm:$0xf]
      %v223 = vld [vmem:[%s1 + $0x4c] sm:$0xf]
      %v224 = vld [vmem:[%s1 + $0x50] sm:$0xf]
      %v225 = vld [vmem:[%s1 + $0x54] sm:$0xf]
      %v226 = vld [vmem:[%s1 + $0x58] sm:$0xf]
      %v227 = vld [vmem:[%s1 + $0x5c] sm:$0xf]
      %v228 = vld [vmem:[%s1 + $0x60] sm:$0xf]
      %v229 = vld [vmem:[%s1 + $0x64] sm:$0xf]
      %v230 = vld [vmem:[%s1 + $0x68] sm:$0xf]
      %v231 = vld [vmem:[%s1 + $0x6c] sm:$0xf]
      %v232 = vld [vmem:[%s1 + $0x70] sm:$0xf]
      %v233 = vld [vmem:[%s1 + $0x74] sm:$0xf]
      %v234 = vld [vmem:[%s1 + $0x78] sm:$0xf]
      %v235 = vld [vmem:[%s1 + $0x7c] sm:$0xf]
      %v236 = vld [vmem:[%s1 + $0x80] sm:$0xf]
      %v237 = vld [vmem:[%s1 + $0x84] sm:$0xf]
      %v238 = vld [vmem:[%s1 + $0x88] sm:$0xf]
      %v239 = vld [vmem:[%s1 + $0x8c] sm:$0xf]
      %v240 = vld [vmem:[%s1 + $0x90] sm:$0xf]
      %v241 = vld [vmem:[%s1 + $0x94] sm:$0xf]
      %v242 = vld [vmem:[%s1 + $0x98] sm:$0xf]
      %v243 = vld [vmem:[%s1 + $0x9c] sm:$0xf]
      %v244 = vld [vmem:[%s1 + $0xa0] sm:$0xf]
      %v245 = vld [vmem:[%s1 + $0xa4] sm:$0xf]
      %v246 = vld [vmem:[%s1 + $0xa8] sm:$0xf]
      %v247 = vld [vmem:[%s1 + $0xac] sm:$0xf]
      %v248 = vld [vmem:[%s1 + $0xb0] sm:$0xf]
      %v249 = vld [vmem:[%s1 + $0xb4] sm:$0xf]
      %v250 = vld [vmem:[%s1 + $0xb8] sm:$0xf]
      %v251 = vld [vmem:[%s1 + $0xbc] sm:$0xf]
      %v252 = vld [vmem:[%s1 + $0xc0] sm:$0xf]
      %v253 = vld [vmem:[%s1 + $0xc4] sm:$0xf]
      %v254 = vld [vmem:[%s1 + $0xc8] sm:$0xf]
      %v255 = vld [vmem:[%s1 + $0xcc] sm:$0xf]
      %v256 = vld [vmem:[%s1 + $0xd0] sm:$0xf]
      %v257 = vld [vmem:[%s1 + $0xd4] sm:$0xf]
      %v258 = vld [vmem:[%s1 + $0xd8] sm:$0xf]
      %v259 = vld [vmem:[%s1 + $0xdc] sm:$0xf]
      %v260 = vld [vmem:[%s1 + $0xe0] sm:$0xf]
      %v261 = vld [vmem:[%s1 + $0xe4] sm:$0xf]
      %v262 = vld [vmem:[%s1 + $0xe8] sm:$0xf]
      %v263 = vld [vmem:[%s1 + $0xec] sm:$0xf]
      %v264 = vld [vmem:[%s1 + $0xf0] sm:$0xf]
      %v265 = vld [vmem:[%s1 + $0xf4] sm:$0xf]
      %v266 = vld [vmem:[%s1 + $0xf8] sm:$0xf]
      %v267 = vld [vmem:[%s1 + $0xfc] sm:$0xf]
      %v268 = vld [vmem:[%s1 + $0x100] sm:$0xf]
      %v269 = vld [vmem:[%s1 + $0x104] sm:$0xf]
      %v270 = vld [vmem:[%s1 + $0x108] sm:$0xf]
      %v271 = vld [vmem:[%s1 + $0x10c] sm:$0xf]
      %v272 = vld [vmem:[%s1 + $0x110] sm:$0xf]
      %v273 = vld [vmem:[%s1 + $0x114] sm:$0xf]
      %v274 = vld [vmem:[%s1 + $0x118] sm:$0xf]
      %v275 = vld [vmem:[%s1 + $0x11c] sm:$0xf]
      %v276 = vld [vmem:[%s1 + $0x120] sm:$0xf]
      %v277 = vld [vmem:[%s1 + $0x124] sm:$0xf]
      %v278 = vld [vmem:[%s1 + $0x128] sm:$0xf]
      %v279 = vld [vmem:[%s1 + $0x12c] sm:$0xf]
      %v280 = vld [vmem:[%s1 + $0x130] sm:$0xf]
      %v281 = vld [vmem:[%s1 + $0x134] sm:$0xf]
      %v282 = vld [vmem:[%s1 + $0x138] sm:$0xf]
      %v283 = vld [vmem:[%s1 + $0x13c] sm:$0xf]
      %v284 = vld [vmem:[%s1 + $0x140] sm:$0xf]
      %v285 = vld [vmem:[%s1 + $0x144] sm:$0xf]
      %v286 = vld [vmem:[%s1 + $0x148] sm:$0xf]
      %v287 = vld [vmem:[%s1 + $0x14c] sm:$0xf]
      %v288 = vld [vmem:[%s1 + $0x150] sm:$0xf]
      %v289 = vld [vmem:[%s1 + $0x154] sm:$0xf]
      %v290 = vld [vmem:[%s1 + $0x158] sm:$0xf]
      %v291 = vld [vmem:[%s1 + $0x15c] sm:$0xf]
      %v292 = vld [vmem:[%s1 + $0x160] sm:$0xf]
      %v293 = vld [vmem:[%s1 + $0x164] sm:$0xf]
      %v294 = vld [vmem:[%s1 + $0x168] sm:$0xf]
      %v295 = vld [vmem:[%s1 + $0x16c] sm:$0xf]
      %v296 = vld [vmem:[%s1 + $0x170] sm:$0xf]
      %v297 = vld [vmem:[%s1 + $0x174] sm:$0xf]
      %v298 = vld [vmem:[%s1 + $0x178] sm:$0xf]
      %v299 = vld [vmem:[%s1 + $0x17c] sm:$0xf]
      %v300 = vld [vmem:[%s1 + $0x180] sm:$0xf]
      %v301 = vld [vmem:[%s1 + $0x184] sm:$0xf]
      %v302 = vld [vmem:[%s1 + $0x188] sm:$0xf]
      %v303 = vld [vmem:[%s1 + $0x18c] sm:$0xf]
      %v304 = vld [vmem:[%s1 + $0x190] sm:$0xf]
      %v305 = vld [vmem:[%s1 + $0x194] sm:$0xf]
      %v306 = vld [vmem:[%s1 + $0x198] sm:$0xf]
      %v307 = vld [vmem:[%s1 + $0x19c] sm:$0xf]
      %v308 = vld [vmem:[%s1 + $0x1a0] sm:$0xf]
      %v309 = vld [vmem:[%s1 + $0x1a4] sm:$0xf]
      %v310 = vld [vmem:[%s1 + $0x1a8] sm:$0xf]
      %v311 = vld [vmem:[%s1 + $0x1ac] sm:$0xf]
      %v312 = vld [vmem:[%s1 + $0x1b0] sm:$0xf]
      %v313 = vld [vmem:[%s1 + $0x1b4] sm:$0xf]
      %v314 = vld [vmem:[%s1 + $0x1b8] sm:$0xf]
      %v315 = vld [vmem:[%s1 + $0x1bc] sm:$0xf]
      %v316 = vld [vmem:[%s1 + $0x1c0] sm:$0xf]
      %v317 = vld [vmem:[%s1 + $0x1c4] sm:$0xf]
      %v318 = vld [vmem:[%s1 + $0x1c8] sm:$0xf]
      %v319 = vld [vmem:[%s1 + $0x1cc] sm:$0xf]
      %v320 = vld [vmem:[%s1 + $0x1d0] sm:$0xf]
      %v321 = vld [vmem:[%s1 + $0x1d4] sm:$0xf]
      %v322 = vld [vmem:[%s1 + $0x1d8] sm:$0xf]
      %v323 = vld [vmem:[%s1 + $0x1dc] sm:$0xf]
      %v324 = vld [vmem:[%s1 + $0x1e0] sm:$0xf]
      %v325 = vld [vmem:[%s1 + $0x1e4] sm:$0xf]
      %v326 = vld [vmem:[%s1 + $0x1e8] sm:$0xf]
      %v327 = vld [vmem:[%s1 + $0x1ec] sm:$0xf]
      %v328 = vld [vmem:[%s1 + $0x1f0] sm:$0xf]
      %v329 = vld [vmem:[%s1 + $0x1f4] sm:$0xf]
      %v330 = vld [vmem:[%s1 + $0x1f8] sm:$0xf]
      %v331 = vld [vmem:[%s1 + $0x1fc] sm:$0xf]
      %v332 = vld [vmem:[%s1 + $0x200] sm:$0xf]
      %v333 = vld [vmem:[%s1 + $0x204] sm:$0xf]
      %v334 = vld [vmem:[%s1 + $0x208] sm:$0xf]
      %v335 = vld [vmem:[%s1 + $0x20c] sm:$0xf]
      %v336 = vld [vmem:[%s1 + $0x210] sm:$0xf]
      %v337 = vld [vmem:[%s1 + $0x214] sm:$0xf]
      %v338 = vld [vmem:[%s1 + $0x218] sm:$0xf]
      %v339 = vld [vmem:[%s1 + $0x21c] sm:$0xf]
      %v340 = vld [vmem:[%s1 + $0x220] sm:$0xf]
      %v341 = vld [vmem:[%s1 + $0x224] sm:$0xf]
      %v342 = vld [vmem:[%s1 + $0x228] sm:$0xf]
      %v343 = vld [vmem:[%s1 + $0x22c] sm:$0xf]
      %v344 = vld [vmem:[%s1 + $0x230] sm:$0xf]
      %v345 = vld [vmem:[%s1 + $0x234] sm:$0xf]
      %v346 = vld [vmem:[%s1 + $0x238] sm:$0xf]
      %v347 = vld [vmem:[%s1 + $0x23c] sm:$0xf]
      %v348 = vld [vmem:[%s1 + $0x240] sm:$0xf]
      %v349 = vld [vmem:[%s1 + $0x244] sm:$0xf]
      %v350 = vld [vmem:[%s1 + $0x248] sm:$0xf]
      %v351 = vld [vmem:[%s1 + $0x24c] sm:$0xf]
      %v352 = vld [vmem:[%s1 + $0x250] sm:$0xf]
      %v353 = vld [vmem:[%s1 + $0x254] sm:$0xf]
      %v354 = vld [vmem:[%s1 + $0x258] sm:$0xf]
      %v355 = vld [vmem:[%s1 + $0x25c] sm:$0xf]
      %v356 = vld [vmem:[%s1 + $0x260] sm:$0xf]
      %v357 = vld [vmem:[%s1 + $0x264] sm:$0xf]
      %v358 = vld [vmem:[%s1 + $0x268] sm:$0xf]
      %v359 = vld [vmem:[%s1 + $0x26c] sm:$0xf]
      %v360 = vld [vmem:[%s1 + $0x270] sm:$0xf]
      %v361 = vld [vmem:[%s1 + $0x274] sm:$0xf]
      %v362 = vld [vmem:[%s1 + $0x278] sm:$0xf]
      %v363 = vld [vmem:[%s1 + $0x27c] sm:$0xf]
      %v364 = vld [vmem:[%s1 + $0x280] sm:$0xf]
      %v365 = vld [vmem:[%s1 + $0x284] sm:$0xf]
      %v366 = vld [vmem:[%s1 + $0x288] sm:$0xf]
      %v367 = vld [vmem:[%s1 + $0x28c] sm:$0xf]
      %v368 = vld [vmem:[%s1 + $0x290] sm:$0xf]
      %v369 = vld [vmem:[%s1 + $0x294] sm:$0xf]
      %v370 = vld [vmem:[%s1 + $0x298] sm:$0xf]
      %v371 = vld [vmem:[%s1 + $0x29c] sm:$0xf]
      %v372 = vld [vmem:[%s1 + $0x2a0] sm:$0xf]
      %v373 = vld [vmem:[%s1 + $0x2a4] sm:$0xf]
      %v374 = vld [vmem:[%s1 + $0x2a8] sm:$0xf]
      %v375 = vld [vmem:[%s1 + $0x2ac] sm:$0xf]
      %v376 = vld [vmem:[%s1 + $0x2b0] sm:$0xf]
      %v377 = vld [vmem:[%s1 + $0x2b4] sm:$0xf]
      %v378 = vld [vmem:[%s1 + $0x2b8] sm:$0xf]
      %v379 = vld [vmem:[%s1 + $0x2bc] sm:$0xf]
      %v380 = vld [vmem:[%s1 + $0x2c0] sm:$0xf]
      %v381 = vld [vmem:[%s1 + $0x2c4] sm:$0xf]
      %v382 = vld [vmem:[%s1 + $0x2c8] sm:$0xf]
      %v383 = vld [vmem:[%s1 + $0x2cc] sm:$0xf]
      %v384 = vld [vmem:[%s1 + $0x2d0] sm:$0xf]
      %v385 = vld [vmem:[%s1 + $0x2d4] sm:$0xf]
      %v386 = vld [vmem:[%s1 + $0x2d8] sm:$0xf]
      %v387 = vld [vmem:[%s1 + $0x2dc] sm:$0xf]
      %v388 = vld [vmem:[%s1 + $0x2e0] sm:$0xf]
      %v389 = vld [vmem:[%s1 + $0x2e4] sm:$0xf]
      %v390 = vld [vmem:[%s1 + $0x2e8] sm:$0xf]
      %v391 = vld [vmem:[%s1 + $0x2ec] sm:$0xf]
      %v392 = vld [vmem:[%s1 + $0x2f0] sm:$0xf]
      %v393 = vld [vmem:[%s1 + $0x2f4] sm:$0xf]
      %v394 = vld [vmem:[%s1 + $0x2f8] sm:$0xf]
      %v395 = vld [vmem:[%s1 + $0x2fc] sm:$0xf]
      %v396 = vld [vmem:[%s1 + $0x300] sm:$0xf]
      %v397 = vld [vmem:[%s1 + $0x304] sm:$0xf]
      %v398 = vld [vmem:[%s1 + $0x308] sm:$0xf]
      %v399 = vld [vmem:[%s1 + $0x30c] sm:$0xf]
      %v400 = vld [vmem:[%s1 + $0x310] sm:$0xf]
      %v401 = vld [vmem:[%s1 + $0x314] sm:$0xf]
      %v402 = vld [vmem:[%s1 + $0x318] sm:$0xf]
      %v403 = vld [vmem:[%s1 + $0x31c] sm:$0xf]
      %v404 = vld [vmem:[%s1 + $0x320] sm:$0xf]
      %v405 = vld [vmem:[%s1 + $0x324] sm:$0xf]
      %v406 = vld [vmem:[%s1 + $0x328] sm:$0xf]
      %v407 = vld [vmem:[%s1 + $0x32c] sm:$0xf]
      %v408 = vld [vmem:[%s1 + $0x330] sm:$0xf]
      %v409 = vld [vmem:[%s1 + $0x334] sm:$0xf]
      %v410 = vld [vmem:[%s1 + $0x338] sm:$0xf]
      %v411 = vld [vmem:[%s1 + $0x33c] sm:$0xf]
      %v412 = vld [vmem:[%s1 + $0x340] sm:$0xf]
      %v413 = vld [vmem:[%s1 + $0x344] sm:$0xf]
      %v414 = vld [vmem:[%s1 + $0x348] sm:$0xf]
      %v415 = vld [vmem:[%s1 + $0x34c] sm:$0xf]
      %v416 = vld [vmem:[%s1 + $0x350] sm:$0xf]
      %v417 = vld [vmem:[%s1 + $0x354] sm:$0xf]
      %v418 = vld [vmem:[%s1 + $0x358] sm:$0xf]
      %v419 = vld [vmem:[%s1 + $0x35c] sm:$0xf]
      %v420 = vld [vmem:[%s1 + $0x360] sm:$0xf]
      %v421 = vld [vmem:[%s1 + $0x364] sm:$0xf]
      %v422 = vld [vmem:[%s1 + $0x368] sm:$0xf]
      %v423 = vld [vmem:[%s1 + $0x36c] sm:$0xf]
      %v424 = vld [vmem:[%s1 + $0x370] sm:$0xf]
      %v425 = vld [vmem:[%s1 + $0x374] sm:$0xf]
      %v426 = vld [vmem:[%s1 + $0x378] sm:$0xf]
      %v427 = vld [vmem:[%s1 + $0x37c] sm:$0xf]
      %v428 = vld [vmem:[%s1 + $0x380] sm:$0xf]
      %v429 = vld [vmem:[%s1 + $0x384] sm:$0xf]
      %v430 = vld [vmem:[%s1 + $0x388] sm:$0xf]
      %v431 = vld [vmem:[%s1 + $0x38c] sm:$0xf]
      %v432 = vld [vmem:[%s1 + $0x390] sm:$0xf]
      %v433 = vld [vmem:[%s1 + $0x394] sm:$0xf]
      %v434 = vld [vmem:[%s1 + $0x398] sm:$0xf]
      %v435 = vld [vmem:[%s1 + $0x39c] sm:$0xf]
      %v436 = vld [vmem:[%s1 + $0x3a0] sm:$0xf]
      %v437 = vld [vmem:[%s1 + $0x3a4] sm:$0xf]
      %v438 = vld [vmem:[%s1 + $0x3a8] sm:$0xf]
      %v439 = vld [vmem:[%s1 + $0x3ac] sm:$0xf]
      %v440 = vld [vmem:[%s1 + $0x3b0] sm:$0xf]
      %v441 = vld [vmem:[%s1 + $0x3b4] sm:$0xf]
      %v442 = vld [vmem:[%s1 + $0x3b8] sm:$0xf]
      %v443 = vld [vmem:[%s1 + $0x3bc] sm:$0xf]
      %v444 = vld [vmem:[%s1 + $0x3c0] sm:$0xf]
      %v445 = vld [vmem:[%s1 + $0x3c4] sm:$0xf]
      %v446 = vld [vmem:[%s1 + $0x3c8] sm:$0xf]
      %v447 = vld [vmem:[%s1 + $0x3cc] sm:$0xf]
      %v448 = vld [vmem:[%s1 + $0x3d0] sm:$0xf]
      %v449 = vld [vmem:[%s1 + $0x3d4] sm:$0xf]
      %v450 = vld [vmem:[%s1 + $0x3d8] sm:$0xf]
      %v451 = vld [vmem:[%s1 + $0x3dc] sm:$0xf]
      %v452 = vld [vmem:[%s1 + $0x3e0] sm:$0xf]
      %v453 = vld [vmem:[%s1 + $0x3e4] sm:$0xf]
      %v454 = vld [vmem:[%s1 + $0x3e8] sm:$0xf]
      %v455 = vld [vmem:[%s1 + $0x3ec] sm:$0xf]
      %v456 = vld [vmem:[%s1 + $0x3f0] sm:$0xf]
      %v457 = vld [vmem:[%s1 + $0x3f4] sm:$0xf]
      %v458 = vld [vmem:[%s1 + $0x3f8] sm:$0xf]
      %v459 = vld [vmem:[%s1 + $0x3fc] sm:$0xf]
      %v460 = vld [vmem:[%s1 + $0x400] sm:$0xf]
      %v461 = vld [vmem:[%s1 + $0x404] sm:$0xf]
      %v462 = vld [vmem:[%s1 + $0x408] sm:$0xf]
      %v463 = vld [vmem:[%s1 + $0x40c] sm:$0xf]
      %v464 = vld [vmem:[%s1 + $0x410] sm:$0xf]
      %v465 = vld [vmem:[%s1 + $0x414] sm:$0xf]
      %v466 = vld [vmem:[%s1 + $0x418] sm:$0xf]
      %v467 = vld [vmem:[%s1 + $0x41c] sm:$0xf]
      %v468 = vld [vmem:[%s1 + $0x420] sm:$0xf]
      %v469 = vld [vmem:[%s1 + $0x424] sm:$0xf]
      %v470 = vld [vmem:[%s1 + $0x428] sm:$0xf]
      %v471 = vld [vmem:[%s1 + $0x42c] sm:$0xf]
      %v472 = vld [vmem:[%s1 + $0x430] sm:$0xf]
      %v473 = vld [vmem:[%s1 + $0x434] sm:$0xf]
      %v474 = vld [vmem:[%s1 + $0x438] sm:$0xf]
      %v475 = vld [vmem:[%s1 + $0x43c] sm:$0xf]
      %v476 = vld [vmem:[%s1 + $0x440] sm:$0xf]
      %v477 = vld [vmem:[%s1 + $0x444] sm:$0xf]
      %v478 = vld [vmem:[%s1 + $0x448] sm:$0xf]
      %v479 = vld [vmem:[%s1 + $0x44c] sm:$0xf]
      %v480 = vld [vmem:[%s1 + $0x450] sm:$0xf]
      %v481 = vld [vmem:[%s1 + $0x454] sm:$0xf]
      %v482 = vld [vmem:[%s1 + $0x458] sm:$0xf]
      %v483 = vld [vmem:[%s1 + $0x45c] sm:$0xf]
      %v484 = vld [vmem:[%s1 + $0x460] sm:$0xf]
      %v485 = vld [vmem:[%s1 + $0x464] sm:$0xf]
      %v486 = vld [vmem:[%s1 + $0x468] sm:$0xf]
      %v487 = vld [vmem:[%s1 + $0x46c] sm:$0xf]
      %v488 = vld [vmem:[%s1 + $0x470] sm:$0xf]
      %v489 = vld [vmem:[%s1 + $0x474] sm:$0xf]
      %v490 = vld [vmem:[%s1 + $0x478] sm:$0xf]
      %v491 = vld [vmem:[%s1 + $0x47c] sm:$0xf]
      %v492 = vld [vmem:[%s1 + $0x480] sm:$0xf]
      %v493 = vld [vmem:[%s1 + $0x484] sm:$0xf]
      %v494 = vld [vmem:[%s1 + $0x488] sm:$0xf]
      %v495 = vld [vmem:[%s1 + $0x48c] sm:$0xf]
      %v496 = vld [vmem:[%s1 + $0x490] sm:$0xf]
      %v497 = vld [vmem:[%s1 + $0x494] sm:$0xf]
      %v498 = vld [vmem:[%s1 + $0x498] sm:$0xf]
      %v499 = vld [vmem:[%s1 + $0x49c] sm:$0xf]
      %v500 = vld [vmem:[%s1 + $0x4a0] sm:$0xf]
      %v501 = vld [vmem:[%s1 + $0x4a4] sm:$0xf]
      %v502 = vld [vmem:[%s1 + $0x4a8] sm:$0xf]
      %v503 = vld [vmem:[%s1 + $0x4ac] sm:$0xf]
      %v504 = vld [vmem:[%s1 + $0x4b0] sm:$0xf]
      %v505 = vld [vmem:[%s1 + $0x4b4] sm:$0xf]
      %v506 = vld [vmem:[%s1 + $0x4b8] sm:$0xf]
      %v507 = vld [vmem:[%s1 + $0x4bc] sm:$0xf]
      %v508 = vld [vmem:[%s1 + $0x4c0] sm:$0xf]
      %v509 = vld [vmem:[%s1 + $0x4c4] sm:$0xf]
      %v510 = vld [vmem:[%s1 + $0x4c8] sm:$0xf]
      %v511 = vld [vmem:[%s1 + $0x4cc] sm:$0xf]
      %v512 = vld [vmem:[%s1 + $0x4d0] sm:$0xf]
      %v513 = vld [vmem:[%s1 + $0x4d4] sm:$0xf]
      %v514 = vld [vmem:[%s1 + $0x4d8] sm:$0xf]
      %v515 = vld [vmem:[%s1 + $0x4dc] sm:$0xf]
      %v516 = vld [vmem:[%s1 + $0x4e0] sm:$0xf]
      %v517 = vld [vmem:[%s1 + $0x4e4] sm:$0xf]
      %v518 = vld [vmem:[%s1 + $0x4e8] sm:$0xf]
      %v519 = vld [vmem:[%s1 + $0x4ec] sm:$0xf]
      %v520 = vld [vmem:[%s1 + $0x4f0] sm:$0xf]
      %v521 = vld [vmem:[%s1 + $0x4f4] sm:$0xf]
      %v522 = vld [vmem:[%s1 + $0x4f8] sm:$0xf]
      %v523 = vld [vmem:[%s1 + $0x4fc] sm:$0xf]
      %v524 = vld [vmem:[%s1 + $0x500] sm:$0xf]
      %v525 = vld [vmem:[%s1 + $0x504] sm:$0xf]
      %v526 = vld [vmem:[%s1 + $0x508] sm:$0xf]
      %v527 = vld [vmem:[%s1 + $0x50c] sm:$0xf]
      %v528 = vld [vmem:[%s1 + $0x510] sm:$0xf]
      %v529 = vld [vmem:[%s1 + $0x514] sm:$0xf]
      %v530 = vld [vmem:[%s1 + $0x518] sm:$0xf]
      %v531 = vld [vmem:[%s1 + $0x51c] sm:$0xf]
      %v532 = vld [vmem:[%s1 + $0x520] sm:$0xf]
      %v533 = vld [vmem:[%s1 + $0x524] sm:$0xf]
      %v534 = vld [vmem:[%s1 + $0x528] sm:$0xf]
      %v535 = vld [vmem:[%s1 + $0x52c] sm:$0xf]
      %v536 = vld [vmem:[%s1 + $0x530] sm:$0xf]
      %v537 = vld [vmem:[%s1 + $0x534] sm:$0xf]
      %v538 = vld [vmem:[%s1 + $0x538] sm:$0xf]
      %v539 = vld [vmem:[%s1 + $0x53c] sm:$0xf]
      %v540 = vld [vmem:[%s1 + $0x540] sm:$0xf]
      %v541 = vld [vmem:[%s1 + $0x544] sm:$0xf]
      %v542 = vld [vmem:[%s1 + $0x548] sm:$0xf]
      %v543 = vld [vmem:[%s1 + $0x54c] sm:$0xf]
      %v544 = vld [vmem:[%s1 + $0x550] sm:$0xf]
      %v545 = vld [vmem:[%s1 + $0x554] sm:$0xf]
      %v546 = vld [vmem:[%s1 + $0x558] sm:$0xf]
      %v547 = vld [vmem:[%s1 + $0x55c] sm:$0xf]
      %v548 = vld [vmem:[%s1 + $0x560] sm:$0xf]
      %v549 = vld [vmem:[%s1 + $0x564] sm:$0xf]
      %v550 = vld [vmem:[%s1 + $0x568] sm:$0xf]
      %v551 = vld [vmem:[%s1 + $0x56c] sm:$0xf]
      %v552 = vld [vmem:[%s1 + $0x570] sm:$0xf]
      %v553 = vld [vmem:[%s1 + $0x574] sm:$0xf]
      %v554 = vld [vmem:[%s1 + $0x578] sm:$0xf]
      %v555 = vld [vmem:[%s1 + $0x57c] sm:$0xf]
      %v556 = vld [vmem:[%s1 + $0x580] sm:$0xf]
      %v557 = vld [vmem:[%s1 + $0x584] sm:$0xf]
      %v558 = vld [vmem:[%s1 + $0x588] sm:$0xf]
      %v559 = vld [vmem:[%s1 + $0x58c] sm:$0xf]
      %v560 = vld [vmem:[%s1 + $0x590] sm:$0xf]
      %v561 = vld [vmem:[%s1 + $0x594] sm:$0xf]
      %v562 = vld [vmem:[%s1 + $0x598] sm:$0xf]
      %v563 = vld [vmem:[%s1 + $0x59c] sm:$0xf]
      %v564 = vld [vmem:[%s1 + $0x5a0] sm:$0xf]
      %v565 = vld [vmem:[%s1 + $0x5a4] sm:$0xf]
      %v566 = vld [vmem:[%s1 + $0x5a8] sm:$0xf]
      %v567 = vld [vmem:[%s1 + $0x5ac] sm:$0xf]
      %v568 = vld [vmem:[%s1 + $0x5b0] sm:$0xf]
      %v569 = vld [vmem:[%s1 + $0x5b4] sm:$0xf]
      %v570 = vld [vmem:[%s1 + $0x5b8] sm:$0xf]
      %v571 = vld [vmem:[%s1 + $0x5bc] sm:$0xf]
      %v572 = vld [vmem:[%s1 + $0x5c0] sm:$0xf]
      %v573 = vld [vmem:[%s1 + $0x5c4] sm:$0xf]
      %v574 = vld [vmem:[%s1 + $0x5c8] sm:$0xf]
      %v575 = vld [vmem:[%s1 + $0x5cc] sm:$0xf]
      %v576 = vld [vmem:[%s1 + $0x5d0] sm:$0xf]
      %v577 = vld [vmem:[%s1 + $0x5d4] sm:$0xf]
      %v578 = vld [vmem:[%s1 + $0x5d8] sm:$0xf]
      %v579 = vld [vmem:[%s1 + $0x5dc] sm:$0xf]
      %v580 = vld [vmem:[%s1 + $0x5e0] sm:$0xf]
      %v581 = vld [vmem:[%s1 + $0x5e4] sm:$0xf]
      %v582 = vld [vmem:[%s1 + $0x5e8] sm:$0xf]
      %v583 = vld [vmem:[%s1 + $0x5ec] sm:$0xf]
      %v584 = vld [vmem:[%s1 + $0x5f0] sm:$0xf]
      %v585 = vld [vmem:[%s1 + $0x5f4] sm:$0xf]
      %v586 = vld [vmem:[%s1 + $0x5f8] sm:$0xf]
      %v587 = vld [vmem:[%s1 + $0x5fc] sm:$0xf]
      %v588 = vld [vmem:[%s1 + $0x600] sm:$0xf]
      %v589 = vld [vmem:[%s1 + $0x604] sm:$0xf]
      %v590 = vld [vmem:[%s1 + $0x608] sm:$0xf]
      %v591 = vld [vmem:[%s1 + $0x60c] sm:$0xf]
      %v592 = vld [vmem:[%s1 + $0x610] sm:$0xf]
      %v593 = vld [vmem:[%s1 + $0x614] sm:$0xf]
      %v594 = vld [vmem:[%s1 + $0x618] sm:$0xf]
      %v595 = vld [vmem:[%s1 + $0x61c] sm:$0xf]
      %v596 = vld [vmem:[%s1 + $0x620] sm:$0xf]
      %v597 = vld [vmem:[%s1 + $0x624] sm:$0xf]
      %v598 = vld [vmem:[%s1 + $0x628] sm:$0xf]
      %v599 = vld [vmem:[%s1 + $0x62c] sm:$0xf]
      %v600 = vld [vmem:[%s1 + $0x630] sm:$0xf]
      %v601 = vld [vmem:[%s1 + $0x634] sm:$0xf]
      %v602 = vld [vmem:[%s1 + $0x638] sm:$0xf]
      %v603 = vld [vmem:[%s1 + $0x63c] sm:$0xf]
      %v604 = vld [vmem:[%s2] sm:$0x1]
      %v606 = vlaneseq
      %v607 = vshrl.u32 %v606, 7
      %v608 = vsub.s32 0, %v607
      %v609 = vrot.slane %v604, %v608
      %v637 = vunpack.c.l.b16 %v178
      %v638 = vunpack.c.h.b16 %v178
      %v639 = vunpack.c.l.b16 %v179
      %v640 = vunpack.c.h.b16 %v179
      %v641 = vunpack.c.l.b16 %v180
      %v642 = vunpack.c.h.b16 %v180
      %v643 = vunpack.c.l.b16 %v181
      %v644 = vunpack.c.h.b16 %v181
      %v645 = vunpack.c.l.b16 %v182
      %v646 = vunpack.c.h.b16 %v182
      %v647 = vunpack.c.l.b16 %v183
      %v648 = vunpack.c.h.b16 %v183
      %v649 = vunpack.c.l.b16 %v184
      %v650 = vunpack.c.h.b16 %v184
      %v651 = vunpack.c.l.b16 %v185
      %v652 = vunpack.c.h.b16 %v185
      %v653 = vunpack.c.l.b16 %v186
      %v654 = vunpack.c.h.b16 %v186
      %v655 = vunpack.c.l.b16 %v187
      %v656 = vunpack.c.h.b16 %v187
      %v657 = vunpack.c.l.b16 %v188
      %v658 = vunpack.c.h.b16 %v188
      %v659 = vunpack.c.l.b16 %v189
      %v660 = vunpack.c.h.b16 %v189
      %v661 = vunpack.c.l.b16 %v190
      %v662 = vunpack.c.l.b16 %v191
      %v663 = vunpack.c.h.b16 %v191
      %v664 = vunpack.c.l.b16 %v192
      %v665 = vunpack.c.h.b16 %v192
      %v666 = vunpack.c.l.b16 %v193
      %v667 = vunpack.c.h.b16 %v193
      %v668 = vunpack.c.l.b16 %v194
      %v669 = vunpack.c.h.b16 %v194
      %v670 = vunpack.c.l.b16 %v195
      %v671 = vunpack.c.h.b16 %v195
      %v672 = vunpack.c.l.b16 %v196
      %v673 = vunpack.c.h.b16 %v196
      %v674 = vunpack.c.l.b16 %v197
      %v675 = vunpack.c.h.b16 %v197
      %v676 = vunpack.c.l.b16 %v198
      %v677 = vunpack.c.h.b16 %v198
      %v678 = vunpack.c.l.b16 %v199
      %v679 = vunpack.c.h.b16 %v199
      %v680 = vunpack.c.l.b16 %v200
      %v681 = vunpack.c.h.b16 %v200
      %v682 = vunpack.c.l.b16 %v201
      %v683 = vunpack.c.h.b16 %v201
      %v684 = vunpack.c.l.b16 %v202
      %v685 = vunpack.c.h.b16 %v202
      %v686 = vunpack.c.l.b16 %v203
      %v687 = vpack.c.b16 %v662, %v637
      %v688 = vpack.c.b16 %v663, %v638
      %v689 = vpack.c.b16 %v664, %v639
      %v690 = vpack.c.b16 %v665, %v640
      %v691 = vpack.c.b16 %v666, %v641
      %v692 = vpack.c.b16 %v667, %v642
      %v693 = vpack.c.b16 %v668, %v643
      %v694 = vpack.c.b16 %v669, %v644
      %v695 = vpack.c.b16 %v670, %v645
      %v696 = vpack.c.b16 %v671, %v646
      %v697 = vpack.c.b16 %v672, %v647
      %v698 = vpack.c.b16 %v673, %v648
      %v699 = vpack.c.b16 %v674, %v649
      %v700 = vpack.c.b16 %v675, %v650
      %v701 = vpack.c.b16 %v676, %v651
      %v702 = vpack.c.b16 %v677, %v652
      %v703 = vpack.c.b16 %v678, %v653
      %v704 = vpack.c.b16 %v679, %v654
      %v705 = vpack.c.b16 %v680, %v655
      %v706 = vpack.c.b16 %v681, %v656
      %v707 = vpack.c.b16 %v682, %v657
      %v708 = vpack.c.b16 %v683, %v658
      %v709 = vpack.c.b16 %v684, %v659
      %v710 = vpack.c.b16 %v685, %v660
      %v711 = vpack.c.b16 %v686, %v661
      %v1137 = vunpack.c.l.b16 %v204
      %v1138 = vunpack.c.l.b16 %v205
      %v1139 = vunpack.c.l.b16 %v206
      %v1140 = vunpack.c.l.b16 %v207
      %v1141 = vunpack.c.l.b16 %v208
      %v1142 = vunpack.c.l.b16 %v209
      %v1143 = vunpack.c.l.b16 %v210
      %v1144 = vunpack.c.l.b16 %v211
      %v1145 = vunpack.c.l.b16 %v212
      %v1146 = vunpack.c.l.b16 %v213
      %v1147 = vunpack.c.l.b16 %v214
      %v1148 = vunpack.c.l.b16 %v215
      %v1149 = vunpack.c.l.b16 %v216
      %v1150 = vunpack.c.l.b16 %v217
      %v1151 = vunpack.c.l.b16 %v218
      %v1152 = vunpack.c.l.b16 %v219
      %v1153 = vunpack.c.l.b16 %v220
      %v1154 = vunpack.c.l.b16 %v221
      %v1155 = vunpack.c.l.b16 %v222
      %v1156 = vunpack.c.l.b16 %v223
      %v1157 = vunpack.c.l.b16 %v224
      %v1158 = vunpack.c.l.b16 %v225
      %v1159 = vunpack.c.l.b16 %v226
      %v1160 = vunpack.c.l.b16 %v227
      %v1161 = vunpack.c.l.b16 %v228
      %v1162 = vunpack.c.l.b16 %v229
      %v1163 = vunpack.c.l.b16 %v230
      %v1164 = vunpack.c.l.b16 %v231
      %v1165 = vunpack.c.l.b16 %v232
      %v1166 = vunpack.c.l.b16 %v233
      %v1167 = vunpack.c.l.b16 %v234
      %v1168 = vunpack.c.l.b16 %v235
      %v1169 = vunpack.c.l.b16 %v236
      %v1170 = vunpack.c.l.b16 %v237
      %v1171 = vunpack.c.l.b16 %v238
      %v1172 = vunpack.c.l.b16 %v239
      %v1173 = vunpack.c.l.b16 %v240
      %v1174 = vunpack.c.l.b16 %v241
      %v1175 = vunpack.c.l.b16 %v242
      %v1176 = vunpack.c.l.b16 %v243
      %v1177 = vunpack.c.l.b16 %v244
      %v1178 = vunpack.c.l.b16 %v245
      %v1179 = vunpack.c.l.b16 %v246
      %v1180 = vunpack.c.l.b16 %v247
      %v1181 = vunpack.c.l.b16 %v248
      %v1182 = vunpack.c.l.b16 %v249
      %v1183 = vunpack.c.l.b16 %v250
      %v1184 = vunpack.c.l.b16 %v251
      %v1185 = vunpack.c.l.b16 %v252
      %v1186 = vunpack.c.l.b16 %v253
      %v1187 = vunpack.c.l.b16 %v254
      %v1188 = vunpack.c.l.b16 %v255
      %v1189 = vunpack.c.l.b16 %v256
      %v1190 = vunpack.c.l.b16 %v257
      %v1191 = vunpack.c.l.b16 %v258
      %v1192 = vunpack.c.l.b16 %v259
      %v1193 = vunpack.c.l.b16 %v260
      %v1194 = vunpack.c.l.b16 %v261
      %v1195 = vunpack.c.l.b16 %v262
      %v1196 = vunpack.c.l.b16 %v263
      %v1197 = vunpack.c.l.b16 %v264
      %v1198 = vunpack.c.l.b16 %v265
      %v1199 = vunpack.c.l.b16 %v266
      %v1200 = vunpack.c.l.b16 %v267
      %v1201 = vunpack.c.l.b16 %v268
      %v1202 = vunpack.c.l.b16 %v269
      %v1203 = vunpack.c.l.b16 %v270
      %v1204 = vunpack.c.l.b16 %v271
      %v1205 = vunpack.c.l.b16 %v272
      %v1206 = vunpack.c.l.b16 %v273
      %v1207 = vunpack.c.l.b16 %v274
      %v1208 = vunpack.c.l.b16 %v275
      %v1209 = vunpack.c.l.b16 %v276
      %v1210 = vunpack.c.l.b16 %v277
      %v1211 = vunpack.c.l.b16 %v278
      %v1212 = vunpack.c.l.b16 %v279
      %v1213 = vunpack.c.l.b16 %v280
      %v1214 = vunpack.c.l.b16 %v281
      %v1215 = vunpack.c.l.b16 %v282
      %v1216 = vunpack.c.l.b16 %v283
      %v1217 = vunpack.c.l.b16 %v284
      %v1218 = vunpack.c.l.b16 %v285
      %v1219 = vunpack.c.l.b16 %v286
      %v1220 = vunpack.c.l.b16 %v287
      %v1221 = vunpack.c.l.b16 %v288
      %v1222 = vunpack.c.l.b16 %v289
      %v1223 = vunpack.c.l.b16 %v290
      %v1224 = vunpack.c.l.b16 %v291
      %v1225 = vunpack.c.l.b16 %v292
      %v1226 = vunpack.c.l.b16 %v293
      %v1227 = vunpack.c.l.b16 %v294
      %v1228 = vunpack.c.l.b16 %v295
      %v1229 = vunpack.c.l.b16 %v296
      %v1230 = vunpack.c.l.b16 %v297
      %v1231 = vunpack.c.l.b16 %v298
      %v1232 = vunpack.c.l.b16 %v299
      %v1233 = vunpack.c.l.b16 %v300
      %v1234 = vunpack.c.l.b16 %v301
      %v1235 = vunpack.c.l.b16 %v302
      %v1236 = vunpack.c.l.b16 %v303
      %v1237 = vunpack.c.l.b16 %v304
      %v1238 = vunpack.c.l.b16 %v305
      %v1239 = vunpack.c.l.b16 %v306
      %v1240 = vunpack.c.l.b16 %v307
      %v1241 = vunpack.c.l.b16 %v308
      %v1242 = vunpack.c.l.b16 %v309
      %v1243 = vunpack.c.l.b16 %v310
      %v1244 = vunpack.c.l.b16 %v311
      %v1245 = vunpack.c.l.b16 %v312
      %v1246 = vunpack.c.l.b16 %v313
      %v1247 = vunpack.c.l.b16 %v314
      %v1248 = vunpack.c.l.b16 %v315
      %v1249 = vunpack.c.l.b16 %v316
      %v1250 = vunpack.c.l.b16 %v317
      %v1251 = vunpack.c.l.b16 %v318
      %v1252 = vunpack.c.l.b16 %v319
      %v1253 = vunpack.c.l.b16 %v320
      %v1254 = vunpack.c.l.b16 %v321
      %v1255 = vunpack.c.l.b16 %v322
      %v1256 = vunpack.c.l.b16 %v323
      %v1257 = vunpack.c.l.b16 %v324
      %v1258 = vunpack.c.l.b16 %v325
      %v1259 = vunpack.c.l.b16 %v326
      %v1260 = vunpack.c.l.b16 %v327
      %v1261 = vunpack.c.l.b16 %v328
      %v1262 = vunpack.c.l.b16 %v329
      %v1263 = vunpack.c.l.b16 %v330
      %v1264 = vunpack.c.l.b16 %v331
      %v1265 = vunpack.c.l.b16 %v332
      %v1266 = vunpack.c.l.b16 %v333
      %v1267 = vunpack.c.l.b16 %v334
      %v1268 = vunpack.c.l.b16 %v335
      %v1269 = vunpack.c.l.b16 %v336
      %v1270 = vunpack.c.l.b16 %v337
      %v1271 = vunpack.c.l.b16 %v338
      %v1272 = vunpack.c.l.b16 %v339
      %v1273 = vunpack.c.l.b16 %v340
      %v1274 = vunpack.c.l.b16 %v341
      %v1275 = vunpack.c.l.b16 %v342
      %v1276 = vunpack.c.l.b16 %v343
      %v1277 = vunpack.c.l.b16 %v344
      %v1278 = vunpack.c.l.b16 %v345
      %v1279 = vunpack.c.l.b16 %v346
      %v1280 = vunpack.c.l.b16 %v347
      %v1281 = vunpack.c.l.b16 %v348
      %v1282 = vunpack.c.l.b16 %v349
      %v1283 = vunpack.c.l.b16 %v350
      %v1284 = vunpack.c.l.b16 %v351
      %v1285 = vunpack.c.l.b16 %v352
      %v1286 = vunpack.c.l.b16 %v353
      %v1287 = vunpack.c.l.b16 %v354
      %v1288 = vunpack.c.l.b16 %v355
      %v1289 = vunpack.c.l.b16 %v356
      %v1290 = vunpack.c.l.b16 %v357
      %v1291 = vunpack.c.l.b16 %v358
      %v1292 = vunpack.c.l.b16 %v359
      %v1293 = vunpack.c.l.b16 %v360
      %v1294 = vunpack.c.l.b16 %v361
      %v1295 = vunpack.c.l.b16 %v362
      %v1296 = vunpack.c.l.b16 %v363
      %v1297 = vunpack.c.l.b16 %v364
      %v1298 = vunpack.c.l.b16 %v365
      %v1299 = vunpack.c.l.b16 %v366
      %v1300 = vunpack.c.l.b16 %v367
      %v1301 = vunpack.c.l.b16 %v368
      %v1302 = vunpack.c.l.b16 %v369
      %v1303 = vunpack.c.l.b16 %v370
      %v1304 = vunpack.c.l.b16 %v371
      %v1305 = vunpack.c.l.b16 %v372
      %v1306 = vunpack.c.l.b16 %v373
      %v1307 = vunpack.c.l.b16 %v374
      %v1308 = vunpack.c.l.b16 %v375
      %v1309 = vunpack.c.l.b16 %v376
      %v1310 = vunpack.c.l.b16 %v377
      %v1311 = vunpack.c.l.b16 %v378
      %v1312 = vunpack.c.l.b16 %v379
      %v1313 = vunpack.c.l.b16 %v380
      %v1314 = vunpack.c.l.b16 %v381
      %v1315 = vunpack.c.l.b16 %v382
      %v1316 = vunpack.c.l.b16 %v383
      %v1317 = vunpack.c.l.b16 %v384
      %v1318 = vunpack.c.l.b16 %v385
      %v1319 = vunpack.c.l.b16 %v386
      %v1320 = vunpack.c.l.b16 %v387
      %v1321 = vunpack.c.l.b16 %v388
      %v1322 = vunpack.c.l.b16 %v389
      %v1323 = vunpack.c.l.b16 %v390
      %v1324 = vunpack.c.l.b16 %v391
      %v1325 = vunpack.c.l.b16 %v392
      %v1326 = vunpack.c.l.b16 %v393
      %v1327 = vunpack.c.l.b16 %v394
      %v1328 = vunpack.c.l.b16 %v395
      %v1329 = vunpack.c.l.b16 %v396
      %v1330 = vunpack.c.l.b16 %v397
      %v1331 = vunpack.c.l.b16 %v398
      %v1332 = vunpack.c.l.b16 %v399
      %v1333 = vunpack.c.l.b16 %v400
      %v1334 = vunpack.c.l.b16 %v401
      %v1335 = vunpack.c.l.b16 %v402
      %v1336 = vunpack.c.l.b16 %v403
      %v1337 = vunpack.c.l.b16 %v404
      %v1338 = vunpack.c.l.b16 %v405
      %v1339 = vunpack.c.l.b16 %v406
      %v1340 = vunpack.c.l.b16 %v407
      %v1341 = vunpack.c.l.b16 %v408
      %v1342 = vunpack.c.l.b16 %v409
      %v1343 = vunpack.c.l.b16 %v410
      %v1344 = vunpack.c.l.b16 %v411
      %v1345 = vunpack.c.l.b16 %v412
      %v1346 = vunpack.c.l.b16 %v413
      %v1347 = vunpack.c.l.b16 %v414
      %v1348 = vunpack.c.l.b16 %v415
      %v1349 = vunpack.c.l.b16 %v416
      %v1350 = vunpack.c.l.b16 %v417
      %v1351 = vunpack.c.l.b16 %v418
      %v1352 = vunpack.c.l.b16 %v419
      %v1353 = vunpack.c.l.b16 %v420
      %v1354 = vunpack.c.l.b16 %v421
      %v1355 = vunpack.c.l.b16 %v422
      %v1356 = vunpack.c.l.b16 %v423
      %v1357 = vunpack.c.l.b16 %v424
      %v1358 = vunpack.c.l.b16 %v425
      %v1359 = vunpack.c.l.b16 %v426
      %v1360 = vunpack.c.l.b16 %v427
      %v1361 = vunpack.c.l.b16 %v428
      %v1362 = vunpack.c.l.b16 %v429
      %v1363 = vunpack.c.l.b16 %v430
      %v1364 = vunpack.c.l.b16 %v431
      %v1365 = vunpack.c.l.b16 %v432
      %v1366 = vunpack.c.l.b16 %v433
      %v1367 = vunpack.c.l.b16 %v434
      %v1368 = vunpack.c.l.b16 %v435
      %v1369 = vunpack.c.l.b16 %v436
      %v1370 = vunpack.c.l.b16 %v437
      %v1371 = vunpack.c.l.b16 %v438
      %v1372 = vunpack.c.l.b16 %v439
      %v1373 = vunpack.c.l.b16 %v440
      %v1374 = vunpack.c.l.b16 %v441
      %v1375 = vunpack.c.l.b16 %v442
      %v1376 = vunpack.c.l.b16 %v443
      %v1377 = vunpack.c.l.b16 %v444
      %v1378 = vunpack.c.l.b16 %v445
      %v1379 = vunpack.c.l.b16 %v446
      %v1380 = vunpack.c.l.b16 %v447
      %v1381 = vunpack.c.l.b16 %v448
      %v1382 = vunpack.c.l.b16 %v449
      %v1383 = vunpack.c.l.b16 %v450
      %v1384 = vunpack.c.l.b16 %v451
      %v1385 = vunpack.c.l.b16 %v452
      %v1386 = vunpack.c.l.b16 %v453
      %v1387 = vunpack.c.l.b16 %v454
      %v1388 = vunpack.c.l.b16 %v455
      %v1389 = vunpack.c.l.b16 %v456
      %v1390 = vunpack.c.l.b16 %v457
      %v1391 = vunpack.c.l.b16 %v458
      %v1392 = vunpack.c.l.b16 %v459
      %v1393 = vunpack.c.l.b16 %v460
      %v1394 = vunpack.c.l.b16 %v461
      %v1395 = vunpack.c.l.b16 %v462
      %v1396 = vunpack.c.l.b16 %v463
      %v1397 = vunpack.c.l.b16 %v464
      %v1398 = vunpack.c.l.b16 %v465
      %v1399 = vunpack.c.l.b16 %v466
      %v1400 = vunpack.c.l.b16 %v467
      %v1401 = vunpack.c.l.b16 %v468
      %v1402 = vunpack.c.l.b16 %v469
      %v1403 = vunpack.c.l.b16 %v470
      %v1404 = vunpack.c.l.b16 %v471
      %v1405 = vunpack.c.l.b16 %v472
      %v1406 = vunpack.c.l.b16 %v473
      %v1407 = vunpack.c.l.b16 %v474
      %v1408 = vunpack.c.l.b16 %v475
      %v1409 = vunpack.c.l.b16 %v476
      %v1410 = vunpack.c.l.b16 %v477
      %v1411 = vunpack.c.l.b16 %v478
      %v1412 = vunpack.c.l.b16 %v479
      %v1413 = vunpack.c.l.b16 %v480
      %v1414 = vunpack.c.l.b16 %v481
      %v1415 = vunpack.c.l.b16 %v482
      %v1416 = vunpack.c.l.b16 %v483
      %v1417 = vunpack.c.l.b16 %v484
      %v1418 = vunpack.c.l.b16 %v485
      %v1419 = vunpack.c.l.b16 %v486
      %v1420 = vunpack.c.l.b16 %v487
      %v1421 = vunpack.c.l.b16 %v488
      %v1422 = vunpack.c.l.b16 %v489
      %v1423 = vunpack.c.l.b16 %v490
      %v1424 = vunpack.c.l.b16 %v491
      %v1425 = vunpack.c.l.b16 %v492
      %v1426 = vunpack.c.l.b16 %v493
      %v1427 = vunpack.c.l.b16 %v494
      %v1428 = vunpack.c.l.b16 %v495
      %v1429 = vunpack.c.l.b16 %v496
      %v1430 = vunpack.c.l.b16 %v497
      %v1431 = vunpack.c.l.b16 %v498
      %v1432 = vunpack.c.l.b16 %v499
      %v1433 = vunpack.c.l.b16 %v500
      %v1434 = vunpack.c.l.b16 %v501
      %v1435 = vunpack.c.l.b16 %v502
      %v1436 = vunpack.c.l.b16 %v503
      %v1437 = vunpack.c.l.b16 %v504
      %v1438 = vunpack.c.l.b16 %v505
      %v1439 = vunpack.c.l.b16 %v506
      %v1440 = vunpack.c.l.b16 %v507
      %v1441 = vunpack.c.l.b16 %v508
      %v1442 = vunpack.c.l.b16 %v509
      %v1443 = vunpack.c.l.b16 %v510
      %v1444 = vunpack.c.l.b16 %v511
      %v1445 = vunpack.c.l.b16 %v512
      %v1446 = vunpack.c.l.b16 %v513
      %v1447 = vunpack.c.l.b16 %v514
      %v1448 = vunpack.c.l.b16 %v515
      %v1449 = vunpack.c.l.b16 %v516
      %v1450 = vunpack.c.l.b16 %v517
      %v1451 = vunpack.c.l.b16 %v518
      %v1452 = vunpack.c.l.b16 %v519
      %v1453 = vunpack.c.l.b16 %v520
      %v1454 = vunpack.c.l.b16 %v521
      %v1455 = vunpack.c.l.b16 %v522
      %v1456 = vunpack.c.l.b16 %v523
      %v1457 = vunpack.c.l.b16 %v524
      %v1458 = vunpack.c.l.b16 %v525
      %v1459 = vunpack.c.l.b16 %v526
      %v1460 = vunpack.c.l.b16 %v527
      %v1461 = vunpack.c.l.b16 %v528
      %v1462 = vunpack.c.l.b16 %v529
      %v1463 = vunpack.c.l.b16 %v530
      %v1464 = vunpack.c.l.b16 %v531
      %v1465 = vunpack.c.l.b16 %v532
      %v1466 = vunpack.c.l.b16 %v533
      %v1467 = vunpack.c.l.b16 %v534
      %v1468 = vunpack.c.l.b16 %v535
      %v1469 = vunpack.c.l.b16 %v536
      %v1470 = vunpack.c.l.b16 %v537
      %v1471 = vunpack.c.l.b16 %v538
      %v1472 = vunpack.c.l.b16 %v539
      %v1473 = vunpack.c.l.b16 %v540
      %v1474 = vunpack.c.l.b16 %v541
      %v1475 = vunpack.c.l.b16 %v542
      %v1476 = vunpack.c.l.b16 %v543
      %v1477 = vunpack.c.l.b16 %v544
      %v1478 = vunpack.c.l.b16 %v545
      %v1479 = vunpack.c.l.b16 %v546
      %v1480 = vunpack.c.l.b16 %v547
      %v1481 = vunpack.c.l.b16 %v548
      %v1482 = vunpack.c.l.b16 %v549
      %v1483 = vunpack.c.l.b16 %v550
      %v1484 = vunpack.c.l.b16 %v551
      %v1485 = vunpack.c.l.b16 %v552
      %v1486 = vunpack.c.l.b16 %v553
      %v1487 = vunpack.c.l.b16 %v554
      %v1488 = vunpack.c.l.b16 %v555
      %v1489 = vunpack.c.l.b16 %v556
      %v1490 = vunpack.c.l.b16 %v557
      %v1491 = vunpack.c.l.b16 %v558
      %v1492 = vunpack.c.l.b16 %v559
      %v1493 = vunpack.c.l.b16 %v560
      %v1494 = vunpack.c.l.b16 %v561
      %v1495 = vunpack.c.l.b16 %v562
      %v1496 = vunpack.c.l.b16 %v563
      %v1497 = vunpack.c.l.b16 %v564
      %v1498 = vunpack.c.l.b16 %v565
      %v1499 = vunpack.c.l.b16 %v566
      %v1500 = vunpack.c.l.b16 %v567
      %v1501 = vunpack.c.l.b16 %v568
      %v1502 = vunpack.c.l.b16 %v569
      %v1503 = vunpack.c.l.b16 %v570
      %v1504 = vunpack.c.l.b16 %v571
      %v1505 = vunpack.c.l.b16 %v572
      %v1506 = vunpack.c.l.b16 %v573
      %v1507 = vunpack.c.l.b16 %v574
      %v1508 = vunpack.c.l.b16 %v575
      %v1509 = vunpack.c.l.b16 %v576
      %v1510 = vunpack.c.l.b16 %v577
      %v1511 = vunpack.c.l.b16 %v578
      %v1512 = vunpack.c.l.b16 %v579
      %v1513 = vunpack.c.l.b16 %v580
      %v1514 = vunpack.c.l.b16 %v581
      %v1515 = vunpack.c.l.b16 %v582
      %v1516 = vunpack.c.l.b16 %v583
      %v1517 = vunpack.c.l.b16 %v584
      %v1518 = vunpack.c.l.b16 %v585
      %v1519 = vunpack.c.l.b16 %v586
      %v1520 = vunpack.c.l.b16 %v587
      %v1521 = vunpack.c.l.b16 %v588
      %v1522 = vunpack.c.l.b16 %v589
      %v1523 = vunpack.c.l.b16 %v590
      %v1524 = vunpack.c.l.b16 %v591
      %v1525 = vunpack.c.l.b16 %v592
      %v1526 = vunpack.c.l.b16 %v593
      %v1527 = vunpack.c.l.b16 %v594
      %v1528 = vunpack.c.l.b16 %v595
      %v1529 = vunpack.c.l.b16 %v596
      %v1530 = vunpack.c.l.b16 %v597
      %v1531 = vunpack.c.l.b16 %v598
      %v1532 = vunpack.c.l.b16 %v599
      %v1533 = vunpack.c.l.b16 %v600
      %v1534 = vunpack.c.l.b16 %v601
      %v1535 = vunpack.c.l.b16 %v602
      %v1536 = vunpack.c.l.b16 %v603
      %v1537 = vpack.c.b16 %v1138, %v1137
      %v1538 = vpack.c.b16 %v1140, %v1139
      %v1539 = vpack.c.b16 %v1142, %v1141
      %v1540 = vpack.c.b16 %v1144, %v1143
      %v1541 = vpack.c.b16 %v1146, %v1145
      %v1542 = vpack.c.b16 %v1148, %v1147
      %v1543 = vpack.c.b16 %v1150, %v1149
      %v1544 = vpack.c.b16 %v1152, %v1151
      %v1545 = vpack.c.b16 %v1154, %v1153
      %v1546 = vpack.c.b16 %v1156, %v1155
      %v1547 = vpack.c.b16 %v1158, %v1157
      %v1548 = vpack.c.b16 %v1160, %v1159
      %v1549 = vpack.c.b16 %v1162, %v1161
      %v1550 = vpack.c.b16 %v1164, %v1163
      %v1551 = vpack.c.b16 %v1166, %v1165
      %v1552 = vpack.c.b16 %v1168, %v1167
      %v1553 = vpack.c.b16 %v1170, %v1169
      %v1554 = vpack.c.b16 %v1172, %v1171
      %v1555 = vpack.c.b16 %v1174, %v1173
      %v1556 = vpack.c.b16 %v1176, %v1175
      %v1557 = vpack.c.b16 %v1178, %v1177
      %v1558 = vpack.c.b16 %v1180, %v1179
      %v1559 = vpack.c.b16 %v1182, %v1181
      %v1560 = vpack.c.b16 %v1184, %v1183
      %v1561 = vpack.c.b16 %v1186, %v1185
      %v1562 = vpack.c.b16 %v1188, %v1187
      %v1563 = vpack.c.b16 %v1190, %v1189
      %v1564 = vpack.c.b16 %v1192, %v1191
      %v1565 = vpack.c.b16 %v1194, %v1193
      %v1566 = vpack.c.b16 %v1196, %v1195
      %v1567 = vpack.c.b16 %v1198, %v1197
      %v1568 = vpack.c.b16 %v1200, %v1199
      %v1569 = vpack.c.b16 %v1202, %v1201
      %v1570 = vpack.c.b16 %v1204, %v1203
      %v1571 = vpack.c.b16 %v1206, %v1205
      %v1572 = vpack.c.b16 %v1208, %v1207
      %v1573 = vpack.c.b16 %v1210, %v1209
      %v1574 = vpack.c.b16 %v1212, %v1211
      %v1575 = vpack.c.b16 %v1214, %v1213
      %v1576 = vpack.c.b16 %v1216, %v1215
      %v1577 = vpack.c.b16 %v1218, %v1217
      %v1578 = vpack.c.b16 %v1220, %v1219
      %v1579 = vpack.c.b16 %v1222, %v1221
      %v1580 = vpack.c.b16 %v1224, %v1223
      %v1581 = vpack.c.b16 %v1226, %v1225
      %v1582 = vpack.c.b16 %v1228, %v1227
      %v1583 = vpack.c.b16 %v1230, %v1229
      %v1584 = vpack.c.b16 %v1232, %v1231
      %v1585 = vpack.c.b16 %v1234, %v1233
      %v1586 = vpack.c.b16 %v1236, %v1235
      %v1587 = vpack.c.b16 %v1238, %v1237
      %v1588 = vpack.c.b16 %v1240, %v1239
      %v1589 = vpack.c.b16 %v1242, %v1241
      %v1590 = vpack.c.b16 %v1244, %v1243
      %v1591 = vpack.c.b16 %v1246, %v1245
      %v1592 = vpack.c.b16 %v1248, %v1247
      %v1593 = vpack.c.b16 %v1250, %v1249
      %v1594 = vpack.c.b16 %v1252, %v1251
      %v1595 = vpack.c.b16 %v1254, %v1253
      %v1596 = vpack.c.b16 %v1256, %v1255
      %v1597 = vpack.c.b16 %v1258, %v1257
      %v1598 = vpack.c.b16 %v1260, %v1259
      %v1599 = vpack.c.b16 %v1262, %v1261
      %v1600 = vpack.c.b16 %v1264, %v1263
      %v1601 = vpack.c.b16 %v1266, %v1265
      %v1602 = vpack.c.b16 %v1268, %v1267
      %v1603 = vpack.c.b16 %v1270, %v1269
      %v1604 = vpack.c.b16 %v1272, %v1271
      %v1605 = vpack.c.b16 %v1274, %v1273
      %v1606 = vpack.c.b16 %v1276, %v1275
      %v1607 = vpack.c.b16 %v1278, %v1277
      %v1608 = vpack.c.b16 %v1280, %v1279
      %v1609 = vpack.c.b16 %v1282, %v1281
      %v1610 = vpack.c.b16 %v1284, %v1283
      %v1611 = vpack.c.b16 %v1286, %v1285
      %v1612 = vpack.c.b16 %v1288, %v1287
      %v1613 = vpack.c.b16 %v1290, %v1289
      %v1614 = vpack.c.b16 %v1292, %v1291
      %v1615 = vpack.c.b16 %v1294, %v1293
      %v1616 = vpack.c.b16 %v1296, %v1295
      %v1617 = vpack.c.b16 %v1298, %v1297
      %v1618 = vpack.c.b16 %v1300, %v1299
      %v1619 = vpack.c.b16 %v1302, %v1301
      %v1620 = vpack.c.b16 %v1304, %v1303
      %v1621 = vpack.c.b16 %v1306, %v1305
      %v1622 = vpack.c.b16 %v1308, %v1307
      %v1623 = vpack.c.b16 %v1310, %v1309
      %v1624 = vpack.c.b16 %v1312, %v1311
      %v1625 = vpack.c.b16 %v1314, %v1313
      %v1626 = vpack.c.b16 %v1316, %v1315
      %v1627 = vpack.c.b16 %v1318, %v1317
      %v1628 = vpack.c.b16 %v1320, %v1319
      %v1629 = vpack.c.b16 %v1322, %v1321
      %v1630 = vpack.c.b16 %v1324, %v1323
      %v1631 = vpack.c.b16 %v1326, %v1325
      %v1632 = vpack.c.b16 %v1328, %v1327
      %v1633 = vpack.c.b16 %v1330, %v1329
      %v1634 = vpack.c.b16 %v1332, %v1331
      %v1635 = vpack.c.b16 %v1334, %v1333
      %v1636 = vpack.c.b16 %v1336, %v1335
      %v1637 = vpack.c.b16 %v1338, %v1337
      %v1638 = vpack.c.b16 %v1340, %v1339
      %v1639 = vpack.c.b16 %v1342, %v1341
      %v1640 = vpack.c.b16 %v1344, %v1343
      %v1641 = vpack.c.b16 %v1346, %v1345
      %v1642 = vpack.c.b16 %v1348, %v1347
      %v1643 = vpack.c.b16 %v1350, %v1349
      %v1644 = vpack.c.b16 %v1352, %v1351
      %v1645 = vpack.c.b16 %v1354, %v1353
      %v1646 = vpack.c.b16 %v1356, %v1355
      %v1647 = vpack.c.b16 %v1358, %v1357
      %v1648 = vpack.c.b16 %v1360, %v1359
      %v1649 = vpack.c.b16 %v1362, %v1361
      %v1650 = vpack.c.b16 %v1364, %v1363
      %v1651 = vpack.c.b16 %v1366, %v1365
      %v1652 = vpack.c.b16 %v1368, %v1367
      %v1653 = vpack.c.b16 %v1370, %v1369
      %v1654 = vpack.c.b16 %v1372, %v1371
      %v1655 = vpack.c.b16 %v1374, %v1373
      %v1656 = vpack.c.b16 %v1376, %v1375
      %v1657 = vpack.c.b16 %v1378, %v1377
      %v1658 = vpack.c.b16 %v1380, %v1379
      %v1659 = vpack.c.b16 %v1382, %v1381
      %v1660 = vpack.c.b16 %v1384, %v1383
      %v1661 = vpack.c.b16 %v1386, %v1385
      %v1662 = vpack.c.b16 %v1388, %v1387
      %v1663 = vpack.c.b16 %v1390, %v1389
      %v1664 = vpack.c.b16 %v1392, %v1391
      %v1665 = vpack.c.b16 %v1394, %v1393
      %v1666 = vpack.c.b16 %v1396, %v1395
      %v1667 = vpack.c.b16 %v1398, %v1397
      %v1668 = vpack.c.b16 %v1400, %v1399
      %v1669 = vpack.c.b16 %v1402, %v1401
      %v1670 = vpack.c.b16 %v1404, %v1403
      %v1671 = vpack.c.b16 %v1406, %v1405
      %v1672 = vpack.c.b16 %v1408, %v1407
      %v1673 = vpack.c.b16 %v1410, %v1409
      %v1674 = vpack.c.b16 %v1412, %v1411
      %v1675 = vpack.c.b16 %v1414, %v1413
      %v1676 = vpack.c.b16 %v1416, %v1415
      %v1677 = vpack.c.b16 %v1418, %v1417
      %v1678 = vpack.c.b16 %v1420, %v1419
      %v1679 = vpack.c.b16 %v1422, %v1421
      %v1680 = vpack.c.b16 %v1424, %v1423
      %v1681 = vpack.c.b16 %v1426, %v1425
      %v1682 = vpack.c.b16 %v1428, %v1427
      %v1683 = vpack.c.b16 %v1430, %v1429
      %v1684 = vpack.c.b16 %v1432, %v1431
      %v1685 = vpack.c.b16 %v1434, %v1433
      %v1686 = vpack.c.b16 %v1436, %v1435
      %v1687 = vpack.c.b16 %v1438, %v1437
      %v1688 = vpack.c.b16 %v1440, %v1439
      %v1689 = vpack.c.b16 %v1442, %v1441
      %v1690 = vpack.c.b16 %v1444, %v1443
      %v1691 = vpack.c.b16 %v1446, %v1445
      %v1692 = vpack.c.b16 %v1448, %v1447
      %v1693 = vpack.c.b16 %v1450, %v1449
      %v1694 = vpack.c.b16 %v1452, %v1451
      %v1695 = vpack.c.b16 %v1454, %v1453
      %v1696 = vpack.c.b16 %v1456, %v1455
      %v1697 = vpack.c.b16 %v1458, %v1457
      %v1698 = vpack.c.b16 %v1460, %v1459
      %v1699 = vpack.c.b16 %v1462, %v1461
      %v1700 = vpack.c.b16 %v1464, %v1463
      %v1701 = vpack.c.b16 %v1466, %v1465
      %v1702 = vpack.c.b16 %v1468, %v1467
      %v1703 = vpack.c.b16 %v1470, %v1469
      %v1704 = vpack.c.b16 %v1472, %v1471
      %v1705 = vpack.c.b16 %v1474, %v1473
      %v1706 = vpack.c.b16 %v1476, %v1475
      %v1707 = vpack.c.b16 %v1478, %v1477
      %v1708 = vpack.c.b16 %v1480, %v1479
      %v1709 = vpack.c.b16 %v1482, %v1481
      %v1710 = vpack.c.b16 %v1484, %v1483
      %v1711 = vpack.c.b16 %v1486, %v1485
      %v1712 = vpack.c.b16 %v1488, %v1487
      %v1713 = vpack.c.b16 %v1490, %v1489
      %v1714 = vpack.c.b16 %v1492, %v1491
      %v1715 = vpack.c.b16 %v1494, %v1493
      %v1716 = vpack.c.b16 %v1496, %v1495
      %v1717 = vpack.c.b16 %v1498, %v1497
      %v1718 = vpack.c.b16 %v1500, %v1499
      %v1719 = vpack.c.b16 %v1502, %v1501
      %v1720 = vpack.c.b16 %v1504, %v1503
      %v1721 = vpack.c.b16 %v1506, %v1505
      %v1722 = vpack.c.b16 %v1508, %v1507
      %v1723 = vpack.c.b16 %v1510, %v1509
      %v1724 = vpack.c.b16 %v1512, %v1511
      %v1725 = vpack.c.b16 %v1514, %v1513
      %v1726 = vpack.c.b16 %v1516, %v1515
      %v1727 = vpack.c.b16 %v1518, %v1517
      %v1728 = vpack.c.b16 %v1520, %v1519
      %v1729 = vpack.c.b16 %v1522, %v1521
      %v1730 = vpack.c.b16 %v1524, %v1523
      %v1731 = vpack.c.b16 %v1526, %v1525
      %v1732 = vpack.c.b16 %v1528, %v1527
      %v1733 = vpack.c.b16 %v1530, %v1529
      %v1734 = vpack.c.b16 %v1532, %v1531
      %v1735 = vpack.c.b16 %v1534, %v1533
      %v1736 = vpack.c.b16 %v1536, %v1535
      %1937 = vmatprep.subr.bf16.mxu0 0
      %1938 = vmatpush1.bf16.msra.mxu0 %v1537
      %1939 = vmatprep.subr.bf16.mxu0 0
      %1940 = vmatpush1.bf16.msra.mxu0 %v1538
      %1941 = vmatprep.subr.bf16.mxu0 0
      %1942 = vmatpush1.bf16.msra.mxu0 %v1539
      %1943 = vmatprep.subr.bf16.mxu0 0
      %1944 = vmatpush1.bf16.msra.mxu0 %v1540
      %1945 = vmatprep.subr.bf16.mxu0 0
      %1946 = vmatpush1.bf16.msra.mxu0 %v1541
      %1947 = vmatprep.subr.bf16.mxu0 0
      %1948 = vmatpush1.bf16.msra.mxu0 %v1542
      %1949 = vmatprep.subr.bf16.mxu0 0
      %1950 = vmatpush1.bf16.msra.mxu0 %v1543
      %1951 = vmatprep.subr.bf16.mxu0 0
      %1952 = vmatpush1.bf16.msra.mxu0 %v1544
      %1953 = vmatprep.subr.bf16.mxu0 0
      %1954 = vmatpush1.bf16.msra.mxu0 %v1545
      %1955 = vmatprep.subr.bf16.mxu0 0
      %1956 = vmatpush1.bf16.msra.mxu0 %v1546
      %1957 = vmatprep.subr.bf16.mxu0 0
      %1958 = vmatpush1.bf16.msra.mxu0 %v1547
      %1959 = vmatprep.subr.bf16.mxu0 0
      %1960 = vmatpush1.bf16.msra.mxu0 %v1548
      %1961 = vmatprep.subr.bf16.mxu0 0
      %1962 = vmatpush1.bf16.msra.mxu0 %v1549
      %1963 = vmatprep.subr.bf16.mxu0 0
      %1964 = vmatpush1.bf16.msra.mxu0 %v1550
      %1965 = vmatprep.subr.bf16.mxu0 0
      %1966 = vmatpush1.bf16.msra.mxu0 %v1551
      %1967 = vmatprep.subr.bf16.mxu0 0
      %1968 = vmatpush1.bf16.msra.mxu0 %v1552
      %1969 = vmatprep.mubr.bf16.mxu0 %v688
      %1970 = vmatmul.mubr.bf16.gmra.mrb[0].mxu0 %v687
      %v1971 = vpop.f32.mrb[0].mxu0
      %v1972 = vadd.f32 %v609, %v1971
      %v1973 = vpop.f32.mrb[0].mxu0
      %v1974 = vpop.f32.mrb[0].mxu0
      %v1975 = vadd.f32 %v609, %v1974
      %v1976 = vpop.f32.mrb[0].mxu0
      %1977 = vdwg.mxu0
      %1978 = vmatprep.subr.bf16.mxu0 0
      %1979 = vmatpush1.bf16.msra.mxu0 %v1553
      %1980 = vmatprep.subr.bf16.mxu0 0
      %1981 = vmatpush1.bf16.msra.mxu0 %v1554
      %1982 = vmatprep.subr.bf16.mxu0 0
      %1983 = vmatpush1.bf16.msra.mxu0 %v1555
      %1984 = vmatprep.subr.bf16.mxu0 0
      %1985 = vmatpush1.bf16.msra.mxu0 %v1556
      %1986 = vmatprep.subr.bf16.mxu0 0
      %1987 = vmatpush1.bf16.msra.mxu0 %v1557
      %1988 = vmatprep.subr.bf16.mxu0 0
      %1989 = vmatpush1.bf16.msra.mxu0 %v1558
      %1990 = vmatprep.subr.bf16.mxu0 0
      %1991 = vmatpush1.bf16.msra.mxu0 %v1559
      %1992 = vmatprep.subr.bf16.mxu0 0
      %1993 = vmatpush1.bf16.msra.mxu0 %v1560
      %1994 = vmatprep.subr.bf16.mxu0 0
      %1995 = vmatpush1.bf16.msra.mxu0 %v1561
      %1996 = vmatprep.subr.bf16.mxu0 0
      %1997 = vmatpush1.bf16.msra.mxu0 %v1562
      %1998 = vmatprep.subr.bf16.mxu0 0
      %1999 = vmatpush1.bf16.msra.mxu0 %v1563
      %2000 = vmatprep.subr.bf16.mxu0 0
      %2001 = vmatpush1.bf16.msra.mxu0 %v1564
      %2002 = vmatprep.subr.bf16.mxu0 0
      %2003 = vmatpush1.bf16.msra.mxu0 %v1565
      %2004 = vmatprep.subr.bf16.mxu0 0
      %2005 = vmatpush1.bf16.msra.mxu0 %v1566
      %2006 = vmatprep.subr.bf16.mxu0 0
      %2007 = vmatpush1.bf16.msra.mxu0 %v1567
      %2008 = vmatprep.subr.bf16.mxu0 0
      %2009 = vmatpush1.bf16.msra.mxu0 %v1568
      %2010 = vmatprep.mubr.bf16.mxu0 %v690
      %2011 = vmatmul.mubr.bf16.gmra.mrb[0].mxu0 %v689
      %v2012 = vpop.f32.mrb[0].mxu0
      %v2013 = vadd.f32 %v1972, %v2012
      %v2014 = vpop.f32.mrb[0].mxu0
      %v2015 = vpop.f32.mrb[0].mxu0
      %v2016 = vadd.f32 %v1975, %v2015
      %v2017 = vpop.f32.mrb[0].mxu0
      %2018 = vdwg.mxu0
      %2019 = vmatprep.subr.bf16.mxu0 0
      %2020 = vmatpush1.bf16.msra.mxu0 %v1569
      %2021 = vmatprep.subr.bf16.mxu0 0
      %2022 = vmatpush1.bf16.msra.mxu0 %v1570
      %2023 = vmatprep.subr.bf16.mxu0 0
      %2024 = vmatpush1.bf16.msra.mxu0 %v1571
      %2025 = vmatprep.subr.bf16.mxu0 0
      %2026 = vmatpush1.bf16.msra.mxu0 %v1572
      %2027 = vmatprep.subr.bf16.mxu0 0
      %2028 = vmatpush1.bf16.msra.mxu0 %v1573
      %2029 = vmatprep.subr.bf16.mxu0 0
      %2030 = vmatpush1.bf16.msra.mxu0 %v1574
      %2031 = vmatprep.subr.bf16.mxu0 0
      %2032 = vmatpush1.bf16.msra.mxu0 %v1575
      %2033 = vmatprep.subr.bf16.mxu0 0
      %2034 = vmatpush1.bf16.msra.mxu0 %v1576
      %2035 = vmatprep.subr.bf16.mxu0 0
      %2036 = vmatpush1.bf16.msra.mxu0 %v1577
      %2037 = vmatprep.subr.bf16.mxu0 0
      %2038 = vmatpush1.bf16.msra.mxu0 %v1578
      %2039 = vmatprep.subr.bf16.mxu0 0
      %2040 = vmatpush1.bf16.msra.mxu0 %v1579
      %2041 = vmatprep.subr.bf16.mxu0 0
      %2042 = vmatpush1.bf16.msra.mxu0 %v1580
      %2043 = vmatprep.subr.bf16.mxu0 0
      %2044 = vmatpush1.bf16.msra.mxu0 %v1581
      %2045 = vmatprep.subr.bf16.mxu0 0
      %2046 = vmatpush1.bf16.msra.mxu0 %v1582
      %2047 = vmatprep.subr.bf16.mxu0 0
      %2048 = vmatpush1.bf16.msra.mxu0 %v1583
      %2049 = vmatprep.subr.bf16.mxu0 0
      %2050 = vmatpush1.bf16.msra.mxu0 %v1584
      %2051 = vmatprep.mubr.bf16.mxu0 %v692
      %2052 = vmatmul.mubr.bf16.gmra.mrb[0].mxu0 %v691
      %v2053 = vpop.f32.mrb[0].mxu0
      %v2054 = vadd.f32 %v2013, %v2053
      %v2055 = vpop.f32.mrb[0].mxu0
      %v2056 = vpop.f32.mrb[0].mxu0
      %v2057 = vadd.f32 %v2016, %v2056
      %v2058 = vpop.f32.mrb[0].mxu0
      %2059 = vdwg.mxu0
      %2060 = vmatprep.subr.bf16.mxu0 0
      %2061 = vmatpush1.bf16.msra.mxu0 %v1585
      %2062 = vmatprep.subr.bf16.mxu0 0
      %2063 = vmatpush1.bf16.msra.mxu0 %v1586
      %2064 = vmatprep.subr.bf16.mxu0 0
      %2065 = vmatpush1.bf16.msra.mxu0 %v1587
      %2066 = vmatprep.subr.bf16.mxu0 0
      %2067 = vmatpush1.bf16.msra.mxu0 %v1588
      %2068 = vmatprep.subr.bf16.mxu0 0
      %2069 = vmatpush1.bf16.msra.mxu0 %v1589
      %2070 = vmatprep.subr.bf16.mxu0 0
      %2071 = vmatpush1.bf16.msra.mxu0 %v1590
      %2072 = vmatprep.subr.bf16.mxu0 0
      %2073 = vmatpush1.bf16.msra.mxu0 %v1591
      %2074 = vmatprep.subr.bf16.mxu0 0
      %2075 = vmatpush1.bf16.msra.mxu0 %v1592
      %2076 = vmatprep.subr.bf16.mxu0 0
      %2077 = vmatpush1.bf16.msra.mxu0 %v1593
      %2078 = vmatprep.subr.bf16.mxu0 0
      %2079 = vmatpush1.bf16.msra.mxu0 %v1594
      %2080 = vmatprep.subr.bf16.mxu0 0
      %2081 = vmatpush1.bf16.msra.mxu0 %v1595
      %2082 = vmatprep.subr.bf16.mxu0 0
      %2083 = vmatpush1.bf16.msra.mxu0 %v1596
      %2084 = vmatprep.subr.bf16.mxu0 0
      %2085 = vmatpush1.bf16.msra.mxu0 %v1597
      %2086 = vmatprep.subr.bf16.mxu0 0
      %2087 = vmatpush1.bf16.msra.mxu0 %v1598
      %2088 = vmatprep.subr.bf16.mxu0 0
      %2089 = vmatpush1.bf16.msra.mxu0 %v1599
      %2090 = vmatprep.subr.bf16.mxu0 0
      %2091 = vmatpush1.bf16.msra.mxu0 %v1600
      %2092 = vmatprep.mubr.bf16.mxu0 %v694
      %2093 = vmatmul.mubr.bf16.gmra.mrb[0].mxu0 %v693
      %v2094 = vpop.f32.mrb[0].mxu0
      %v2095 = vadd.f32 %v2054, %v2094
      %v2096 = vpop.f32.mrb[0].mxu0
      %v2097 = vpop.f32.mrb[0].mxu0
      %v2098 = vadd.f32 %v2057, %v2097
      %v2099 = vpop.f32.mrb[0].mxu0
      %2100 = vdwg.mxu0
      %2101 = vmatprep.subr.bf16.mxu0 0
      %2102 = vmatpush1.bf16.msra.mxu0 %v1601
      %2103 = vmatprep.subr.bf16.mxu0 0
      %2104 = vmatpush1.bf16.msra.mxu0 %v1602
      %2105 = vmatprep.subr.bf16.mxu0 0
      %2106 = vmatpush1.bf16.msra.mxu0 %v1603
      %2107 = vmatprep.subr.bf16.mxu0 0
      %2108 = vmatpush1.bf16.msra.mxu0 %v1604
      %2109 = vmatprep.subr.bf16.mxu0 0
      %2110 = vmatpush1.bf16.msra.mxu0 %v1605
      %2111 = vmatprep.subr.bf16.mxu0 0
      %2112 = vmatpush1.bf16.msra.mxu0 %v1606
      %2113 = vmatprep.subr.bf16.mxu0 0
      %2114 = vmatpush1.bf16.msra.mxu0 %v1607
      %2115 = vmatprep.subr.bf16.mxu0 0
      %2116 = vmatpush1.bf16.msra.mxu0 %v1608
      %2117 = vmatprep.subr.bf16.mxu0 0
      %2118 = vmatpush1.bf16.msra.mxu0 %v1609
      %2119 = vmatprep.subr.bf16.mxu0 0
      %2120 = vmatpush1.bf16.msra.mxu0 %v1610
      %2121 = vmatprep.subr.bf16.mxu0 0
      %2122 = vmatpush1.bf16.msra.mxu0 %v1611
      %2123 = vmatprep.subr.bf16.mxu0 0
      %2124 = vmatpush1.bf16.msra.mxu0 %v1612
      %2125 = vmatprep.subr.bf16.mxu0 0
      %2126 = vmatpush1.bf16.msra.mxu0 %v1613
      %2127 = vmatprep.subr.bf16.mxu0 0
      %2128 = vmatpush1.bf16.msra.mxu0 %v1614
      %2129 = vmatprep.subr.bf16.mxu0 0
      %2130 = vmatpush1.bf16.msra.mxu0 %v1615
      %2131 = vmatprep.subr.bf16.mxu0 0
      %2132 = vmatpush1.bf16.msra.mxu0 %v1616
      %2133 = vmatprep.mubr.bf16.mxu0 %v696
      %2134 = vmatmul.mubr.bf16.gmra.mrb[0].mxu0 %v695
      %v2135 = vpop.f32.mrb[0].mxu0
      %v2136 = vadd.f32 %v2095, %v2135
      %v2137 = vpop.f32.mrb[0].mxu0
      %v2138 = vpop.f32.mrb[0].mxu0
      %v2139 = vadd.f32 %v2098, %v2138
      %v2140 = vpop.f32.mrb[0].mxu0
      %2141 = vdwg.mxu0
      %2142 = vmatprep.subr.bf16.mxu0 0
      %2143 = vmatpush1.bf16.msra.mxu0 %v1617
      %2144 = vmatprep.subr.bf16.mxu0 0
      %2145 = vmatpush1.bf16.msra.mxu0 %v1618
      %2146 = vmatprep.subr.bf16.mxu0 0
      %2147 = vmatpush1.bf16.msra.mxu0 %v1619
      %2148 = vmatprep.subr.bf16.mxu0 0
      %2149 = vmatpush1.bf16.msra.mxu0 %v1620
      %2150 = vmatprep.subr.bf16.mxu0 0
      %2151 = vmatpush1.bf16.msra.mxu0 %v1621
      %2152 = vmatprep.subr.bf16.mxu0 0
      %2153 = vmatpush1.bf16.msra.mxu0 %v1622
      %2154 = vmatprep.subr.bf16.mxu0 0
      %2155 = vmatpush1.bf16.msra.mxu0 %v1623
      %2156 = vmatprep.subr.bf16.mxu0 0
      %2157 = vmatpush1.bf16.msra.mxu0 %v1624
      %2158 = vmatprep.subr.bf16.mxu0 0
      %2159 = vmatpush1.bf16.msra.mxu0 %v1625
      %2160 = vmatprep.subr.bf16.mxu0 0
      %2161 = vmatpush1.bf16.msra.mxu0 %v1626
      %2162 = vmatprep.subr.bf16.mxu0 0
      %2163 = vmatpush1.bf16.msra.mxu0 %v1627
      %2164 = vmatprep.subr.bf16.mxu0 0
      %2165 = vmatpush1.bf16.msra.mxu0 %v1628
      %2166 = vmatprep.subr.bf16.mxu0 0
      %2167 = vmatpush1.bf16.msra.mxu0 %v1629
      %2168 = vmatprep.subr.bf16.mxu0 0
      %2169 = vmatpush1.bf16.msra.mxu0 %v1630
      %2170 = vmatprep.subr.bf16.mxu0 0
      %2171 = vmatpush1.bf16.msra.mxu0 %v1631
      %2172 = vmatprep.subr.bf16.mxu0 0
      %2173 = vmatpush1.bf16.msra.mxu0 %v1632
      %2174 = vmatprep.mubr.bf16.mxu0 %v698
      %2175 = vmatmul.mubr.bf16.gmra.mrb[0].mxu0 %v697
      %v2176 = vpop.f32.mrb[0].mxu0
      %v2177 = vadd.f32 %v2136, %v2176
      %v2178 = vpop.f32.mrb[0].mxu0
      %v2179 = vpop.f32.mrb[0].mxu0
      %v2180 = vadd.f32 %v2139, %v2179
      %v2181 = vpop.f32.mrb[0].mxu0
      %2182 = vdwg.mxu0
      %2183 = vmatprep.subr.bf16.mxu0 0
      %2184 = vmatpush1.bf16.msra.mxu0 %v1633
      %2185 = vmatprep.subr.bf16.mxu0 0
      %2186 = vmatpush1.bf16.msra.mxu0 %v1634
      %2187 = vmatprep.subr.bf16.mxu0 0
      %2188 = vmatpush1.bf16.msra.mxu0 %v1635
      %2189 = vmatprep.subr.bf16.mxu0 0
      %2190 = vmatpush1.bf16.msra.mxu0 %v1636
      %2191 = vmatprep.subr.bf16.mxu0 0
      %2192 = vmatpush1.bf16.msra.mxu0 %v1637
      %2193 = vmatprep.subr.bf16.mxu0 0
      %2194 = vmatpush1.bf16.msra.mxu0 %v1638
      %2195 = vmatprep.subr.bf16.mxu0 0
      %2196 = vmatpush1.bf16.msra.mxu0 %v1639
      %2197 = vmatprep.subr.bf16.mxu0 0
      %2198 = vmatpush1.bf16.msra.mxu0 %v1640
      %2199 = vmatprep.subr.bf16.mxu0 0
      %2200 = vmatpush1.bf16.msra.mxu0 %v1641
      %2201 = vmatprep.subr.bf16.mxu0 0
      %2202 = vmatpush1.bf16.msra.mxu0 %v1642
      %2203 = vmatprep.subr.bf16.mxu0 0
      %2204 = vmatpush1.bf16.msra.mxu0 %v1643
      %2205 = vmatprep.subr.bf16.mxu0 0
      %2206 = vmatpush1.bf16.msra.mxu0 %v1644
      %2207 = vmatprep.subr.bf16.mxu0 0
      %2208 = vmatpush1.bf16.msra.mxu0 %v1645
      %2209 = vmatprep.subr.bf16.mxu0 0
      %2210 = vmatpush1.bf16.msra.mxu0 %v1646
      %2211 = vmatprep.subr.bf16.mxu0 0
      %2212 = vmatpush1.bf16.msra.mxu0 %v1647
      %2213 = vmatprep.subr.bf16.mxu0 0
      %2214 = vmatpush1.bf16.msra.mxu0 %v1648
      %2215 = vmatprep.mubr.bf16.mxu0 %v700
      %2216 = vmatmul.mubr.bf16.gmra.mrb[0].mxu0 %v699
      %v2217 = vpop.f32.mrb[0].mxu0
      %v2218 = vadd.f32 %v2177, %v2217
      %v2219 = vpop.f32.mrb[0].mxu0
      %v2220 = vpop.f32.mrb[0].mxu0
      %v2221 = vadd.f32 %v2180, %v2220
      %v2222 = vpop.f32.mrb[0].mxu0
      %2223 = vdwg.mxu0
      %2224 = vmatprep.subr.bf16.mxu0 0
      %2225 = vmatpush1.bf16.msra.mxu0 %v1649
      %2226 = vmatprep.subr.bf16.mxu0 0
      %2227 = vmatpush1.bf16.msra.mxu0 %v1650
      %2228 = vmatprep.subr.bf16.mxu0 0
      %2229 = vmatpush1.bf16.msra.mxu0 %v1651
      %2230 = vmatprep.subr.bf16.mxu0 0
      %2231 = vmatpush1.bf16.msra.mxu0 %v1652
      %2232 = vmatprep.subr.bf16.mxu0 0
      %2233 = vmatpush1.bf16.msra.mxu0 %v1653
      %2234 = vmatprep.subr.bf16.mxu0 0
      %2235 = vmatpush1.bf16.msra.mxu0 %v1654
      %2236 = vmatprep.subr.bf16.mxu0 0
      %2237 = vmatpush1.bf16.msra.mxu0 %v1655
      %2238 = vmatprep.subr.bf16.mxu0 0
      %2239 = vmatpush1.bf16.msra.mxu0 %v1656
      %2240 = vmatprep.subr.bf16.mxu0 0
      %2241 = vmatpush1.bf16.msra.mxu0 %v1657
      %2242 = vmatprep.subr.bf16.mxu0 0
      %2243 = vmatpush1.bf16.msra.mxu0 %v1658
      %2244 = vmatprep.subr.bf16.mxu0 0
      %2245 = vmatpush1.bf16.msra.mxu0 %v1659
      %2246 = vmatprep.subr.bf16.mxu0 0
      %2247 = vmatpush1.bf16.msra.mxu0 %v1660
      %2248 = vmatprep.subr.bf16.mxu0 0
      %2249 = vmatpush1.bf16.msra.mxu0 %v1661
      %2250 = vmatprep.subr.bf16.mxu0 0
      %2251 = vmatpush1.bf16.msra.mxu0 %v1662
      %2252 = vmatprep.subr.bf16.mxu0 0
      %2253 = vmatpush1.bf16.msra.mxu0 %v1663
      %2254 = vmatprep.subr.bf16.mxu0 0
      %2255 = vmatpush1.bf16.msra.mxu0 %v1664
      %2256 = vmatprep.mubr.bf16.mxu0 %v702
      %2257 = vmatmul.mubr.bf16.gmra.mrb[0].mxu0 %v701
      %v2258 = vpop.f32.mrb[0].mxu0
      %v2259 = vadd.f32 %v2218, %v2258
      %v2260 = vpop.f32.mrb[0].mxu0
      %v2261 = vpop.f32.mrb[0].mxu0
      %v2262 = vadd.f32 %v2221, %v2261
      %v2263 = vpop.f32.mrb[0].mxu0
      %2264 = vdwg.mxu0
      %2265 = vmatprep.subr.bf16.mxu0 0
      %2266 = vmatpush1.bf16.msra.mxu0 %v1665
      %2267 = vmatprep.subr.bf16.mxu0 0
      %2268 = vmatpush1.bf16.msra.mxu0 %v1666
      %2269 = vmatprep.subr.bf16.mxu0 0
      %2270 = vmatpush1.bf16.msra.mxu0 %v1667
      %2271 = vmatprep.subr.bf16.mxu0 0
      %2272 = vmatpush1.bf16.msra.mxu0 %v1668
      %2273 = vmatprep.subr.bf16.mxu0 0
      %2274 = vmatpush1.bf16.msra.mxu0 %v1669
      %2275 = vmatprep.subr.bf16.mxu0 0
      %2276 = vmatpush1.bf16.msra.mxu0 %v1670
      %2277 = vmatprep.subr.bf16.mxu0 0
      %2278 = vmatpush1.bf16.msra.mxu0 %v1671
      %2279 = vmatprep.subr.bf16.mxu0 0
      %2280 = vmatpush1.bf16.msra.mxu0 %v1672
      %2281 = vmatprep.subr.bf16.mxu0 0
      %2282 = vmatpush1.bf16.msra.mxu0 %v1673
      %2283 = vmatprep.subr.bf16.mxu0 0
      %2284 = vmatpush1.bf16.msra.mxu0 %v1674
      %2285 = vmatprep.subr.bf16.mxu0 0
      %2286 = vmatpush1.bf16.msra.mxu0 %v1675
      %2287 = vmatprep.subr.bf16.mxu0 0
      %2288 = vmatpush1.bf16.msra.mxu0 %v1676
      %2289 = vmatprep.subr.bf16.mxu0 0
      %2290 = vmatpush1.bf16.msra.mxu0 %v1677
      %2291 = vmatprep.subr.bf16.mxu0 0
      %2292 = vmatpush1.bf16.msra.mxu0 %v1678
      %2293 = vmatprep.subr.bf16.mxu0 0
      %2294 = vmatpush1.bf16.msra.mxu0 %v1679
      %2295 = vmatprep.subr.bf16.mxu0 0
      %2296 = vmatpush1.bf16.msra.mxu0 %v1680
      %2297 = vmatprep.mubr.bf16.mxu0 %v704
      %2298 = vmatmul.mubr.bf16.gmra.mrb[0].mxu0 %v703
      %v2299 = vpop.f32.mrb[0].mxu0
      %v2300 = vadd.f32 %v2259, %v2299
      %v2301 = vpop.f32.mrb[0].mxu0
      %v2302 = vpop.f32.mrb[0].mxu0
      %v2303 = vadd.f32 %v2262, %v2302
      %v2304 = vpop.f32.mrb[0].mxu0
      %2305 = vdwg.mxu0
      %2306 = vmatprep.subr.bf16.mxu0 0
      %2307 = vmatpush1.bf16.msra.mxu0 %v1681
      %2308 = vmatprep.subr.bf16.mxu0 0
      %2309 = vmatpush1.bf16.msra.mxu0 %v1682
      %2310 = vmatprep.subr.bf16.mxu0 0
      %2311 = vmatpush1.bf16.msra.mxu0 %v1683
      %2312 = vmatprep.subr.bf16.mxu0 0
      %2313 = vmatpush1.bf16.msra.mxu0 %v1684
      %2314 = vmatprep.subr.bf16.mxu0 0
      %2315 = vmatpush1.bf16.msra.mxu0 %v1685
      %2316 = vmatprep.subr.bf16.mxu0 0
      %2317 = vmatpush1.bf16.msra.mxu0 %v1686
      %2318 = vmatprep.subr.bf16.mxu0 0
      %2319 = vmatpush1.bf16.msra.mxu0 %v1687
      %2320 = vmatprep.subr.bf16.mxu0 0
      %2321 = vmatpush1.bf16.msra.mxu0 %v1688
      %2322 = vmatprep.subr.bf16.mxu0 0
      %2323 = vmatpush1.bf16.msra.mxu0 %v1689
      %2324 = vmatprep.subr.bf16.mxu0 0
      %2325 = vmatpush1.bf16.msra.mxu0 %v1690
      %2326 = vmatprep.subr.bf16.mxu0 0
      %2327 = vmatpush1.bf16.msra.mxu0 %v1691
      %2328 = vmatprep.subr.bf16.mxu0 0
      %2329 = vmatpush1.bf16.msra.mxu0 %v1692
      %2330 = vmatprep.subr.bf16.mxu0 0
      %2331 = vmatpush1.bf16.msra.mxu0 %v1693
      %2332 = vmatprep.subr.bf16.mxu0 0
      %2333 = vmatpush1.bf16.msra.mxu0 %v1694
      %2334 = vmatprep.subr.bf16.mxu0 0
      %2335 = vmatpush1.bf16.msra.mxu0 %v1695
      %2336 = vmatprep.subr.bf16.mxu0 0
      %2337 = vmatpush1.bf16.msra.mxu0 %v1696
      %2338 = vmatprep.mubr.bf16.mxu0 %v706
      %2339 = vmatmul.mubr.bf16.gmra.mrb[0].mxu0 %v705
      %v2340 = vpop.f32.mrb[0].mxu0
      %v2341 = vadd.f32 %v2300, %v2340
      %v2342 = vpop.f32.mrb[0].mxu0
      %v2343 = vpop.f32.mrb[0].mxu0
      %v2344 = vadd.f32 %v2303, %v2343
      %v2345 = vpop.f32.mrb[0].mxu0
      %2346 = vdwg.mxu0
      %2347 = vmatprep.subr.bf16.mxu0 0
      %2348 = vmatpush1.bf16.msra.mxu0 %v1697
      %2349 = vmatprep.subr.bf16.mxu0 0
      %2350 = vmatpush1.bf16.msra.mxu0 %v1698
      %2351 = vmatprep.subr.bf16.mxu0 0
      %2352 = vmatpush1.bf16.msra.mxu0 %v1699
      %2353 = vmatprep.subr.bf16.mxu0 0
      %2354 = vmatpush1.bf16.msra.mxu0 %v1700
      %2355 = vmatprep.subr.bf16.mxu0 0
      %2356 = vmatpush1.bf16.msra.mxu0 %v1701
      %2357 = vmatprep.subr.bf16.mxu0 0
      %2358 = vmatpush1.bf16.msra.mxu0 %v1702
      %2359 = vmatprep.subr.bf16.mxu0 0
      %2360 = vmatpush1.bf16.msra.mxu0 %v1703
      %2361 = vmatprep.subr.bf16.mxu0 0
      %2362 = vmatpush1.bf16.msra.mxu0 %v1704
      %2363 = vmatprep.subr.bf16.mxu0 0
      %2364 = vmatpush1.bf16.msra.mxu0 %v1705
      %2365 = vmatprep.subr.bf16.mxu0 0
      %2366 = vmatpush1.bf16.msra.mxu0 %v1706
      %2367 = vmatprep.subr.bf16.mxu0 0
      %2368 = vmatpush1.bf16.msra.mxu0 %v1707
      %2369 = vmatprep.subr.bf16.mxu0 0
      %2370 = vmatpush1.bf16.msra.mxu0 %v1708
      %2371 = vmatprep.subr.bf16.mxu0 0
      %2372 = vmatpush1.bf16.msra.mxu0 %v1709
      %2373 = vmatprep.subr.bf16.mxu0 0
      %2374 = vmatpush1.bf16.msra.mxu0 %v1710
      %2375 = vmatprep.subr.bf16.mxu0 0
      %2376 = vmatpush1.bf16.msra.mxu0 %v1711
      %2377 = vmatprep.subr.bf16.mxu0 0
      %2378 = vmatpush1.bf16.msra.mxu0 %v1712
      %2379 = vmatprep.mubr.bf16.mxu0 %v708
      %2380 = vmatmul.mubr.bf16.gmra.mrb[0].mxu0 %v707
      %v2381 = vpop.f32.mrb[0].mxu0
      %v2382 = vadd.f32 %v2341, %v2381
      %v2383 = vpop.f32.mrb[0].mxu0
      %v2384 = vpop.f32.mrb[0].mxu0
      %v2385 = vadd.f32 %v2344, %v2384
      %v2386 = vpop.f32.mrb[0].mxu0
      %2387 = vdwg.mxu0
      %2388 = vmatprep.subr.bf16.mxu0 0
      %2389 = vmatpush1.bf16.msra.mxu0 %v1713
      %2390 = vmatprep.subr.bf16.mxu0 0
      %2391 = vmatpush1.bf16.msra.mxu0 %v1714
      %2392 = vmatprep.subr.bf16.mxu0 0
      %2393 = vmatpush1.bf16.msra.mxu0 %v1715
      %2394 = vmatprep.subr.bf16.mxu0 0
      %2395 = vmatpush1.bf16.msra.mxu0 %v1716
      %2396 = vmatprep.subr.bf16.mxu0 0
      %2397 = vmatpush1.bf16.msra.mxu0 %v1717
      %2398 = vmatprep.subr.bf16.mxu0 0
      %2399 = vmatpush1.bf16.msra.mxu0 %v1718
      %2400 = vmatprep.subr.bf16.mxu0 0
      %2401 = vmatpush1.bf16.msra.mxu0 %v1719
      %2402 = vmatprep.subr.bf16.mxu0 0
      %2403 = vmatpush1.bf16.msra.mxu0 %v1720
      %2404 = vmatprep.subr.bf16.mxu0 0
      %2405 = vmatpush1.bf16.msra.mxu0 %v1721
      %2406 = vmatprep.subr.bf16.mxu0 0
      %2407 = vmatpush1.bf16.msra.mxu0 %v1722
      %2408 = vmatprep.subr.bf16.mxu0 0
      %2409 = vmatpush1.bf16.msra.mxu0 %v1723
      %2410 = vmatprep.subr.bf16.mxu0 0
      %2411 = vmatpush1.bf16.msra.mxu0 %v1724
      %2412 = vmatprep.subr.bf16.mxu0 0
      %2413 = vmatpush1.bf16.msra.mxu0 %v1725
      %2414 = vmatprep.subr.bf16.mxu0 0
      %2415 = vmatpush1.bf16.msra.mxu0 %v1726
      %2416 = vmatprep.subr.bf16.mxu0 0
      %2417 = vmatpush1.bf16.msra.mxu0 %v1727
      %2418 = vmatprep.subr.bf16.mxu0 0
      %2419 = vmatpush1.bf16.msra.mxu0 %v1728
      %2420 = vmatprep.mubr.bf16.mxu0 %v710
      %2421 = vmatmul.mubr.bf16.gmra.mrb[0].mxu0 %v709
      %v2422 = vpop.f32.mrb[0].mxu0
      %v2423 = vadd.f32 %v2382, %v2422
      %v2424 = vpop.f32.mrb[0].mxu0
      %v2425 = vpop.f32.mrb[0].mxu0
      %v2426 = vadd.f32 %v2385, %v2425
      %v2427 = vpop.f32.mrb[0].mxu0
      %2428 = vdwg.mxu0
      %2429 = vmatprep.subr.bf16.mxu0 0
      %2430 = vmatpush1.bf16.msra.mxu0 %v1729
      %2431 = vmatprep.subr.bf16.mxu0 0
      %2432 = vmatpush1.bf16.msra.mxu0 %v1730
      %2433 = vmatprep.subr.bf16.mxu0 0
      %2434 = vmatpush1.bf16.msra.mxu0 %v1731
      %2435 = vmatprep.subr.bf16.mxu0 0
      %2436 = vmatpush1.bf16.msra.mxu0 %v1732
      %2437 = vmatprep.subr.bf16.mxu0 0
      %2438 = vmatpush1.bf16.msra.mxu0 %v1733
      %2439 = vmatprep.subr.bf16.mxu0 0
      %2440 = vmatpush1.bf16.msra.mxu0 %v1734
      %2441 = vmatprep.subr.bf16.mxu0 0
      %2442 = vmatpush1.bf16.msra.mxu0 %v1735
      %2443 = vmatprep.subr.bf16.mxu0 0
      %2444 = vmatpush1.bf16.msra.mxu0 %v1736
      %2445 = vmatprep.subr.bf16.mxu0 0
      %2446 = vmatpush1.bf16.msra.mxu0 0
      %2447 = vmatprep.subr.bf16.mxu0 0
      %2448 = vmatpush1.bf16.msra.mxu0 0
      %2449 = vmatprep.subr.bf16.mxu0 0
      %2450 = vmatpush1.bf16.msra.mxu0 0
      %2451 = vmatprep.subr.bf16.mxu0 0
      %2452 = vmatpush1.bf16.msra.mxu0 0
      %2453 = vmatprep.subr.bf16.mxu0 0
      %2454 = vmatpush1.bf16.msra.mxu0 0
      %2455 = vmatprep.subr.bf16.mxu0 0
      %2456 = vmatpush1.bf16.msra.mxu0 0
      %2457 = vmatprep.subr.bf16.mxu0 0
      %2458 = vmatpush1.bf16.msra.mxu0 0
      %2459 = vmatprep.subr.bf16.mxu0 0
      %2460 = vmatpush1.bf16.msra.mxu0 0
      %2461 = vmatprep.mubr.bf16.mxu0 0
      %2462 = vmatmul.mubr.bf16.gmra.mrb[0].mxu0 %v711
      %v2463 = vpop.f32.mrb[0].mxu0
      %v2464 = vadd.f32 %v2423, %v2463
      %v2465 = vpop.f32.mrb[0].mxu0
      %v2466 = vpop.f32.mrb[0].mxu0
      %v2467 = vadd.f32 %v2426, %v2466
      %v2468 = vpop.f32.mrb[0].mxu0
      %2469 = vdwg.mxu0
      %v2470 = vmax.f32 %v2464, 0.0
      %v2471 = vmax.f32 %v2467, 0.0
      %v2472 = vpack.c.bf16 %v2471, %v2470
      %v2474 = vunpack.c.l.b16 %v2472
      %v2475 = vunpack.c.h.b16 %v2472
      %v2476 = vpack.c.b16 %v2474, %v2474
      %v2477 = vpack.c.b16 %v2475, %v2475
      %2480 = vst [vmem:[%s175] sm:$0xf] %v2476
      %2481 = vst [vmem:[%s175 + $0x4] sm:$0xf] %v2477
      %s2482 = smul.u32 2, %s14
      %p2483 = scmp.lt.s32.totalorder %s2482, 3
      %s2484 = scalar_select %p2483, %s2482, 3
      %s2485 = smul.addr %s2484, 4
      %s2486 = scalar_lea.vmem %s3, %s2485
      // Predicated region
      $region33: #{netx_forward.5} parent=31 // pred_check
        %p2487 = pneg %p100
      $region34: #{netx_forward.5} parent=31 // pred_check_branch
        %2489 = sbr.rel (%p2487) target = $region36
      $region35: #{netx_forward.5} parent=31 // pred_region
        %s2490 = smul.u32 2, %s14
      $region36: #{netx_forward.5} parent=31 // pred_fallthru
        _
    $region32: #{netx_forward.5} parent=5 // pred_fallthru
      _
    %p2491 = scmp.le.s32.totalorder 2, %s9
    // Predicated region
    $region37: #{netx_forward.5} parent=5 // pred_check
      %p2492 = pneg %p2491
    $region38: #{netx_forward.5} parent=5 // pred_check_branch
      %2494 = sbr.rel (%p2492) target = $region40
    $region39: #{netx_forward.5} parent=5 // pred_region
      %s2495 = ssub.s32 %s9, 2
      // Predicated region
      $region41: #{netx_forward.5} parent=39 // pred_check
        %p2496 = pneg %p106
      $region42: #{netx_forward.5} parent=39 // pred_check_branch
        %2498 = sbr.rel (%p2496) target = $region44
      $region43: #{netx_forward.5} parent=39 // pred_region
        %s2499 = smul.u32 2, %s15
        %p2500 = scmp.lt.s32.totalorder %s2499, 3
        %s2501 = scalar_select %p2500, %s2499, 3
        %s2502 = smul.addr %s2501, 4
        %s2503 = scalar_lea.vmem %s3, %s2502
      $region44: #{netx_forward.5} parent=39 // pred_fallthru
        _
    $region40: #{netx_forward.5} parent=5 // pred_fallthru
      _
  $region6: #{netx_forward.5} parent=0 // loop_footer
    %s13 = sadd.s32 1, %s9
  $region7: #{netx_forward.5} parent=0 // loop_footer_branch
    %8 = sbr.rel target = $region3
  $region8: #{netx_forward.5} parent=0 // loop_exit
    _

// kernel: netx_forward.6
$region0: #{netx_forward.6}
  #allocation0 [shape = 'u32[]', space=smem, size = 0x4, offset = 0x4, fixed_abs, tag = 'smem constant byte address 0x4 - core index']
  #allocation1 [shape = 'u32[144,128]{1,0:T(1,128)}', space=vmem, size = 0x12000, scoped, tag = 'internal scratch']
  %s0 = inlined_call_operand.vmem [shape: bf16[16,3200], index: 0, kind: input, shape index: {}]
  %s1 = inlined_call_operand.vmem [shape: bf16[3200,128], index: 1, kind: input, shape index: {}]
  %s2 = inlined_call_operand.vmem [shape: f32[1,128], index: 2, kind: input, shape index: {}]
  %s3 = inlined_call_operand.vmem [shape: bf16[16,128], index: 3, kind: output, shape index: {}]
  %s4 = sld [smem:[#allocation0]]
  $region22: #{netx_forward.6} parent=0
    _
  %s6 = ssub.s32 1, %s4
  %s7 = scalar_select 0, %s6, %s4
  // Predicated region
  $region2: #{netx_forward.6} parent=0 // pred_check
    _
  $region3: #{netx_forward.6} parent=0 // pred_check_branch
    %9 = sbr.rel (0) target = $region5
  $region4: #{netx_forward.6} parent=0 // pred_region
    _
  $region5: #{netx_forward.6} parent=0 // pred_fallthru
    _
  // Predicated region
  $region6: #{netx_forward.6} parent=0 // pred_check
    _
  $region7: #{netx_forward.6} parent=0 // pred_check_branch
    %11 = sbr.rel (0) target = $region9
  $region8: #{netx_forward.6} parent=0 // pred_region
    _
  $region9: #{netx_forward.6} parent=0 // pred_fallthru
    _
  // Predicated region
  $region10: #{netx_forward.6} parent=0 // pred_check
    _
  $region11: #{netx_forward.6} parent=0 // pred_check_branch
    %13 = sbr.rel (0) target = $region13
  $region12: #{netx_forward.6} parent=0 // pred_region
    _
  $region13: #{netx_forward.6} parent=0 // pred_fallthru
    _
  %v15 = vld [vmem:[%s0] sm:$0xff]
  %v16 = vld [vmem:[%s0 + $0x8] sm:$0xff]
  %v17 = vld [vmem:[%s0 + $0x10] sm:$0xff]
  %v18 = vld [vmem:[%s0 + $0x18] sm:$0xff]
  %v19 = vld [vmem:[%s0 + $0x20] sm:$0xff]
  %v20 = vld [vmem:[%s0 + $0x28] sm:$0xff]
  %v21 = vld [vmem:[%s0 + $0x30] sm:$0xff]
  %v22 = vld [vmem:[%s0 + $0x38] sm:$0xff]
  %v23 = vld [vmem:[%s0 + $0x40] sm:$0xff]
  %v24 = vld [vmem:[%s0 + $0x48] sm:$0xff]
  %v25 = vld [vmem:[%s0 + $0x50] sm:$0xff]
  %v26 = vld [vmem:[%s0 + $0x58] sm:$0xff]
  %v27 = vld [vmem:[%s0 + $0x60] sm:$0xf]
  %v28 = vld [vmem:[%s0 + $0x64] sm:$0xff]
  %v29 = vld [vmem:[%s0 + $0x6c] sm:$0xff]
  %v30 = vld [vmem:[%s0 + $0x74] sm:$0xff]
  %v31 = vld [vmem:[%s0 + $0x7c] sm:$0xff]
  %v32 = vld [vmem:[%s0 + $0x84] sm:$0xff]
  %v33 = vld [vmem:[%s0 + $0x8c] sm:$0xff]
  %v34 = vld [vmem:[%s0 + $0x94] sm:$0xff]
  %v35 = vld [vmem:[%s0 + $0x9c] sm:$0xff]
  %v36 = vld [vmem:[%s0 + $0xa4] sm:$0xff]
  %v37 = vld [vmem:[%s0 + $0xac] sm:$0xff]
  %v38 = vld [vmem:[%s0 + $0xb4] sm:$0xff]
  %v39 = vld [vmem:[%s0 + $0xbc] sm:$0xff]
  %v40 = vld [vmem:[%s0 + $0xc4] sm:$0xf]
  %v41 = vld [vmem:[%s1] sm:$0xf]
  %v42 = vld [vmem:[%s1 + $0x4] sm:$0xf]
  %v43 = vld [vmem:[%s1 + $0x8] sm:$0xf]
  %v44 = vld [vmem:[%s1 + $0xc] sm:$0xf]
  %v45 = vld [vmem:[%s1 + $0x10] sm:$0xf]
  %v46 = vld [vmem:[%s1 + $0x14] sm:$0xf]
  %v47 = vld [vmem:[%s1 + $0x18] sm:$0xf]
  %v48 = vld [vmem:[%s1 + $0x1c] sm:$0xf]
  %v49 = vld [vmem:[%s1 + $0x20] sm:$0xf]
  %v50 = vld [vmem:[%s1 + $0x24] sm:$0xf]
  %v51 = vld [vmem:[%s1 + $0x28] sm:$0xf]
  %v52 = vld [vmem:[%s1 + $0x2c] sm:$0xf]
  %v53 = vld [vmem:[%s1 + $0x30] sm:$0xf]
  %v54 = vld [vmem:[%s1 + $0x34] sm:$0xf]
  %v55 = vld [vmem:[%s1 + $0x38] sm:$0xf]
  %v56 = vld [vmem:[%s1 + $0x3c] sm:$0xf]
  %v57 = vld [vmem:[%s1 + $0x40] sm:$0xf]
  %v58 = vld [vmem:[%s1 + $0x44] sm:$0xf]
  %v59 = vld [vmem:[%s1 + $0x48] sm:$0xf]
  %v60 = vld [vmem:[%s1 + $0x4c] sm:$0xf]
  %v61 = vld [vmem:[%s1 + $0x50] sm:$0xf]
  %v62 = vld [vmem:[%s1 + $0x54] sm:$0xf]
  %v63 = vld [vmem:[%s1 + $0x58] sm:$0xf]
  %v64 = vld [vmem:[%s1 + $0x5c] sm:$0xf]
  %v65 = vld [vmem:[%s1 + $0x60] sm:$0xf]
  %v66 = vld [vmem:[%s1 + $0x64] sm:$0xf]
  %v67 = vld [vmem:[%s1 + $0x68] sm:$0xf]
  %v68 = vld [vmem:[%s1 + $0x6c] sm:$0xf]
  %v69 = vld [vmem:[%s1 + $0x70] sm:$0xf]
  %v70 = vld [vmem:[%s1 + $0x74] sm:$0xf]
  %v71 = vld [vmem:[%s1 + $0x78] sm:$0xf]
  %v72 = vld [vmem:[%s1 + $0x7c] sm:$0xf]
  %v73 = vld [vmem:[%s1 + $0x80] sm:$0xf]
  %v74 = vld [vmem:[%s1 + $0x84] sm:$0xf]
  %v75 = vld [vmem:[%s1 + $0x88] sm:$0xf]
  %v76 = vld [vmem:[%s1 + $0x8c] sm:$0xf]
  %v77 = vld [vmem:[%s1 + $0x90] sm:$0xf]
  %v78 = vld [vmem:[%s1 + $0x94] sm:$0xf]
  %v79 = vld [vmem:[%s1 + $0x98] sm:$0xf]
  %v80 = vld [vmem:[%s1 + $0x9c] sm:$0xf]
  %v81 = vld [vmem:[%s1 + $0xa0] sm:$0xf]
  %v82 = vld [vmem:[%s1 + $0xa4] sm:$0xf]
  %v83 = vld [vmem:[%s1 + $0xa8] sm:$0xf]
  %v84 = vld [vmem:[%s1 + $0xac] sm:$0xf]
  %v85 = vld [vmem:[%s1 + $0xb0] sm:$0xf]
  %v86 = vld [vmem:[%s1 + $0xb4] sm:$0xf]
  %v87 = vld [vmem:[%s1 + $0xb8] sm:$0xf]
  %v88 = vld [vmem:[%s1 + $0xbc] sm:$0xf]
  %v89 = vld [vmem:[%s1 + $0xc0] sm:$0xf]
  %v90 = vld [vmem:[%s1 + $0xc4] sm:$0xf]
  %v91 = vld [vmem:[%s1 + $0xc8] sm:$0xf]
  %v92 = vld [vmem:[%s1 + $0xcc] sm:$0xf]
  %v93 = vld [vmem:[%s1 + $0xd0] sm:$0xf]
  %v94 = vld [vmem:[%s1 + $0xd4] sm:$0xf]
  %v95 = vld [vmem:[%s1 + $0xd8] sm:$0xf]
  %v96 = vld [vmem:[%s1 + $0xdc] sm:$0xf]
  %v97 = vld [vmem:[%s1 + $0xe0] sm:$0xf]
  %v98 = vld [vmem:[%s1 + $0xe4] sm:$0xf]
  %v99 = vld [vmem:[%s1 + $0xe8] sm:$0xf]
  %v100 = vld [vmem:[%s1 + $0xec] sm:$0xf]
  %v101 = vld [vmem:[%s1 + $0xf0] sm:$0xf]
  %v102 = vld [vmem:[%s1 + $0xf4] sm:$0xf]
  %v103 = vld [vmem:[%s1 + $0xf8] sm:$0xf]
  %v104 = vld [vmem:[%s1 + $0xfc] sm:$0xf]
  %v105 = vld [vmem:[%s1 + $0x100] sm:$0xf]
  %v106 = vld [vmem:[%s1 + $0x104] sm:$0xf]
  %v107 = vld [vmem:[%s1 + $0x108] sm:$0xf]
  %v108 = vld [vmem:[%s1 + $0x10c] sm:$0xf]
  %v109 = vld [vmem:[%s1 + $0x110] sm:$0xf]
  %v110 = vld [vmem:[%s1 + $0x114] sm:$0xf]
  %v111 = vld [vmem:[%s1 + $0x118] sm:$0xf]
  %v112 = vld [vmem:[%s1 + $0x11c] sm:$0xf]
  %v113 = vld [vmem:[%s1 + $0x120] sm:$0xf]
  %v114 = vld [vmem:[%s1 + $0x124] sm:$0xf]
  %v115 = vld [vmem:[%s1 + $0x128] sm:$0xf]
  %v116 = vld [vmem:[%s1 + $0x12c] sm:$0xf]
  %v117 = vld [vmem:[%s1 + $0x130] sm:$0xf]
  %v118 = vld [vmem:[%s1 + $0x134] sm:$0xf]
  %v119 = vld [vmem:[%s1 + $0x138] sm:$0xf]
  %v120 = vld [vmem:[%s1 + $0x13c] sm:$0xf]
  %v121 = vld [vmem:[%s1 + $0x140] sm:$0xf]
  %v122 = vld [vmem:[%s1 + $0x144] sm:$0xf]
  %v123 = vld [vmem:[%s1 + $0x148] sm:$0xf]
  %v124 = vld [vmem:[%s1 + $0x14c] sm:$0xf]
  %v125 = vld [vmem:[%s1 + $0x150] sm:$0xf]
  %v126 = vld [vmem:[%s1 + $0x154] sm:$0xf]
  %v127 = vld [vmem:[%s1 + $0x158] sm:$0xf]
  %v128 = vld [vmem:[%s1 + $0x15c] sm:$0xf]
  %v129 = vld [vmem:[%s1 + $0x160] sm:$0xf]
  %v130 = vld [vmem:[%s1 + $0x164] sm:$0xf]
  %v131 = vld [vmem:[%s1 + $0x168] sm:$0xf]
  %v132 = vld [vmem:[%s1 + $0x16c] sm:$0xf]
  %v133 = vld [vmem:[%s1 + $0x170] sm:$0xf]
  %v134 = vld [vmem:[%s1 + $0x174] sm:$0xf]
  %v135 = vld [vmem:[%s1 + $0x178] sm:$0xf]
  %v136 = vld [vmem:[%s1 + $0x17c] sm:$0xf]
  %v137 = vld [vmem:[%s1 + $0x180] sm:$0xf]
  %v138 = vld [vmem:[%s1 + $0x184] sm:$0xf]
  %v139 = vld [vmem:[%s1 + $0x188] sm:$0xf]
  %v140 = vld [vmem:[%s1 + $0x18c] sm:$0xf]
  %v141 = vld [vmem:[%s1 + $0x190] sm:$0xf]
  %v142 = vld [vmem:[%s1 + $0x194] sm:$0xf]
  %v143 = vld [vmem:[%s1 + $0x198] sm:$0xf]
  %v144 = vld [vmem:[%s1 + $0x19c] sm:$0xf]
  %v145 = vld [vmem:[%s1 + $0x1a0] sm:$0xf]
  %v146 = vld [vmem:[%s1 + $0x1a4] sm:$0xf]
  %v147 = vld [vmem:[%s1 + $0x1a8] sm:$0xf]
  %v148 = vld [vmem:[%s1 + $0x1ac] sm:$0xf]
  %v149 = vld [vmem:[%s1 + $0x1b0] sm:$0xf]
  %v150 = vld [vmem:[%s1 + $0x1b4] sm:$0xf]
  %v151 = vld [vmem:[%s1 + $0x1b8] sm:$0xf]
  %v152 = vld [vmem:[%s1 + $0x1bc] sm:$0xf]
  %v153 = vld [vmem:[%s1 + $0x1c0] sm:$0xf]
  %v154 = vld [vmem:[%s1 + $0x1c4] sm:$0xf]
  %v155 = vld [vmem:[%s1 + $0x1c8] sm:$0xf]
  %v156 = vld [vmem:[%s1 + $0x1cc] sm:$0xf]
  %v157 = vld [vmem:[%s1 + $0x1d0] sm:$0xf]
  %v158 = vld [vmem:[%s1 + $0x1d4] sm:$0xf]
  %v159 = vld [vmem:[%s1 + $0x1d8] sm:$0xf]
  %v160 = vld [vmem:[%s1 + $0x1dc] sm:$0xf]
  %v161 = vld [vmem:[%s1 + $0x1e0] sm:$0xf]
  %v162 = vld [vmem:[%s1 + $0x1e4] sm:$0xf]
  %v163 = vld [vmem:[%s1 + $0x1e8] sm:$0xf]
  %v164 = vld [vmem:[%s1 + $0x1ec] sm:$0xf]
  %v165 = vld [vmem:[%s1 + $0x1f0] sm:$0xf]
  %v166 = vld [vmem:[%s1 + $0x1f4] sm:$0xf]
  %v167 = vld [vmem:[%s1 + $0x1f8] sm:$0xf]
  %v168 = vld [vmem:[%s1 + $0x1fc] sm:$0xf]
  %v169 = vld [vmem:[%s1 + $0x200] sm:$0xf]
  %v170 = vld [vmem:[%s1 + $0x204] sm:$0xf]
  %v171 = vld [vmem:[%s1 + $0x208] sm:$0xf]
  %v172 = vld [vmem:[%s1 + $0x20c] sm:$0xf]
  %v173 = vld [vmem:[%s1 + $0x210] sm:$0xf]
  %v174 = vld [vmem:[%s1 + $0x214] sm:$0xf]
  %v175 = vld [vmem:[%s1 + $0x218] sm:$0xf]
  %v176 = vld [vmem:[%s1 + $0x21c] sm:$0xf]
  %v177 = vld [vmem:[%s1 + $0x220] sm:$0xf]
  %v178 = vld [vmem:[%s1 + $0x224] sm:$0xf]
  %v179 = vld [vmem:[%s1 + $0x228] sm:$0xf]
  %v180 = vld [vmem:[%s1 + $0x22c] sm:$0xf]
  %v181 = vld [vmem:[%s1 + $0x230] sm:$0xf]
  %v182 = vld [vmem:[%s1 + $0x234] sm:$0xf]
  %v183 = vld [vmem:[%s1 + $0x238] sm:$0xf]
  %v184 = vld [vmem:[%s1 + $0x23c] sm:$0xf]
  %v185 = vld [vmem:[%s1 + $0x240] sm:$0xf]
  %v186 = vld [vmem:[%s1 + $0x244] sm:$0xf]
  %v187 = vld [vmem:[%s1 + $0x248] sm:$0xf]
  %v188 = vld [vmem:[%s1 + $0x24c] sm:$0xf]
  %v189 = vld [vmem:[%s1 + $0x250] sm:$0xf]
  %v190 = vld [vmem:[%s1 + $0x254] sm:$0xf]
  %v191 = vld [vmem:[%s1 + $0x258] sm:$0xf]
  %v192 = vld [vmem:[%s1 + $0x25c] sm:$0xf]
  %v193 = vld [vmem:[%s1 + $0x260] sm:$0xf]
  %v194 = vld [vmem:[%s1 + $0x264] sm:$0xf]
  %v195 = vld [vmem:[%s1 + $0x268] sm:$0xf]
  %v196 = vld [vmem:[%s1 + $0x26c] sm:$0xf]
  %v197 = vld [vmem:[%s1 + $0x270] sm:$0xf]
  %v198 = vld [vmem:[%s1 + $0x274] sm:$0xf]
  %v199 = vld [vmem:[%s1 + $0x278] sm:$0xf]
  %v200 = vld [vmem:[%s1 + $0x27c] sm:$0xf]
  %v201 = vld [vmem:[%s1 + $0x280] sm:$0xf]
  %v202 = vld [vmem:[%s1 + $0x284] sm:$0xf]
  %v203 = vld [vmem:[%s1 + $0x288] sm:$0xf]
  %v204 = vld [vmem:[%s1 + $0x28c] sm:$0xf]
  %v205 = vld [vmem:[%s1 + $0x290] sm:$0xf]
  %v206 = vld [vmem:[%s1 + $0x294] sm:$0xf]
  %v207 = vld [vmem:[%s1 + $0x298] sm:$0xf]
  %v208 = vld [vmem:[%s1 + $0x29c] sm:$0xf]
  %v209 = vld [vmem:[%s1 + $0x2a0] sm:$0xf]
  %v210 = vld [vmem:[%s1 + $0x2a4] sm:$0xf]
  %v211 = vld [vmem:[%s1 + $0x2a8] sm:$0xf]
  %v212 = vld [vmem:[%s1 + $0x2ac] sm:$0xf]
  %v213 = vld [vmem:[%s1 + $0x2b0] sm:$0xf]
  %v214 = vld [vmem:[%s1 + $0x2b4] sm:$0xf]
  %v215 = vld [vmem:[%s1 + $0x2b8] sm:$0xf]
  %v216 = vld [vmem:[%s1 + $0x2bc] sm:$0xf]
  %v217 = vld [vmem:[%s1 + $0x2c0] sm:$0xf]
  %v218 = vld [vmem:[%s1 + $0x2c4] sm:$0xf]
  %v219 = vld [vmem:[%s1 + $0x2c8] sm:$0xf]
  %v220 = vld [vmem:[%s1 + $0x2cc] sm:$0xf]
  %v221 = vld [vmem:[%s1 + $0x2d0] sm:$0xf]
  %v222 = vld [vmem:[%s1 + $0x2d4] sm:$0xf]
  %v223 = vld [vmem:[%s1 + $0x2d8] sm:$0xf]
  %v224 = vld [vmem:[%s1 + $0x2dc] sm:$0xf]
  %v225 = vld [vmem:[%s1 + $0x2e0] sm:$0xf]
  %v226 = vld [vmem:[%s1 + $0x2e4] sm:$0xf]
  %v227 = vld [vmem:[%s1 + $0x2e8] sm:$0xf]
  %v228 = vld [vmem:[%s1 + $0x2ec] sm:$0xf]
  %v229 = vld [vmem:[%s1 + $0x2f0] sm:$0xf]
  %v230 = vld [vmem:[%s1 + $0x2f4] sm:$0xf]
  %v231 = vld [vmem:[%s1 + $0x2f8] sm:$0xf]
  %v232 = vld [vmem:[%s1 + $0x2fc] sm:$0xf]
  %v233 = vld [vmem:[%s1 + $0x300] sm:$0xf]
  %v234 = vld [vmem:[%s1 + $0x304] sm:$0xf]
  %v235 = vld [vmem:[%s1 + $0x308] sm:$0xf]
  %v236 = vld [vmem:[%s1 + $0x30c] sm:$0xf]
  %v237 = vld [vmem:[%s1 + $0x310] sm:$0xf]
  %v238 = vld [vmem:[%s1 + $0x314] sm:$0xf]
  %v239 = vld [vmem:[%s1 + $0x318] sm:$0xf]
  %v240 = vld [vmem:[%s1 + $0x31c] sm:$0xf]
  %v241 = vld [vmem:[%s1 + $0x320] sm:$0xf]
  %v242 = vld [vmem:[%s1 + $0x324] sm:$0xf]
  %v243 = vld [vmem:[%s1 + $0x328] sm:$0xf]
  %v244 = vld [vmem:[%s1 + $0x32c] sm:$0xf]
  %v245 = vld [vmem:[%s1 + $0x330] sm:$0xf]
  %v246 = vld [vmem:[%s1 + $0x334] sm:$0xf]
  %v247 = vld [vmem:[%s1 + $0x338] sm:$0xf]
  %v248 = vld [vmem:[%s1 + $0x33c] sm:$0xf]
  %v249 = vld [vmem:[%s1 + $0x340] sm:$0xf]
  %v250 = vld [vmem:[%s1 + $0x344] sm:$0xf]
  %v251 = vld [vmem:[%s1 + $0x348] sm:$0xf]
  %v252 = vld [vmem:[%s1 + $0x34c] sm:$0xf]
  %v253 = vld [vmem:[%s1 + $0x350] sm:$0xf]
  %v254 = vld [vmem:[%s1 + $0x354] sm:$0xf]
  %v255 = vld [vmem:[%s1 + $0x358] sm:$0xf]
  %v256 = vld [vmem:[%s1 + $0x35c] sm:$0xf]
  %v257 = vld [vmem:[%s1 + $0x360] sm:$0xf]
  %v258 = vld [vmem:[%s1 + $0x364] sm:$0xf]
  %v259 = vld [vmem:[%s1 + $0x368] sm:$0xf]
  %v260 = vld [vmem:[%s1 + $0x36c] sm:$0xf]
  %v261 = vld [vmem:[%s1 + $0x370] sm:$0xf]
  %v262 = vld [vmem:[%s1 + $0x374] sm:$0xf]
  %v263 = vld [vmem:[%s1 + $0x378] sm:$0xf]
  %v264 = vld [vmem:[%s1 + $0x37c] sm:$0xf]
  %v265 = vld [vmem:[%s1 + $0x380] sm:$0xf]
  %v266 = vld [vmem:[%s1 + $0x384] sm:$0xf]
  %v267 = vld [vmem:[%s1 + $0x388] sm:$0xf]
  %v268 = vld [vmem:[%s1 + $0x38c] sm:$0xf]
  %v269 = vld [vmem:[%s1 + $0x390] sm:$0xf]
  %v270 = vld [vmem:[%s1 + $0x394] sm:$0xf]
  %v271 = vld [vmem:[%s1 + $0x398] sm:$0xf]
  %v272 = vld [vmem:[%s1 + $0x39c] sm:$0xf]
  %v273 = vld [vmem:[%s1 + $0x3a0] sm:$0xf]
  %v274 = vld [vmem:[%s1 + $0x3a4] sm:$0xf]
  %v275 = vld [vmem:[%s1 + $0x3a8] sm:$0xf]
  %v276 = vld [vmem:[%s1 + $0x3ac] sm:$0xf]
  %v277 = vld [vmem:[%s1 + $0x3b0] sm:$0xf]
  %v278 = vld [vmem:[%s1 + $0x3b4] sm:$0xf]
  %v279 = vld [vmem:[%s1 + $0x3b8] sm:$0xf]
  %v280 = vld [vmem:[%s1 + $0x3bc] sm:$0xf]
  %v281 = vld [vmem:[%s1 + $0x3c0] sm:$0xf]
  %v282 = vld [vmem:[%s1 + $0x3c4] sm:$0xf]
  %v283 = vld [vmem:[%s1 + $0x3c8] sm:$0xf]
  %v284 = vld [vmem:[%s1 + $0x3cc] sm:$0xf]
  %v285 = vld [vmem:[%s1 + $0x3d0] sm:$0xf]
  %v286 = vld [vmem:[%s1 + $0x3d4] sm:$0xf]
  %v287 = vld [vmem:[%s1 + $0x3d8] sm:$0xf]
  %v288 = vld [vmem:[%s1 + $0x3dc] sm:$0xf]
  %v289 = vld [vmem:[%s1 + $0x3e0] sm:$0xf]
  %v290 = vld [vmem:[%s1 + $0x3e4] sm:$0xf]
  %v291 = vld [vmem:[%s1 + $0x3e8] sm:$0xf]
  %v292 = vld [vmem:[%s1 + $0x3ec] sm:$0xf]
  %v293 = vld [vmem:[%s1 + $0x3f0] sm:$0xf]
  %v294 = vld [vmem:[%s1 + $0x3f4] sm:$0xf]
  %v295 = vld [vmem:[%s1 + $0x3f8] sm:$0xf]
  %v296 = vld [vmem:[%s1 + $0x3fc] sm:$0xf]
  %v297 = vld [vmem:[%s1 + $0x400] sm:$0xf]
  %v298 = vld [vmem:[%s1 + $0x404] sm:$0xf]
  %v299 = vld [vmem:[%s1 + $0x408] sm:$0xf]
  %v300 = vld [vmem:[%s1 + $0x40c] sm:$0xf]
  %v301 = vld [vmem:[%s1 + $0x410] sm:$0xf]
  %v302 = vld [vmem:[%s1 + $0x414] sm:$0xf]
  %v303 = vld [vmem:[%s1 + $0x418] sm:$0xf]
  %v304 = vld [vmem:[%s1 + $0x41c] sm:$0xf]
  %v305 = vld [vmem:[%s1 + $0x420] sm:$0xf]
  %v306 = vld [vmem:[%s1 + $0x424] sm:$0xf]
  %v307 = vld [vmem:[%s1 + $0x428] sm:$0xf]
  %v308 = vld [vmem:[%s1 + $0x42c] sm:$0xf]
  %v309 = vld [vmem:[%s1 + $0x430] sm:$0xf]
  %v310 = vld [vmem:[%s1 + $0x434] sm:$0xf]
  %v311 = vld [vmem:[%s1 + $0x438] sm:$0xf]
  %v312 = vld [vmem:[%s1 + $0x43c] sm:$0xf]
  %v313 = vld [vmem:[%s1 + $0x440] sm:$0xf]
  %v314 = vld [vmem:[%s1 + $0x444] sm:$0xf]
  %v315 = vld [vmem:[%s1 + $0x448] sm:$0xf]
  %v316 = vld [vmem:[%s1 + $0x44c] sm:$0xf]
  %v317 = vld [vmem:[%s1 + $0x450] sm:$0xf]
  %v318 = vld [vmem:[%s1 + $0x454] sm:$0xf]
  %v319 = vld [vmem:[%s1 + $0x458] sm:$0xf]
  %v320 = vld [vmem:[%s1 + $0x45c] sm:$0xf]
  %v321 = vld [vmem:[%s1 + $0x460] sm:$0xf]
  %v322 = vld [vmem:[%s1 + $0x464] sm:$0xf]
  %v323 = vld [vmem:[%s1 + $0x468] sm:$0xf]
  %v324 = vld [vmem:[%s1 + $0x46c] sm:$0xf]
  %v325 = vld [vmem:[%s1 + $0x470] sm:$0xf]
  %v326 = vld [vmem:[%s1 + $0x474] sm:$0xf]
  %v327 = vld [vmem:[%s1 + $0x478] sm:$0xf]
  %v328 = vld [vmem:[%s1 + $0x47c] sm:$0xf]
  %v329 = vld [vmem:[%s1 + $0x480] sm:$0xf]
  %v330 = vld [vmem:[%s1 + $0x484] sm:$0xf]
  %v331 = vld [vmem:[%s1 + $0x488] sm:$0xf]
  %v332 = vld [vmem:[%s1 + $0x48c] sm:$0xf]
  %v333 = vld [vmem:[%s1 + $0x490] sm:$0xf]
  %v334 = vld [vmem:[%s1 + $0x494] sm:$0xf]
  %v335 = vld [vmem:[%s1 + $0x498] sm:$0xf]
  %v336 = vld [vmem:[%s1 + $0x49c] sm:$0xf]
  %v337 = vld [vmem:[%s1 + $0x4a0] sm:$0xf]
  %v338 = vld [vmem:[%s1 + $0x4a4] sm:$0xf]
  %v339 = vld [vmem:[%s1 + $0x4a8] sm:$0xf]
  %v340 = vld [vmem:[%s1 + $0x4ac] sm:$0xf]
  %v341 = vld [vmem:[%s1 + $0x4b0] sm:$0xf]
  %v342 = vld [vmem:[%s1 + $0x4b4] sm:$0xf]
  %v343 = vld [vmem:[%s1 + $0x4b8] sm:$0xf]
  %v344 = vld [vmem:[%s1 + $0x4bc] sm:$0xf]
  %v345 = vld [vmem:[%s1 + $0x4c0] sm:$0xf]
  %v346 = vld [vmem:[%s1 + $0x4c4] sm:$0xf]
  %v347 = vld [vmem:[%s1 + $0x4c8] sm:$0xf]
  %v348 = vld [vmem:[%s1 + $0x4cc] sm:$0xf]
  %v349 = vld [vmem:[%s1 + $0x4d0] sm:$0xf]
  %v350 = vld [vmem:[%s1 + $0x4d4] sm:$0xf]
  %v351 = vld [vmem:[%s1 + $0x4d8] sm:$0xf]
  %v352 = vld [vmem:[%s1 + $0x4dc] sm:$0xf]
  %v353 = vld [vmem:[%s1 + $0x4e0] sm:$0xf]
  %v354 = vld [vmem:[%s1 + $0x4e4] sm:$0xf]
  %v355 = vld [vmem:[%s1 + $0x4e8] sm:$0xf]
  %v356 = vld [vmem:[%s1 + $0x4ec] sm:$0xf]
  %v357 = vld [vmem:[%s1 + $0x4f0] sm:$0xf]
  %v358 = vld [vmem:[%s1 + $0x4f4] sm:$0xf]
  %v359 = vld [vmem:[%s1 + $0x4f8] sm:$0xf]
  %v360 = vld [vmem:[%s1 + $0x4fc] sm:$0xf]
  %v361 = vld [vmem:[%s1 + $0x500] sm:$0xf]
  %v362 = vld [vmem:[%s1 + $0x504] sm:$0xf]
  %v363 = vld [vmem:[%s1 + $0x508] sm:$0xf]
  %v364 = vld [vmem:[%s1 + $0x50c] sm:$0xf]
  %v365 = vld [vmem:[%s1 + $0x510] sm:$0xf]
  %v366 = vld [vmem:[%s1 + $0x514] sm:$0xf]
  %v367 = vld [vmem:[%s1 + $0x518] sm:$0xf]
  %v368 = vld [vmem:[%s1 + $0x51c] sm:$0xf]
  %v369 = vld [vmem:[%s1 + $0x520] sm:$0xf]
  %v370 = vld [vmem:[%s1 + $0x524] sm:$0xf]
  %v371 = vld [vmem:[%s1 + $0x528] sm:$0xf]
  %v372 = vld [vmem:[%s1 + $0x52c] sm:$0xf]
  %v373 = vld [vmem:[%s1 + $0x530] sm:$0xf]
  %v374 = vld [vmem:[%s1 + $0x534] sm:$0xf]
  %v375 = vld [vmem:[%s1 + $0x538] sm:$0xf]
  %v376 = vld [vmem:[%s1 + $0x53c] sm:$0xf]
  %v377 = vld [vmem:[%s1 + $0x540] sm:$0xf]
  %v378 = vld [vmem:[%s1 + $0x544] sm:$0xf]
  %v379 = vld [vmem:[%s1 + $0x548] sm:$0xf]
  %v380 = vld [vmem:[%s1 + $0x54c] sm:$0xf]
  %v381 = vld [vmem:[%s1 + $0x550] sm:$0xf]
  %v382 = vld [vmem:[%s1 + $0x554] sm:$0xf]
  %v383 = vld [vmem:[%s1 + $0x558] sm:$0xf]
  %v384 = vld [vmem:[%s1 + $0x55c] sm:$0xf]
  %v385 = vld [vmem:[%s1 + $0x560] sm:$0xf]
  %v386 = vld [vmem:[%s1 + $0x564] sm:$0xf]
  %v387 = vld [vmem:[%s1 + $0x568] sm:$0xf]
  %v388 = vld [vmem:[%s1 + $0x56c] sm:$0xf]
  %v389 = vld [vmem:[%s1 + $0x570] sm:$0xf]
  %v390 = vld [vmem:[%s1 + $0x574] sm:$0xf]
  %v391 = vld [vmem:[%s1 + $0x578] sm:$0xf]
  %v392 = vld [vmem:[%s1 + $0x57c] sm:$0xf]
  %v393 = vld [vmem:[%s1 + $0x580] sm:$0xf]
  %v394 = vld [vmem:[%s1 + $0x584] sm:$0xf]
  %v395 = vld [vmem:[%s1 + $0x588] sm:$0xf]
  %v396 = vld [vmem:[%s1 + $0x58c] sm:$0xf]
  %v397 = vld [vmem:[%s1 + $0x590] sm:$0xf]
  %v398 = vld [vmem:[%s1 + $0x594] sm:$0xf]
  %v399 = vld [vmem:[%s1 + $0x598] sm:$0xf]
  %v400 = vld [vmem:[%s1 + $0x59c] sm:$0xf]
  %v401 = vld [vmem:[%s1 + $0x5a0] sm:$0xf]
  %v402 = vld [vmem:[%s1 + $0x5a4] sm:$0xf]
  %v403 = vld [vmem:[%s1 + $0x5a8] sm:$0xf]
  %v404 = vld [vmem:[%s1 + $0x5ac] sm:$0xf]
  %v405 = vld [vmem:[%s1 + $0x5b0] sm:$0xf]
  %v406 = vld [vmem:[%s1 + $0x5b4] sm:$0xf]
  %v407 = vld [vmem:[%s1 + $0x5b8] sm:$0xf]
  %v408 = vld [vmem:[%s1 + $0x5bc] sm:$0xf]
  %v409 = vld [vmem:[%s1 + $0x5c0] sm:$0xf]
  %v410 = vld [vmem:[%s1 + $0x5c4] sm:$0xf]
  %v411 = vld [vmem:[%s1 + $0x5c8] sm:$0xf]
  %v412 = vld [vmem:[%s1 + $0x5cc] sm:$0xf]
  %v413 = vld [vmem:[%s1 + $0x5d0] sm:$0xf]
  %v414 = vld [vmem:[%s1 + $0x5d4] sm:$0xf]
  %v415 = vld [vmem:[%s1 + $0x5d8] sm:$0xf]
  %v416 = vld [vmem:[%s1 + $0x5dc] sm:$0xf]
  %v417 = vld [vmem:[%s1 + $0x5e0] sm:$0xf]
  %v418 = vld [vmem:[%s1 + $0x5e4] sm:$0xf]
  %v419 = vld [vmem:[%s1 + $0x5e8] sm:$0xf]
  %v420 = vld [vmem:[%s1 + $0x5ec] sm:$0xf]
  %v421 = vld [vmem:[%s1 + $0x5f0] sm:$0xf]
  %v422 = vld [vmem:[%s1 + $0x5f4] sm:$0xf]
  %v423 = vld [vmem:[%s1 + $0x5f8] sm:$0xf]
  %v424 = vld [vmem:[%s1 + $0x5fc] sm:$0xf]
  %v425 = vld [vmem:[%s1 + $0x600] sm:$0xf]
  %v426 = vld [vmem:[%s1 + $0x604] sm:$0xf]
  %v427 = vld [vmem:[%s1 + $0x608] sm:$0xf]
  %v428 = vld [vmem:[%s1 + $0x60c] sm:$0xf]
  %v429 = vld [vmem:[%s1 + $0x610] sm:$0xf]
  %v430 = vld [vmem:[%s1 + $0x614] sm:$0xf]
  %v431 = vld [vmem:[%s1 + $0x618] sm:$0xf]
  %v432 = vld [vmem:[%s1 + $0x61c] sm:$0xf]
  %v433 = vld [vmem:[%s1 + $0x620] sm:$0xf]
  %v434 = vld [vmem:[%s1 + $0x624] sm:$0xf]
  %v435 = vld [vmem:[%s1 + $0x628] sm:$0xf]
  %v436 = vld [vmem:[%s1 + $0x62c] sm:$0xf]
  %v437 = vld [vmem:[%s1 + $0x630] sm:$0xf]
  %v438 = vld [vmem:[%s1 + $0x634] sm:$0xf]
  %v439 = vld [vmem:[%s1 + $0x638] sm:$0xf]
  %v440 = vld [vmem:[%s1 + $0x63c] sm:$0xf]
  %v441 = vld [vmem:[%s2] sm:$0x1]
  %v443 = vlaneseq
  %v444 = vshrl.u32 %v443, 7
  %v445 = vsub.s32 0, %v444
  %v446 = vrot.slane %v441, %v445
  %v474 = vunpack.c.l.b16 %v15
  %v475 = vunpack.c.h.b16 %v15
  %v476 = vunpack.c.l.b16 %v16
  %v477 = vunpack.c.h.b16 %v16
  %v478 = vunpack.c.l.b16 %v17
  %v479 = vunpack.c.h.b16 %v17
  %v480 = vunpack.c.l.b16 %v18
  %v481 = vunpack.c.h.b16 %v18
  %v482 = vunpack.c.l.b16 %v19
  %v483 = vunpack.c.h.b16 %v19
  %v484 = vunpack.c.l.b16 %v20
  %v485 = vunpack.c.h.b16 %v20
  %v486 = vunpack.c.l.b16 %v21
  %v487 = vunpack.c.h.b16 %v21
  %v488 = vunpack.c.l.b16 %v22
  %v489 = vunpack.c.h.b16 %v22
  %v490 = vunpack.c.l.b16 %v23
  %v491 = vunpack.c.h.b16 %v23
  %v492 = vunpack.c.l.b16 %v24
  %v493 = vunpack.c.h.b16 %v24
  %v494 = vunpack.c.l.b16 %v25
  %v495 = vunpack.c.h.b16 %v25
  %v496 = vunpack.c.l.b16 %v26
  %v497 = vunpack.c.h.b16 %v26
  %v498 = vunpack.c.l.b16 %v27
  %v499 = vunpack.c.l.b16 %v28
  %v500 = vunpack.c.h.b16 %v28
  %v501 = vunpack.c.l.b16 %v29
  %v502 = vunpack.c.h.b16 %v29
  %v503 = vunpack.c.l.b16 %v30
  %v504 = vunpack.c.h.b16 %v30
  %v505 = vunpack.c.l.b16 %v31
  %v506 = vunpack.c.h.b16 %v31
  %v507 = vunpack.c.l.b16 %v32
  %v508 = vunpack.c.h.b16 %v32
  %v509 = vunpack.c.l.b16 %v33
  %v510 = vunpack.c.h.b16 %v33
  %v511 = vunpack.c.l.b16 %v34
  %v512 = vunpack.c.h.b16 %v34
  %v513 = vunpack.c.l.b16 %v35
  %v514 = vunpack.c.h.b16 %v35
  %v515 = vunpack.c.l.b16 %v36
  %v516 = vunpack.c.h.b16 %v36
  %v517 = vunpack.c.l.b16 %v37
  %v518 = vunpack.c.h.b16 %v37
  %v519 = vunpack.c.l.b16 %v38
  %v520 = vunpack.c.h.b16 %v38
  %v521 = vunpack.c.l.b16 %v39
  %v522 = vunpack.c.h.b16 %v39
  %v523 = vunpack.c.l.b16 %v40
  %v524 = vpack.c.b16 %v499, %v474
  %v525 = vpack.c.b16 %v500, %v475
  %v526 = vpack.c.b16 %v501, %v476
  %v527 = vpack.c.b16 %v502, %v477
  %v528 = vpack.c.b16 %v503, %v478
  %v529 = vpack.c.b16 %v504, %v479
  %v530 = vpack.c.b16 %v505, %v480
  %v531 = vpack.c.b16 %v506, %v481
  %v532 = vpack.c.b16 %v507, %v482
  %v533 = vpack.c.b16 %v508, %v483
  %v534 = vpack.c.b16 %v509, %v484
  %v535 = vpack.c.b16 %v510, %v485
  %v536 = vpack.c.b16 %v511, %v486
  %v537 = vpack.c.b16 %v512, %v487
  %v538 = vpack.c.b16 %v513, %v488
  %v539 = vpack.c.b16 %v514, %v489
  %v540 = vpack.c.b16 %v515, %v490
  %v541 = vpack.c.b16 %v516, %v491
  %v542 = vpack.c.b16 %v517, %v492
  %v543 = vpack.c.b16 %v518, %v493
  %v544 = vpack.c.b16 %v519, %v494
  %v545 = vpack.c.b16 %v520, %v495
  %v546 = vpack.c.b16 %v521, %v496
  %v547 = vpack.c.b16 %v522, %v497
  %v548 = vpack.c.b16 %v523, %v498
  %v974 = vunpack.c.l.b16 %v41
  %v975 = vunpack.c.l.b16 %v42
  %v976 = vunpack.c.l.b16 %v43
  %v977 = vunpack.c.l.b16 %v44
  %v978 = vunpack.c.l.b16 %v45
  %v979 = vunpack.c.l.b16 %v46
  %v980 = vunpack.c.l.b16 %v47
  %v981 = vunpack.c.l.b16 %v48
  %v982 = vunpack.c.l.b16 %v49
  %v983 = vunpack.c.l.b16 %v50
  %v984 = vunpack.c.l.b16 %v51
  %v985 = vunpack.c.l.b16 %v52
  %v986 = vunpack.c.l.b16 %v53
  %v987 = vunpack.c.l.b16 %v54
  %v988 = vunpack.c.l.b16 %v55
  %v989 = vunpack.c.l.b16 %v56
  %v990 = vunpack.c.l.b16 %v57
  %v991 = vunpack.c.l.b16 %v58
  %v992 = vunpack.c.l.b16 %v59
  %v993 = vunpack.c.l.b16 %v60
  %v994 = vunpack.c.l.b16 %v61
  %v995 = vunpack.c.l.b16 %v62
  %v996 = vunpack.c.l.b16 %v63
  %v997 = vunpack.c.l.b16 %v64
  %v998 = vunpack.c.l.b16 %v65
  %v999 = vunpack.c.l.b16 %v66
  %v1000 = vunpack.c.l.b16 %v67
  %v1001 = vunpack.c.l.b16 %v68
  %v1002 = vunpack.c.l.b16 %v69
  %v1003 = vunpack.c.l.b16 %v70
  %v1004 = vunpack.c.l.b16 %v71
  %v1005 = vunpack.c.l.b16 %v72
  %v1006 = vunpack.c.l.b16 %v73
  %v1007 = vunpack.c.l.b16 %v74
  %v1008 = vunpack.c.l.b16 %v75
  %v1009 = vunpack.c.l.b16 %v76
  %v1010 = vunpack.c.l.b16 %v77
  %v1011 = vunpack.c.l.b16 %v78
  %v1012 = vunpack.c.l.b16 %v79
  %v1013 = vunpack.c.l.b16 %v80
  %v1014 = vunpack.c.l.b16 %v81
  %v1015 = vunpack.c.l.b16 %v82
  %v1016 = vunpack.c.l.b16 %v83
  %v1017 = vunpack.c.l.b16 %v84
  %v1018 = vunpack.c.l.b16 %v85
  %v1019 = vunpack.c.l.b16 %v86
  %v1020 = vunpack.c.l.b16 %v87
  %v1021 = vunpack.c.l.b16 %v88
  %v1022 = vunpack.c.l.b16 %v89
  %v1023 = vunpack.c.l.b16 %v90
  %v1024 = vunpack.c.l.b16 %v91
  %v1025 = vunpack.c.l.b16 %v92
  %v1026 = vunpack.c.l.b16 %v93
  %v1027 = vunpack.c.l.b16 %v94
  %v1028 = vunpack.c.l.b16 %v95
  %v1029 = vunpack.c.l.b16 %v96
  %v1030 = vunpack.c.l.b16 %v97
  %v1031 = vunpack.c.l.b16 %v98
  %v1032 = vunpack.c.l.b16 %v99
  %v1033 = vunpack.c.l.b16 %v100
  %v1034 = vunpack.c.l.b16 %v101
  %v1035 = vunpack.c.l.b16 %v102
  %v1036 = vunpack.c.l.b16 %v103
  %v1037 = vunpack.c.l.b16 %v104
  %v1038 = vunpack.c.l.b16 %v105
  %v1039 = vunpack.c.l.b16 %v106
  %v1040 = vunpack.c.l.b16 %v107
  %v1041 = vunpack.c.l.b16 %v108
  %v1042 = vunpack.c.l.b16 %v109
  %v1043 = vunpack.c.l.b16 %v110
  %v1044 = vunpack.c.l.b16 %v111
  %v1045 = vunpack.c.l.b16 %v112
  %v1046 = vunpack.c.l.b16 %v113
  %v1047 = vunpack.c.l.b16 %v114
  %v1048 = vunpack.c.l.b16 %v115
  %v1049 = vunpack.c.l.b16 %v116
  %v1050 = vunpack.c.l.b16 %v117
  %v1051 = vunpack.c.l.b16 %v118
  %v1052 = vunpack.c.l.b16 %v119
  %v1053 = vunpack.c.l.b16 %v120
  %v1054 = vunpack.c.l.b16 %v121
  %v1055 = vunpack.c.l.b16 %v122
  %v1056 = vunpack.c.l.b16 %v123
  %v1057 = vunpack.c.l.b16 %v124
  %v1058 = vunpack.c.l.b16 %v125
  %v1059 = vunpack.c.l.b16 %v126
  %v1060 = vunpack.c.l.b16 %v127
  %v1061 = vunpack.c.l.b16 %v128
  %v1062 = vunpack.c.l.b16 %v129
  %v1063 = vunpack.c.l.b16 %v130
  %v1064 = vunpack.c.l.b16 %v131
  %v1065 = vunpack.c.l.b16 %v132
  %v1066 = vunpack.c.l.b16 %v133
  %v1067 = vunpack.c.l.b16 %v134
  %v1068 = vunpack.c.l.b16 %v135
  %v1069 = vunpack.c.l.b16 %v136
  %v1070 = vunpack.c.l.b16 %v137
  %v1071 = vunpack.c.l.b16 %v138
  %v1072 = vunpack.c.l.b16 %v139
  %v1073 = vunpack.c.l.b16 %v140
  %v1074 = vunpack.c.l.b16 %v141
  %v1075 = vunpack.c.l.b16 %v142
  %v1076 = vunpack.c.l.b16 %v143
  %v1077 = vunpack.c.l.b16 %v144
  %v1078 = vunpack.c.l.b16 %v145
  %v1079 = vunpack.c.l.b16 %v146
  %v1080 = vunpack.c.l.b16 %v147
  %v1081 = vunpack.c.l.b16 %v148
  %v1082 = vunpack.c.l.b16 %v149
  %v1083 = vunpack.c.l.b16 %v150
  %v1084 = vunpack.c.l.b16 %v151
  %v1085 = vunpack.c.l.b16 %v152
  %v1086 = vunpack.c.l.b16 %v153
  %v1087 = vunpack.c.l.b16 %v154
  %v1088 = vunpack.c.l.b16 %v155
  %v1089 = vunpack.c.l.b16 %v156
  %v1090 = vunpack.c.l.b16 %v157
  %v1091 = vunpack.c.l.b16 %v158
  %v1092 = vunpack.c.l.b16 %v159
  %v1093 = vunpack.c.l.b16 %v160
  %v1094 = vunpack.c.l.b16 %v161
  %v1095 = vunpack.c.l.b16 %v162
  %v1096 = vunpack.c.l.b16 %v163
  %v1097 = vunpack.c.l.b16 %v164
  %v1098 = vunpack.c.l.b16 %v165
  %v1099 = vunpack.c.l.b16 %v166
  %v1100 = vunpack.c.l.b16 %v167
  %v1101 = vunpack.c.l.b16 %v168
  %v1102 = vunpack.c.l.b16 %v169
  %v1103 = vunpack.c.l.b16 %v170
  %v1104 = vunpack.c.l.b16 %v171
  %v1105 = vunpack.c.l.b16 %v172
  %v1106 = vunpack.c.l.b16 %v173
  %v1107 = vunpack.c.l.b16 %v174
  %v1108 = vunpack.c.l.b16 %v175
  %v1109 = vunpack.c.l.b16 %v176
  %v1110 = vunpack.c.l.b16 %v177
  %v1111 = vunpack.c.l.b16 %v178
  %v1112 = vunpack.c.l.b16 %v179
  %v1113 = vunpack.c.l.b16 %v180
  %v1114 = vunpack.c.l.b16 %v181
  %v1115 = vunpack.c.l.b16 %v182
  %v1116 = vunpack.c.l.b16 %v183
  %v1117 = vunpack.c.l.b16 %v184
  %v1118 = vunpack.c.l.b16 %v185
  %v1119 = vunpack.c.l.b16 %v186
  %v1120 = vunpack.c.l.b16 %v187
  %v1121 = vunpack.c.l.b16 %v188
  %v1122 = vunpack.c.l.b16 %v189
  %v1123 = vunpack.c.l.b16 %v190
  %v1124 = vunpack.c.l.b16 %v191
  %v1125 = vunpack.c.l.b16 %v192
  %v1126 = vunpack.c.l.b16 %v193
  %v1127 = vunpack.c.l.b16 %v194
  %v1128 = vunpack.c.l.b16 %v195
  %v1129 = vunpack.c.l.b16 %v196
  %v1130 = vunpack.c.l.b16 %v197
  %v1131 = vunpack.c.l.b16 %v198
  %v1132 = vunpack.c.l.b16 %v199
  %v1133 = vunpack.c.l.b16 %v200
  %v1134 = vunpack.c.l.b16 %v201
  %v1135 = vunpack.c.l.b16 %v202
  %v1136 = vunpack.c.l.b16 %v203
  %v1137 = vunpack.c.l.b16 %v204
  %v1138 = vunpack.c.l.b16 %v205
  %v1139 = vunpack.c.l.b16 %v206
  %v1140 = vunpack.c.l.b16 %v207
  %v1141 = vunpack.c.l.b16 %v208
  %v1142 = vunpack.c.l.b16 %v209
  %v1143 = vunpack.c.l.b16 %v210
  %v1144 = vunpack.c.l.b16 %v211
  %v1145 = vunpack.c.l.b16 %v212
  %v1146 = vunpack.c.l.b16 %v213
  %v1147 = vunpack.c.l.b16 %v214
  %v1148 = vunpack.c.l.b16 %v215
  %v1149 = vunpack.c.l.b16 %v216
  %v1150 = vunpack.c.l.b16 %v217
  %v1151 = vunpack.c.l.b16 %v218
  %v1152 = vunpack.c.l.b16 %v219
  %v1153 = vunpack.c.l.b16 %v220
  %v1154 = vunpack.c.l.b16 %v221
  %v1155 = vunpack.c.l.b16 %v222
  %v1156 = vunpack.c.l.b16 %v223
  %v1157 = vunpack.c.l.b16 %v224
  %v1158 = vunpack.c.l.b16 %v225
  %v1159 = vunpack.c.l.b16 %v226
  %v1160 = vunpack.c.l.b16 %v227
  %v1161 = vunpack.c.l.b16 %v228
  %v1162 = vunpack.c.l.b16 %v229
  %v1163 = vunpack.c.l.b16 %v230
  %v1164 = vunpack.c.l.b16 %v231
  %v1165 = vunpack.c.l.b16 %v232
  %v1166 = vunpack.c.l.b16 %v233
  %v1167 = vunpack.c.l.b16 %v234
  %v1168 = vunpack.c.l.b16 %v235
  %v1169 = vunpack.c.l.b16 %v236
  %v1170 = vunpack.c.l.b16 %v237
  %v1171 = vunpack.c.l.b16 %v238
  %v1172 = vunpack.c.l.b16 %v239
  %v1173 = vunpack.c.l.b16 %v240
  %v1174 = vunpack.c.l.b16 %v241
  %v1175 = vunpack.c.l.b16 %v242
  %v1176 = vunpack.c.l.b16 %v243
  %v1177 = vunpack.c.l.b16 %v244
  %v1178 = vunpack.c.l.b16 %v245
  %v1179 = vunpack.c.l.b16 %v246
  %v1180 = vunpack.c.l.b16 %v247
  %v1181 = vunpack.c.l.b16 %v248
  %v1182 = vunpack.c.l.b16 %v249
  %v1183 = vunpack.c.l.b16 %v250
  %v1184 = vunpack.c.l.b16 %v251
  %v1185 = vunpack.c.l.b16 %v252
  %v1186 = vunpack.c.l.b16 %v253
  %v1187 = vunpack.c.l.b16 %v254
  %v1188 = vunpack.c.l.b16 %v255
  %v1189 = vunpack.c.l.b16 %v256
  %v1190 = vunpack.c.l.b16 %v257
  %v1191 = vunpack.c.l.b16 %v258
  %v1192 = vunpack.c.l.b16 %v259
  %v1193 = vunpack.c.l.b16 %v260
  %v1194 = vunpack.c.l.b16 %v261
  %v1195 = vunpack.c.l.b16 %v262
  %v1196 = vunpack.c.l.b16 %v263
  %v1197 = vunpack.c.l.b16 %v264
  %v1198 = vunpack.c.l.b16 %v265
  %v1199 = vunpack.c.l.b16 %v266
  %v1200 = vunpack.c.l.b16 %v267
  %v1201 = vunpack.c.l.b16 %v268
  %v1202 = vunpack.c.l.b16 %v269
  %v1203 = vunpack.c.l.b16 %v270
  %v1204 = vunpack.c.l.b16 %v271
  %v1205 = vunpack.c.l.b16 %v272
  %v1206 = vunpack.c.l.b16 %v273
  %v1207 = vunpack.c.l.b16 %v274
  %v1208 = vunpack.c.l.b16 %v275
  %v1209 = vunpack.c.l.b16 %v276
  %v1210 = vunpack.c.l.b16 %v277
  %v1211 = vunpack.c.l.b16 %v278
  %v1212 = vunpack.c.l.b16 %v279
  %v1213 = vunpack.c.l.b16 %v280
  %v1214 = vunpack.c.l.b16 %v281
  %v1215 = vunpack.c.l.b16 %v282
  %v1216 = vunpack.c.l.b16 %v283
  %v1217 = vunpack.c.l.b16 %v284
  %v1218 = vunpack.c.l.b16 %v285
  %v1219 = vunpack.c.l.b16 %v286
  %v1220 = vunpack.c.l.b16 %v287
  %v1221 = vunpack.c.l.b16 %v288
  %v1222 = vunpack.c.l.b16 %v289
  %v1223 = vunpack.c.l.b16 %v290
  %v1224 = vunpack.c.l.b16 %v291
  %v1225 = vunpack.c.l.b16 %v292
  %v1226 = vunpack.c.l.b16 %v293
  %v1227 = vunpack.c.l.b16 %v294
  %v1228 = vunpack.c.l.b16 %v295
  %v1229 = vunpack.c.l.b16 %v296
  %v1230 = vunpack.c.l.b16 %v297
  %v1231 = vunpack.c.l.b16 %v298
  %v1232 = vunpack.c.l.b16 %v299
  %v1233 = vunpack.c.l.b16 %v300
  %v1234 = vunpack.c.l.b16 %v301
  %v1235 = vunpack.c.l.b16 %v302
  %v1236 = vunpack.c.l.b16 %v303
  %v1237 = vunpack.c.l.b16 %v304
  %v1238 = vunpack.c.l.b16 %v305
  %v1239 = vunpack.c.l.b16 %v306
  %v1240 = vunpack.c.l.b16 %v307
  %v1241 = vunpack.c.l.b16 %v308
  %v1242 = vunpack.c.l.b16 %v309
  %v1243 = vunpack.c.l.b16 %v310
  %v1244 = vunpack.c.l.b16 %v311
  %v1245 = vunpack.c.l.b16 %v312
  %v1246 = vunpack.c.l.b16 %v313
  %v1247 = vunpack.c.l.b16 %v314
  %v1248 = vunpack.c.l.b16 %v315
  %v1249 = vunpack.c.l.b16 %v316
  %v1250 = vunpack.c.l.b16 %v317
  %v1251 = vunpack.c.l.b16 %v318
  %v1252 = vunpack.c.l.b16 %v319
  %v1253 = vunpack.c.l.b16 %v320
  %v1254 = vunpack.c.l.b16 %v321
  %v1255 = vunpack.c.l.b16 %v322
  %v1256 = vunpack.c.l.b16 %v323
  %v1257 = vunpack.c.l.b16 %v324
  %v1258 = vunpack.c.l.b16 %v325
  %v1259 = vunpack.c.l.b16 %v326
  %v1260 = vunpack.c.l.b16 %v327
  %v1261 = vunpack.c.l.b16 %v328
  %v1262 = vunpack.c.l.b16 %v329
  %v1263 = vunpack.c.l.b16 %v330
  %v1264 = vunpack.c.l.b16 %v331
  %v1265 = vunpack.c.l.b16 %v332
  %v1266 = vunpack.c.l.b16 %v333
  %v1267 = vunpack.c.l.b16 %v334
  %v1268 = vunpack.c.l.b16 %v335
  %v1269 = vunpack.c.l.b16 %v336
  %v1270 = vunpack.c.l.b16 %v337
  %v1271 = vunpack.c.l.b16 %v338
  %v1272 = vunpack.c.l.b16 %v339
  %v1273 = vunpack.c.l.b16 %v340
  %v1274 = vunpack.c.l.b16 %v341
  %v1275 = vunpack.c.l.b16 %v342
  %v1276 = vunpack.c.l.b16 %v343
  %v1277 = vunpack.c.l.b16 %v344
  %v1278 = vunpack.c.l.b16 %v345
  %v1279 = vunpack.c.l.b16 %v346
  %v1280 = vunpack.c.l.b16 %v347
  %v1281 = vunpack.c.l.b16 %v348
  %v1282 = vunpack.c.l.b16 %v349
  %v1283 = vunpack.c.l.b16 %v350
  %v1284 = vunpack.c.l.b16 %v351
  %v1285 = vunpack.c.l.b16 %v352
  %v1286 = vunpack.c.l.b16 %v353
  %v1287 = vunpack.c.l.b16 %v354
  %v1288 = vunpack.c.l.b16 %v355
  %v1289 = vunpack.c.l.b16 %v356
  %v1290 = vunpack.c.l.b16 %v357
  %v1291 = vunpack.c.l.b16 %v358
  %v1292 = vunpack.c.l.b16 %v359
  %v1293 = vunpack.c.l.b16 %v360
  %v1294 = vunpack.c.l.b16 %v361
  %v1295 = vunpack.c.l.b16 %v362
  %v1296 = vunpack.c.l.b16 %v363
  %v1297 = vunpack.c.l.b16 %v364
  %v1298 = vunpack.c.l.b16 %v365
  %v1299 = vunpack.c.l.b16 %v366
  %v1300 = vunpack.c.l.b16 %v367
  %v1301 = vunpack.c.l.b16 %v368
  %v1302 = vunpack.c.l.b16 %v369
  %v1303 = vunpack.c.l.b16 %v370
  %v1304 = vunpack.c.l.b16 %v371
  %v1305 = vunpack.c.l.b16 %v372
  %v1306 = vunpack.c.l.b16 %v373
  %v1307 = vunpack.c.l.b16 %v374
  %v1308 = vunpack.c.l.b16 %v375
  %v1309 = vunpack.c.l.b16 %v376
  %v1310 = vunpack.c.l.b16 %v377
  %v1311 = vunpack.c.l.b16 %v378
  %v1312 = vunpack.c.l.b16 %v379
  %v1313 = vunpack.c.l.b16 %v380
  %v1314 = vunpack.c.l.b16 %v381
  %v1315 = vunpack.c.l.b16 %v382
  %v1316 = vunpack.c.l.b16 %v383
  %v1317 = vunpack.c.l.b16 %v384
  %v1318 = vunpack.c.l.b16 %v385
  %v1319 = vunpack.c.l.b16 %v386
  %v1320 = vunpack.c.l.b16 %v387
  %v1321 = vunpack.c.l.b16 %v388
  %v1322 = vunpack.c.l.b16 %v389
  %v1323 = vunpack.c.l.b16 %v390
  %v1324 = vunpack.c.l.b16 %v391
  %v1325 = vunpack.c.l.b16 %v392
  %v1326 = vunpack.c.l.b16 %v393
  %v1327 = vunpack.c.l.b16 %v394
  %v1328 = vunpack.c.l.b16 %v395
  %v1329 = vunpack.c.l.b16 %v396
  %v1330 = vunpack.c.l.b16 %v397
  %v1331 = vunpack.c.l.b16 %v398
  %v1332 = vunpack.c.l.b16 %v399
  %v1333 = vunpack.c.l.b16 %v400
  %v1334 = vunpack.c.l.b16 %v401
  %v1335 = vunpack.c.l.b16 %v402
  %v1336 = vunpack.c.l.b16 %v403
  %v1337 = vunpack.c.l.b16 %v404
  %v1338 = vunpack.c.l.b16 %v405
  %v1339 = vunpack.c.l.b16 %v406
  %v1340 = vunpack.c.l.b16 %v407
  %v1341 = vunpack.c.l.b16 %v408
  %v1342 = vunpack.c.l.b16 %v409
  %v1343 = vunpack.c.l.b16 %v410
  %v1344 = vunpack.c.l.b16 %v411
  %v1345 = vunpack.c.l.b16 %v412
  %v1346 = vunpack.c.l.b16 %v413
  %v1347 = vunpack.c.l.b16 %v414
  %v1348 = vunpack.c.l.b16 %v415
  %v1349 = vunpack.c.l.b16 %v416
  %v1350 = vunpack.c.l.b16 %v417
  %v1351 = vunpack.c.l.b16 %v418
  %v1352 = vunpack.c.l.b16 %v419
  %v1353 = vunpack.c.l.b16 %v420
  %v1354 = vunpack.c.l.b16 %v421
  %v1355 = vunpack.c.l.b16 %v422
  %v1356 = vunpack.c.l.b16 %v423
  %v1357 = vunpack.c.l.b16 %v424
  %v1358 = vunpack.c.l.b16 %v425
  %v1359 = vunpack.c.l.b16 %v426
  %v1360 = vunpack.c.l.b16 %v427
  %v1361 = vunpack.c.l.b16 %v428
  %v1362 = vunpack.c.l.b16 %v429
  %v1363 = vunpack.c.l.b16 %v430
  %v1364 = vunpack.c.l.b16 %v431
  %v1365 = vunpack.c.l.b16 %v432
  %v1366 = vunpack.c.l.b16 %v433
  %v1367 = vunpack.c.l.b16 %v434
  %v1368 = vunpack.c.l.b16 %v435
  %v1369 = vunpack.c.l.b16 %v436
  %v1370 = vunpack.c.l.b16 %v437
  %v1371 = vunpack.c.l.b16 %v438
  %v1372 = vunpack.c.l.b16 %v439
  %v1373 = vunpack.c.l.b16 %v440
  %v1374 = vpack.c.b16 %v975, %v974
  %v1375 = vpack.c.b16 %v977, %v976
  %v1376 = vpack.c.b16 %v979, %v978
  %v1377 = vpack.c.b16 %v981, %v980
  %v1378 = vpack.c.b16 %v983, %v982
  %v1379 = vpack.c.b16 %v985, %v984
  %v1380 = vpack.c.b16 %v987, %v986
  %v1381 = vpack.c.b16 %v989, %v988
  %v1382 = vpack.c.b16 %v991, %v990
  %v1383 = vpack.c.b16 %v993, %v992
  %v1384 = vpack.c.b16 %v995, %v994
  %v1385 = vpack.c.b16 %v997, %v996
  %v1386 = vpack.c.b16 %v999, %v998
  %v1387 = vpack.c.b16 %v1001, %v1000
  %v1388 = vpack.c.b16 %v1003, %v1002
  %v1389 = vpack.c.b16 %v1005, %v1004
  %v1390 = vpack.c.b16 %v1007, %v1006
  %v1391 = vpack.c.b16 %v1009, %v1008
  %v1392 = vpack.c.b16 %v1011, %v1010
  %v1393 = vpack.c.b16 %v1013, %v1012
  %v1394 = vpack.c.b16 %v1015, %v1014
  %v1395 = vpack.c.b16 %v1017, %v1016
  %v1396 = vpack.c.b16 %v1019, %v1018
  %v1397 = vpack.c.b16 %v1021, %v1020
  %v1398 = vpack.c.b16 %v1023, %v1022
  %v1399 = vpack.c.b16 %v1025, %v1024
  %v1400 = vpack.c.b16 %v1027, %v1026
  %v1401 = vpack.c.b16 %v1029, %v1028
  %v1402 = vpack.c.b16 %v1031, %v1030
  %v1403 = vpack.c.b16 %v1033, %v1032
  %v1404 = vpack.c.b16 %v1035, %v1034
  %v1405 = vpack.c.b16 %v1037, %v1036
  %v1406 = vpack.c.b16 %v1039, %v1038
  %v1407 = vpack.c.b16 %v1041, %v1040
  %v1408 = vpack.c.b16 %v1043, %v1042
  %v1409 = vpack.c.b16 %v1045, %v1044
  %v1410 = vpack.c.b16 %v1047, %v1046
  %v1411 = vpack.c.b16 %v1049, %v1048
  %v1412 = vpack.c.b16 %v1051, %v1050
  %v1413 = vpack.c.b16 %v1053, %v1052
  %v1414 = vpack.c.b16 %v1055, %v1054
  %v1415 = vpack.c.b16 %v1057, %v1056
  %v1416 = vpack.c.b16 %v1059, %v1058
  %v1417 = vpack.c.b16 %v1061, %v1060
  %v1418 = vpack.c.b16 %v1063, %v1062
  %v1419 = vpack.c.b16 %v1065, %v1064
  %v1420 = vpack.c.b16 %v1067, %v1066
  %v1421 = vpack.c.b16 %v1069, %v1068
  %v1422 = vpack.c.b16 %v1071, %v1070
  %v1423 = vpack.c.b16 %v1073, %v1072
  %v1424 = vpack.c.b16 %v1075, %v1074
  %v1425 = vpack.c.b16 %v1077, %v1076
  %v1426 = vpack.c.b16 %v1079, %v1078
  %v1427 = vpack.c.b16 %v1081, %v1080
  %v1428 = vpack.c.b16 %v1083, %v1082
  %v1429 = vpack.c.b16 %v1085, %v1084
  %v1430 = vpack.c.b16 %v1087, %v1086
  %v1431 = vpack.c.b16 %v1089, %v1088
  %v1432 = vpack.c.b16 %v1091, %v1090
  %v1433 = vpack.c.b16 %v1093, %v1092
  %v1434 = vpack.c.b16 %v1095, %v1094
  %v1435 = vpack.c.b16 %v1097, %v1096
  %v1436 = vpack.c.b16 %v1099, %v1098
  %v1437 = vpack.c.b16 %v1101, %v1100
  %v1438 = vpack.c.b16 %v1103, %v1102
  %v1439 = vpack.c.b16 %v1105, %v1104
  %v1440 = vpack.c.b16 %v1107, %v1106
  %v1441 = vpack.c.b16 %v1109, %v1108
  %v1442 = vpack.c.b16 %v1111, %v1110
  %v1443 = vpack.c.b16 %v1113, %v1112
  %v1444 = vpack.c.b16 %v1115, %v1114
  %v1445 = vpack.c.b16 %v1117, %v1116
  %v1446 = vpack.c.b16 %v1119, %v1118
  %v1447 = vpack.c.b16 %v1121, %v1120
  %v1448 = vpack.c.b16 %v1123, %v1122
  %v1449 = vpack.c.b16 %v1125, %v1124
  %v1450 = vpack.c.b16 %v1127, %v1126
  %v1451 = vpack.c.b16 %v1129, %v1128
  %v1452 = vpack.c.b16 %v1131, %v1130
  %v1453 = vpack.c.b16 %v1133, %v1132
  %v1454 = vpack.c.b16 %v1135, %v1134
  %v1455 = vpack.c.b16 %v1137, %v1136
  %v1456 = vpack.c.b16 %v1139, %v1138
  %v1457 = vpack.c.b16 %v1141, %v1140
  %v1458 = vpack.c.b16 %v1143, %v1142
  %v1459 = vpack.c.b16 %v1145, %v1144
  %v1460 = vpack.c.b16 %v1147, %v1146
  %v1461 = vpack.c.b16 %v1149, %v1148
  %v1462 = vpack.c.b16 %v1151, %v1150
  %v1463 = vpack.c.b16 %v1153, %v1152
  %v1464 = vpack.c.b16 %v1155, %v1154
  %v1465 = vpack.c.b16 %v1157, %v1156
  %v1466 = vpack.c.b16 %v1159, %v1158
  %v1467 = vpack.c.b16 %v1161, %v1160
  %v1468 = vpack.c.b16 %v1163, %v1162
  %v1469 = vpack.c.b16 %v1165, %v1164
  %v1470 = vpack.c.b16 %v1167, %v1166
  %v1471 = vpack.c.b16 %v1169, %v1168
  %v1472 = vpack.c.b16 %v1171, %v1170
  %v1473 = vpack.c.b16 %v1173, %v1172
  %v1474 = vpack.c.b16 %v1175, %v1174
  %v1475 = vpack.c.b16 %v1177, %v1176
  %v1476 = vpack.c.b16 %v1179, %v1178
  %v1477 = vpack.c.b16 %v1181, %v1180
  %v1478 = vpack.c.b16 %v1183, %v1182
  %v1479 = vpack.c.b16 %v1185, %v1184
  %v1480 = vpack.c.b16 %v1187, %v1186
  %v1481 = vpack.c.b16 %v1189, %v1188
  %v1482 = vpack.c.b16 %v1191, %v1190
  %v1483 = vpack.c.b16 %v1193, %v1192
  %v1484 = vpack.c.b16 %v1195, %v1194
  %v1485 = vpack.c.b16 %v1197, %v1196
  %v1486 = vpack.c.b16 %v1199, %v1198
  %v1487 = vpack.c.b16 %v1201, %v1200
  %v1488 = vpack.c.b16 %v1203, %v1202
  %v1489 = vpack.c.b16 %v1205, %v1204
  %v1490 = vpack.c.b16 %v1207, %v1206
  %v1491 = vpack.c.b16 %v1209, %v1208
  %v1492 = vpack.c.b16 %v1211, %v1210
  %v1493 = vpack.c.b16 %v1213, %v1212
  %v1494 = vpack.c.b16 %v1215, %v1214
  %v1495 = vpack.c.b16 %v1217, %v1216
  %v1496 = vpack.c.b16 %v1219, %v1218
  %v1497 = vpack.c.b16 %v1221, %v1220
  %v1498 = vpack.c.b16 %v1223, %v1222
  %v1499 = vpack.c.b16 %v1225, %v1224
  %v1500 = vpack.c.b16 %v1227, %v1226
  %v1501 = vpack.c.b16 %v1229, %v1228
  %v1502 = vpack.c.b16 %v1231, %v1230
  %v1503 = vpack.c.b16 %v1233, %v1232
  %v1504 = vpack.c.b16 %v1235, %v1234
  %v1505 = vpack.c.b16 %v1237, %v1236
  %v1506 = vpack.c.b16 %v1239, %v1238
  %v1507 = vpack.c.b16 %v1241, %v1240
  %v1508 = vpack.c.b16 %v1243, %v1242
  %v1509 = vpack.c.b16 %v1245, %v1244
  %v1510 = vpack.c.b16 %v1247, %v1246
  %v1511 = vpack.c.b16 %v1249, %v1248
  %v1512 = vpack.c.b16 %v1251, %v1250
  %v1513 = vpack.c.b16 %v1253, %v1252
  %v1514 = vpack.c.b16 %v1255, %v1254
  %v1515 = vpack.c.b16 %v1257, %v1256
  %v1516 = vpack.c.b16 %v1259, %v1258
  %v1517 = vpack.c.b16 %v1261, %v1260
  %v1518 = vpack.c.b16 %v1263, %v1262
  %v1519 = vpack.c.b16 %v1265, %v1264
  %v1520 = vpack.c.b16 %v1267, %v1266
  %v1521 = vpack.c.b16 %v1269, %v1268
  %v1522 = vpack.c.b16 %v1271, %v1270
  %v1523 = vpack.c.b16 %v1273, %v1272
  %v1524 = vpack.c.b16 %v1275, %v1274
  %v1525 = vpack.c.b16 %v1277, %v1276
  %v1526 = vpack.c.b16 %v1279, %v1278
  %v1527 = vpack.c.b16 %v1281, %v1280
  %v1528 = vpack.c.b16 %v1283, %v1282
  %v1529 = vpack.c.b16 %v1285, %v1284
  %v1530 = vpack.c.b16 %v1287, %v1286
  %v1531 = vpack.c.b16 %v1289, %v1288
  %v1532 = vpack.c.b16 %v1291, %v1290
  %v1533 = vpack.c.b16 %v1293, %v1292
  %v1534 = vpack.c.b16 %v1295, %v1294
  %v1535 = vpack.c.b16 %v1297, %v1296
  %v1536 = vpack.c.b16 %v1299, %v1298
  %v1537 = vpack.c.b16 %v1301, %v1300
  %v1538 = vpack.c.b16 %v1303, %v1302
  %v1539 = vpack.c.b16 %v1305, %v1304
  %v1540 = vpack.c.b16 %v1307, %v1306
  %v1541 = vpack.c.b16 %v1309, %v1308
  %v1542 = vpack.c.b16 %v1311, %v1310
  %v1543 = vpack.c.b16 %v1313, %v1312
  %v1544 = vpack.c.b16 %v1315, %v1314
  %v1545 = vpack.c.b16 %v1317, %v1316
  %v1546 = vpack.c.b16 %v1319, %v1318
  %v1547 = vpack.c.b16 %v1321, %v1320
  %v1548 = vpack.c.b16 %v1323, %v1322
  %v1549 = vpack.c.b16 %v1325, %v1324
  %v1550 = vpack.c.b16 %v1327, %v1326
  %v1551 = vpack.c.b16 %v1329, %v1328
  %v1552 = vpack.c.b16 %v1331, %v1330
  %v1553 = vpack.c.b16 %v1333, %v1332
  %v1554 = vpack.c.b16 %v1335, %v1334
  %v1555 = vpack.c.b16 %v1337, %v1336
  %v1556 = vpack.c.b16 %v1339, %v1338
  %v1557 = vpack.c.b16 %v1341, %v1340
  %v1558 = vpack.c.b16 %v1343, %v1342
  %v1559 = vpack.c.b16 %v1345, %v1344
  %v1560 = vpack.c.b16 %v1347, %v1346
  %v1561 = vpack.c.b16 %v1349, %v1348
  %v1562 = vpack.c.b16 %v1351, %v1350
  %v1563 = vpack.c.b16 %v1353, %v1352
  %v1564 = vpack.c.b16 %v1355, %v1354
  %v1565 = vpack.c.b16 %v1357, %v1356
  %v1566 = vpack.c.b16 %v1359, %v1358
  %v1567 = vpack.c.b16 %v1361, %v1360
  %v1568 = vpack.c.b16 %v1363, %v1362
  %v1569 = vpack.c.b16 %v1365, %v1364
  %v1570 = vpack.c.b16 %v1367, %v1366
  %v1571 = vpack.c.b16 %v1369, %v1368
  %v1572 = vpack.c.b16 %v1371, %v1370
  %v1573 = vpack.c.b16 %v1373, %v1372
  %1774 = vmatprep.subr.bf16.mxu0 0
  %1775 = vmatpush1.bf16.msra.mxu0 %v1374
  %1776 = vmatprep.subr.bf16.mxu0 0
  %1777 = vmatpush1.bf16.msra.mxu0 %v1375
  %1778 = vmatprep.subr.bf16.mxu0 0
  %1779 = vmatpush1.bf16.msra.mxu0 %v1376
  %1780 = vmatprep.subr.bf16.mxu0 0
  %1781 = vmatpush1.bf16.msra.mxu0 %v1377
  %1782 = vmatprep.subr.bf16.mxu0 0
  %1783 = vmatpush1.bf16.msra.mxu0 %v1378
  %1784 = vmatprep.subr.bf16.mxu0 0
  %1785 = vmatpush1.bf16.msra.mxu0 %v1379
  %1786 = vmatprep.subr.bf16.mxu0 0
  %1787 = vmatpush1.bf16.msra.mxu0 %v1380
  %1788 = vmatprep.subr.bf16.mxu0 0
  %1789 = vmatpush1.bf16.msra.mxu0 %v1381
  %1790 = vmatprep.subr.bf16.mxu0 0
  %1791 = vmatpush1.bf16.msra.mxu0 %v1382
  %1792 = vmatprep.subr.bf16.mxu0 0
  %1793 = vmatpush1.bf16.msra.mxu0 %v1383
  %1794 = vmatprep.subr.bf16.mxu0 0
  %1795 = vmatpush1.bf16.msra.mxu0 %v1384
  %1796 = vmatprep.subr.bf16.mxu0 0
  %1797 = vmatpush1.bf16.msra.mxu0 %v1385
  %1798 = vmatprep.subr.bf16.mxu0 0
  %1799 = vmatpush1.bf16.msra.mxu0 %v1386
  %1800 = vmatprep.subr.bf16.mxu0 0
  %1801 = vmatpush1.bf16.msra.mxu0 %v1387
  %1802 = vmatprep.subr.bf16.mxu0 0
  %1803 = vmatpush1.bf16.msra.mxu0 %v1388
  %1804 = vmatprep.subr.bf16.mxu0 0
  %1805 = vmatpush1.bf16.msra.mxu0 %v1389
  %1806 = vmatprep.mubr.bf16.mxu0 %v525
  %1807 = vmatmul.mubr.bf16.gmra.mrb[0].mxu0 %v524
  %v1808 = vpop.f32.mrb[0].mxu0
  %v1809 = vadd.f32 %v446, %v1808
  %v1810 = vpop.f32.mrb[0].mxu0
  %v1811 = vpop.f32.mrb[0].mxu0
  %v1812 = vadd.f32 %v446, %v1811
  %v1813 = vpop.f32.mrb[0].mxu0
  %1814 = vdwg.mxu0
  %1815 = vmatprep.subr.bf16.mxu0 0
  %1816 = vmatpush1.bf16.msra.mxu0 %v1390
  %1817 = vmatprep.subr.bf16.mxu0 0
  %1818 = vmatpush1.bf16.msra.mxu0 %v1391
  %1819 = vmatprep.subr.bf16.mxu0 0
  %1820 = vmatpush1.bf16.msra.mxu0 %v1392
  %1821 = vmatprep.subr.bf16.mxu0 0
  %1822 = vmatpush1.bf16.msra.mxu0 %v1393
  %1823 = vmatprep.subr.bf16.mxu0 0
  %1824 = vmatpush1.bf16.msra.mxu0 %v1394
  %1825 = vmatprep.subr.bf16.mxu0 0
  %1826 = vmatpush1.bf16.msra.mxu0 %v1395
  %1827 = vmatprep.subr.bf16.mxu0 0
  %1828 = vmatpush1.bf16.msra.mxu0 %v1396
  %1829 = vmatprep.subr.bf16.mxu0 0
  %1830 = vmatpush1.bf16.msra.mxu0 %v1397
  %1831 = vmatprep.subr.bf16.mxu0 0
  %1832 = vmatpush1.bf16.msra.mxu0 %v1398
  %1833 = vmatprep.subr.bf16.mxu0 0
  %1834 = vmatpush1.bf16.msra.mxu0 %v1399
  %1835 = vmatprep.subr.bf16.mxu0 0
  %1836 = vmatpush1.bf16.msra.mxu0 %v1400
  %1837 = vmatprep.subr.bf16.mxu0 0
  %1838 = vmatpush1.bf16.msra.mxu0 %v1401
  %1839 = vmatprep.subr.bf16.mxu0 0
  %1840 = vmatpush1.bf16.msra.mxu0 %v1402
  %1841 = vmatprep.subr.bf16.mxu0 0
  %1842 = vmatpush1.bf16.msra.mxu0 %v1403
  %1843 = vmatprep.subr.bf16.mxu0 0
  %1844 = vmatpush1.bf16.msra.mxu0 %v1404
  %1845 = vmatprep.subr.bf16.mxu0 0
  %1846 = vmatpush1.bf16.msra.mxu0 %v1405
  %1847 = vmatprep.mubr.bf16.mxu0 %v527
  %1848 = vmatmul.mubr.bf16.gmra.mrb[0].mxu0 %v526
  %v1849 = vpop.f32.mrb[0].mxu0
  %v1850 = vadd.f32 %v1809, %v1849
  %v1851 = vpop.f32.mrb[0].mxu0
  %v1852 = vpop.f32.mrb[0].mxu0
  %v1853 = vadd.f32 %v1812, %v1852
  %v1854 = vpop.f32.mrb[0].mxu0
  %1855 = vdwg.mxu0
  %1856 = vmatprep.subr.bf16.mxu0 0
  %1857 = vmatpush1.bf16.msra.mxu0 %v1406
  %1858 = vmatprep.subr.bf16.mxu0 0
  %1859 = vmatpush1.bf16.msra.mxu0 %v1407
  %1860 = vmatprep.subr.bf16.mxu0 0
  %1861 = vmatpush1.bf16.msra.mxu0 %v1408
  %1862 = vmatprep.subr.bf16.mxu0 0
  %1863 = vmatpush1.bf16.msra.mxu0 %v1409
  %1864 = vmatprep.subr.bf16.mxu0 0
  %1865 = vmatpush1.bf16.msra.mxu0 %v1410
  %1866 = vmatprep.subr.bf16.mxu0 0
  %1867 = vmatpush1.bf16.msra.mxu0 %v1411
  %1868 = vmatprep.subr.bf16.mxu0 0
  %1869 = vmatpush1.bf16.msra.mxu0 %v1412
  %1870 = vmatprep.subr.bf16.mxu0 0
  %1871 = vmatpush1.bf16.msra.mxu0 %v1413
  %1872 = vmatprep.subr.bf16.mxu0 0
  %1873 = vmatpush1.bf16.msra.mxu0 %v1414
  %1874 = vmatprep.subr.bf16.mxu0 0
  %1875 = vmatpush1.bf16.msra.mxu0 %v1415
  %1876 = vmatprep.subr.bf16.mxu0 0
  %1877 = vmatpush1.bf16.msra.mxu0 %v1416
  %1878 = vmatprep.subr.bf16.mxu0 0
  %1879 = vmatpush1.bf16.msra.mxu0 %v1417
  %1880 = vmatprep.subr.bf16.mxu0 0
  %1881 = vmatpush1.bf16.msra.mxu0 %v1418
  %1882 = vmatprep.subr.bf16.mxu0 0
  %1883 = vmatpush1.bf16.msra.mxu0 %v1419
  %1884 = vmatprep.subr.bf16.mxu0 0
  %1885 = vmatpush1.bf16.msra.mxu0 %v1420
  %1886 = vmatprep.subr.bf16.mxu0 0
  %1887 = vmatpush1.bf16.msra.mxu0 %v1421
  %1888 = vmatprep.mubr.bf16.mxu0 %v529
  %1889 = vmatmul.mubr.bf16.gmra.mrb[0].mxu0 %v528
  %v1890 = vpop.f32.mrb[0].mxu0
  %v1891 = vadd.f32 %v1850, %v1890
  %v1892 = vpop.f32.mrb[0].mxu0
  %v1893 = vpop.f32.mrb[0].mxu0
  %v1894 = vadd.f32 %v1853, %v1893
  %v1895 = vpop.f32.mrb[0].mxu0
  %1896 = vdwg.mxu0
  %1897 = vmatprep.subr.bf16.mxu0 0
  %1898 = vmatpush1.bf16.msra.mxu0 %v1422
  %1899 = vmatprep.subr.bf16.mxu0 0
  %1900 = vmatpush1.bf16.msra.mxu0 %v1423
  %1901 = vmatprep.subr.bf16.mxu0 0
  %1902 = vmatpush1.bf16.msra.mxu0 %v1424
  %1903 = vmatprep.subr.bf16.mxu0 0
  %1904 = vmatpush1.bf16.msra.mxu0 %v1425
  %1905 = vmatprep.subr.bf16.mxu0 0
  %1906 = vmatpush1.bf16.msra.mxu0 %v1426
  %1907 = vmatprep.subr.bf16.mxu0 0
  %1908 = vmatpush1.bf16.msra.mxu0 %v1427
  %1909 = vmatprep.subr.bf16.mxu0 0
  %1910 = vmatpush1.bf16.msra.mxu0 %v1428
  %1911 = vmatprep.subr.bf16.mxu0 0
  %1912 = vmatpush1.bf16.msra.mxu0 %v1429
  %1913 = vmatprep.subr.bf16.mxu0 0
  %1914 = vmatpush1.bf16.msra.mxu0 %v1430
  %1915 = vmatprep.subr.bf16.mxu0 0
  %1916 = vmatpush1.bf16.msra.mxu0 %v1431
  %1917 = vmatprep.subr.bf16.mxu0 0
  %1918 = vmatpush1.bf16.msra.mxu0 %v1432
  %1919 = vmatprep.subr.bf16.mxu0 0
  %1920 = vmatpush1.bf16.msra.mxu0 %v1433
  %1921 = vmatprep.subr.bf16.mxu0 0
  %1922 = vmatpush1.bf16.msra.mxu0 %v1434
  %1923 = vmatprep.subr.bf16.mxu0 0
  %1924 = vmatpush1.bf16.msra.mxu0 %v1435
  %1925 = vmatprep.subr.bf16.mxu0 0
  %1926 = vmatpush1.bf16.msra.mxu0 %v1436
  %1927 = vmatprep.subr.bf16.mxu0 0
  %1928 = vmatpush1.bf16.msra.mxu0 %v1437
  %1929 = vmatprep.mubr.bf16.mxu0 %v531
  %1930 = vmatmul.mubr.bf16.gmra.mrb[0].mxu0 %v530
  %v1931 = vpop.f32.mrb[0].mxu0
  %v1932 = vadd.f32 %v1891, %v1931
  %v1933 = vpop.f32.mrb[0].mxu0
  %v1934 = vpop.f32.mrb[0].mxu0
  %v1935 = vadd.f32 %v1894, %v1934
  %v1936 = vpop.f32.mrb[0].mxu0
  %1937 = vdwg.mxu0
  %1938 = vmatprep.subr.bf16.mxu0 0
  %1939 = vmatpush1.bf16.msra.mxu0 %v1438
  %1940 = vmatprep.subr.bf16.mxu0 0
  %1941 = vmatpush1.bf16.msra.mxu0 %v1439
  %1942 = vmatprep.subr.bf16.mxu0 0
  %1943 = vmatpush1.bf16.msra.mxu0 %v1440
  %1944 = vmatprep.subr.bf16.mxu0 0
  %1945 = vmatpush1.bf16.msra.mxu0 %v1441
  %1946 = vmatprep.subr.bf16.mxu0 0
  %1947 = vmatpush1.bf16.msra.mxu0 %v1442
  %1948 = vmatprep.subr.bf16.mxu0 0
  %1949 = vmatpush1.bf16.msra.mxu0 %v1443
  %1950 = vmatprep.subr.bf16.mxu0 0
  %1951 = vmatpush1.bf16.msra.mxu0 %v1444
  %1952 = vmatprep.subr.bf16.mxu0 0
  %1953 = vmatpush1.bf16.msra.mxu0 %v1445
  %1954 = vmatprep.subr.bf16.mxu0 0
  %1955 = vmatpush1.bf16.msra.mxu0 %v1446
  %1956 = vmatprep.subr.bf16.mxu0 0
  %1957 = vmatpush1.bf16.msra.mxu0 %v1447
  %1958 = vmatprep.subr.bf16.mxu0 0
  %1959 = vmatpush1.bf16.msra.mxu0 %v1448
  %1960 = vmatprep.subr.bf16.mxu0 0
  %1961 = vmatpush1.bf16.msra.mxu0 %v1449
  %1962 = vmatprep.subr.bf16.mxu0 0
  %1963 = vmatpush1.bf16.msra.mxu0 %v1450
  %1964 = vmatprep.subr.bf16.mxu0 0
  %1965 = vmatpush1.bf16.msra.mxu0 %v1451
  %1966 = vmatprep.subr.bf16.mxu0 0
  %1967 = vmatpush1.bf16.msra.mxu0 %v1452
  %1968 = vmatprep.subr.bf16.mxu0 0
  %1969 = vmatpush1.bf16.msra.mxu0 %v1453
  %1970 = vmatprep.mubr.bf16.mxu0 %v533
  %1971 = vmatmul.mubr.bf16.gmra.mrb[0].mxu0 %v532
  %v1972 = vpop.f32.mrb[0].mxu0
  %v1973 = vadd.f32 %v1932, %v1972
  %v1974 = vpop.f32.mrb[0].mxu0
  %v1975 = vpop.f32.mrb[0].mxu0
  %v1976 = vadd.f32 %v1935, %v1975
  %v1977 = vpop.f32.mrb[0].mxu0
  %1978 = vdwg.mxu0
  %1979 = vmatprep.subr.bf16.mxu0 0
  %1980 = vmatpush1.bf16.msra.mxu0 %v1454
  %1981 = vmatprep.subr.bf16.mxu0 0
  %1982 = vmatpush1.bf16.msra.mxu0 %v1455
  %1983 = vmatprep.subr.bf16.mxu0 0
  %1984 = vmatpush1.bf16.msra.mxu0 %v1456
  %1985 = vmatprep.subr.bf16.mxu0 0
  %1986 = vmatpush1.bf16.msra.mxu0 %v1457
  %1987 = vmatprep.subr.bf16.mxu0 0
  %1988 = vmatpush1.bf16.msra.mxu0 %v1458
  %1989 = vmatprep.subr.bf16.mxu0 0
  %1990 = vmatpush1.bf16.msra.mxu0 %v1459
  %1991 = vmatprep.subr.bf16.mxu0 0
  %1992 = vmatpush1.bf16.msra.mxu0 %v1460
  %1993 = vmatprep.subr.bf16.mxu0 0
  %1994 = vmatpush1.bf16.msra.mxu0 %v1461
  %1995 = vmatprep.subr.bf16.mxu0 0
  %1996 = vmatpush1.bf16.msra.mxu0 %v1462
  %1997 = vmatprep.subr.bf16.mxu0 0
  %1998 = vmatpush1.bf16.msra.mxu0 %v1463
  %1999 = vmatprep.subr.bf16.mxu0 0
  %2000 = vmatpush1.bf16.msra.mxu0 %v1464
  %2001 = vmatprep.subr.bf16.mxu0 0
  %2002 = vmatpush1.bf16.msra.mxu0 %v1465
  %2003 = vmatprep.subr.bf16.mxu0 0
  %2004 = vmatpush1.bf16.msra.mxu0 %v1466
  %2005 = vmatprep.subr.bf16.mxu0 0
  %2006 = vmatpush1.bf16.msra.mxu0 %v1467
  %2007 = vmatprep.subr.bf16.mxu0 0
  %2008 = vmatpush1.bf16.msra.mxu0 %v1468
  %2009 = vmatprep.subr.bf16.mxu0 0
  %2010 = vmatpush1.bf16.msra.mxu0 %v1469
  %2011 = vmatprep.mubr.bf16.mxu0 %v535
  %2012 = vmatmul.mubr.bf16.gmra.mrb[0].mxu0 %v534
  %v2013 = vpop.f32.mrb[0].mxu0
  %v2014 = vadd.f32 %v1973, %v2013
  %v2015 = vpop.f32.mrb[0].mxu0
  %v2016 = vpop.f32.mrb[0].mxu0
  %v2017 = vadd.f32 %v1976, %v2016
  %v2018 = vpop.f32.mrb[0].mxu0
  %2019 = vdwg.mxu0
  %2020 = vmatprep.subr.bf16.mxu0 0
  %2021 = vmatpush1.bf16.msra.mxu0 %v1470
  %2022 = vmatprep.subr.bf16.mxu0 0
  %2023 = vmatpush1.bf16.msra.mxu0 %v1471
  %2024 = vmatprep.subr.bf16.mxu0 0
  %2025 = vmatpush1.bf16.msra.mxu0 %v1472
  %2026 = vmatprep.subr.bf16.mxu0 0
  %2027 = vmatpush1.bf16.msra.mxu0 %v1473
  %2028 = vmatprep.subr.bf16.mxu0 0
  %2029 = vmatpush1.bf16.msra.mxu0 %v1474
  %2030 = vmatprep.subr.bf16.mxu0 0
  %2031 = vmatpush1.bf16.msra.mxu0 %v1475
  %2032 = vmatprep.subr.bf16.mxu0 0
  %2033 = vmatpush1.bf16.msra.mxu0 %v1476
  %2034 = vmatprep.subr.bf16.mxu0 0
  %2035 = vmatpush1.bf16.msra.mxu0 %v1477
  %2036 = vmatprep.subr.bf16.mxu0 0
  %2037 = vmatpush1.bf16.msra.mxu0 %v1478
  %2038 = vmatprep.subr.bf16.mxu0 0
  %2039 = vmatpush1.bf16.msra.mxu0 %v1479
  %2040 = vmatprep.subr.bf16.mxu0 0
  %2041 = vmatpush1.bf16.msra.mxu0 %v1480
  %2042 = vmatprep.subr.bf16.mxu0 0
  %2043 = vmatpush1.bf16.msra.mxu0 %v1481
  %2044 = vmatprep.subr.bf16.mxu0 0
  %2045 = vmatpush1.bf16.msra.mxu0 %v1482
  %2046 = vmatprep.subr.bf16.mxu0 0
  %2047 = vmatpush1.bf16.msra.mxu0 %v1483
  %2048 = vmatprep.subr.bf16.mxu0 0
  %2049 = vmatpush1.bf16.msra.mxu0 %v1484
  %2050 = vmatprep.subr.bf16.mxu0 0
  %2051 = vmatpush1.bf16.msra.mxu0 %v1485
  %2052 = vmatprep.mubr.bf16.mxu0 %v537
  %2053 = vmatmul.mubr.bf16.gmra.mrb[0].mxu0 %v536
  %v2054 = vpop.f32.mrb[0].mxu0
  %v2055 = vadd.f32 %v2014, %v2054
  %v2056 = vpop.f32.mrb[0].mxu0
  %v2057 = vpop.f32.mrb[0].mxu0
  %v2058 = vadd.f32 %v2017, %v2057
  %v2059 = vpop.f32.mrb[0].mxu0
  %2060 = vdwg.mxu0
  %2061 = vmatprep.subr.bf16.mxu0 0
  %2062 = vmatpush1.bf16.msra.mxu0 %v1486
  %2063 = vmatprep.subr.bf16.mxu0 0
  %2064 = vmatpush1.bf16.msra.mxu0 %v1487
  %2065 = vmatprep.subr.bf16.mxu0 0
  %2066 = vmatpush1.bf16.msra.mxu0 %v1488
  %2067 = vmatprep.subr.bf16.mxu0 0
  %2068 = vmatpush1.bf16.msra.mxu0 %v1489
  %2069 = vmatprep.subr.bf16.mxu0 0
  %2070 = vmatpush1.bf16.msra.mxu0 %v1490
  %2071 = vmatprep.subr.bf16.mxu0 0
  %2072 = vmatpush1.bf16.msra.mxu0 %v1491
  %2073 = vmatprep.subr.bf16.mxu0 0
  %2074 = vmatpush1.bf16.msra.mxu0 %v1492
  %2075 = vmatprep.subr.bf16.mxu0 0
  %2076 = vmatpush1.bf16.msra.mxu0 %v1493
  %2077 = vmatprep.subr.bf16.mxu0 0
  %2078 = vmatpush1.bf16.msra.mxu0 %v1494
  %2079 = vmatprep.subr.bf16.mxu0 0
  %2080 = vmatpush1.bf16.msra.mxu0 %v1495
  %2081 = vmatprep.subr.bf16.mxu0 0
  %2082 = vmatpush1.bf16.msra.mxu0 %v1496
  %2083 = vmatprep.subr.bf16.mxu0 0
  %2084 = vmatpush1.bf16.msra.mxu0 %v1497
  %2085 = vmatprep.subr.bf16.mxu0 0
  %2086 = vmatpush1.bf16.msra.mxu0 %v1498
  %2087 = vmatprep.subr.bf16.mxu0 0
  %2088 = vmatpush1.bf16.msra.mxu0 %v1499
  %2089 = vmatprep.subr.bf16.mxu0 0
  %2090 = vmatpush1.bf16.msra.mxu0 %v1500
  %2091 = vmatprep.subr.bf16.mxu0 0
  %2092 = vmatpush1.bf16.msra.mxu0 %v1501
  %2093 = vmatprep.mubr.bf16.mxu0 %v539
  %2094 = vmatmul.mubr.bf16.gmra.mrb[0].mxu0 %v538
  %v2095 = vpop.f32.mrb[0].mxu0
  %v2096 = vadd.f32 %v2055, %v2095
  %v2097 = vpop.f32.mrb[0].mxu0
  %v2098 = vpop.f32.mrb[0].mxu0
  %v2099 = vadd.f32 %v2058, %v2098
  %v2100 = vpop.f32.mrb[0].mxu0
  %2101 = vdwg.mxu0
  %2102 = vmatprep.subr.bf16.mxu0 0
  %2103 = vmatpush1.bf16.msra.mxu0 %v1502
  %2104 = vmatprep.subr.bf16.mxu0 0
  %2105 = vmatpush1.bf16.msra.mxu0 %v1503
  %2106 = vmatprep.subr.bf16.mxu0 0
  %2107 = vmatpush1.bf16.msra.mxu0 %v1504
  %2108 = vmatprep.subr.bf16.mxu0 0
  %2109 = vmatpush1.bf16.msra.mxu0 %v1505
  %2110 = vmatprep.subr.bf16.mxu0 0
  %2111 = vmatpush1.bf16.msra.mxu0 %v1506
  %2112 = vmatprep.subr.bf16.mxu0 0
  %2113 = vmatpush1.bf16.msra.mxu0 %v1507
  %2114 = vmatprep.subr.bf16.mxu0 0
  %2115 = vmatpush1.bf16.msra.mxu0 %v1508
  %2116 = vmatprep.subr.bf16.mxu0 0
  %2117 = vmatpush1.bf16.msra.mxu0 %v1509
  %2118 = vmatprep.subr.bf16.mxu0 0
  %2119 = vmatpush1.bf16.msra.mxu0 %v1510
  %2120 = vmatprep.subr.bf16.mxu0 0
  %2121 = vmatpush1.bf16.msra.mxu0 %v1511
  %2122 = vmatprep.subr.bf16.mxu0 0
  %2123 = vmatpush1.bf16.msra.mxu0 %v1512
  %2124 = vmatprep.subr.bf16.mxu0 0
  %2125 = vmatpush1.bf16.msra.mxu0 %v1513
  %2126 = vmatprep.subr.bf16.mxu0 0
  %2127 = vmatpush1.bf16.msra.mxu0 %v1514
  %2128 = vmatprep.subr.bf16.mxu0 0
  %2129 = vmatpush1.bf16.msra.mxu0 %v1515
  %2130 = vmatprep.subr.bf16.mxu0 0
  %2131 = vmatpush1.bf16.msra.mxu0 %v1516
  %2132 = vmatprep.subr.bf16.mxu0 0
  %2133 = vmatpush1.bf16.msra.mxu0 %v1517
  %2134 = vmatprep.mubr.bf16.mxu0 %v541
  %2135 = vmatmul.mubr.bf16.gmra.mrb[0].mxu0 %v540
  %v2136 = vpop.f32.mrb[0].mxu0
  %v2137 = vadd.f32 %v2096, %v2136
  %v2138 = vpop.f32.mrb[0].mxu0
  %v2139 = vpop.f32.mrb[0].mxu0
  %v2140 = vadd.f32 %v2099, %v2139
  %v2141 = vpop.f32.mrb[0].mxu0
  %2142 = vdwg.mxu0
  %2143 = vmatprep.subr.bf16.mxu0 0
  %2144 = vmatpush1.bf16.msra.mxu0 %v1518
  %2145 = vmatprep.subr.bf16.mxu0 0
  %2146 = vmatpush1.bf16.msra.mxu0 %v1519
  %2147 = vmatprep.subr.bf16.mxu0 0
  %2148 = vmatpush1.bf16.msra.mxu0 %v1520
  %2149 = vmatprep.subr.bf16.mxu0 0
  %2150 = vmatpush1.bf16.msra.mxu0 %v1521
  %2151 = vmatprep.subr.bf16.mxu0 0
  %2152 = vmatpush1.bf16.msra.mxu0 %v1522
  %2153 = vmatprep.subr.bf16.mxu0 0
  %2154 = vmatpush1.bf16.msra.mxu0 %v1523
  %2155 = vmatprep.subr.bf16.mxu0 0
  %2156 = vmatpush1.bf16.msra.mxu0 %v1524
  %2157 = vmatprep.subr.bf16.mxu0 0
  %2158 = vmatpush1.bf16.msra.mxu0 %v1525
  %2159 = vmatprep.subr.bf16.mxu0 0
  %2160 = vmatpush1.bf16.msra.mxu0 %v1526
  %2161 = vmatprep.subr.bf16.mxu0 0
  %2162 = vmatpush1.bf16.msra.mxu0 %v1527
  %2163 = vmatprep.subr.bf16.mxu0 0
  %2164 = vmatpush1.bf16.msra.mxu0 %v1528
  %2165 = vmatprep.subr.bf16.mxu0 0
  %2166 = vmatpush1.bf16.msra.mxu0 %v1529
  %2167 = vmatprep.subr.bf16.mxu0 0
  %2168 = vmatpush1.bf16.msra.mxu0 %v1530
  %2169 = vmatprep.subr.bf16.mxu0 0
  %2170 = vmatpush1.bf16.msra.mxu0 %v1531
  %2171 = vmatprep.subr.bf16.mxu0 0
  %2172 = vmatpush1.bf16.msra.mxu0 %v1532
  %2173 = vmatprep.subr.bf16.mxu0 0
  %2174 = vmatpush1.bf16.msra.mxu0 %v1533
  %2175 = vmatprep.mubr.bf16.mxu0 %v543
  %2176 = vmatmul.mubr.bf16.gmra.mrb[0].mxu0 %v542
  %v2177 = vpop.f32.mrb[0].mxu0
  %v2178 = vadd.f32 %v2137, %v2177
  %v2179 = vpop.f32.mrb[0].mxu0
  %v2180 = vpop.f32.mrb[0].mxu0
  %v2181 = vadd.f32 %v2140, %v2180
  %v2182 = vpop.f32.mrb[0].mxu0
  %2183 = vdwg.mxu0
  %2184 = vmatprep.subr.bf16.mxu0 0
  %2185 = vmatpush1.bf16.msra.mxu0 %v1534
  %2186 = vmatprep.subr.bf16.mxu0 0
  %2187 = vmatpush1.bf16.msra.mxu0 %v1535
  %2188 = vmatprep.subr.bf16.mxu0 0
  %2189 = vmatpush1.bf16.msra.mxu0 %v1536
  %2190 = vmatprep.subr.bf16.mxu0 0
  %2191 = vmatpush1.bf16.msra.mxu0 %v1537
  %2192 = vmatprep.subr.bf16.mxu0 0
  %2193 = vmatpush1.bf16.msra.mxu0 %v1538
  %2194 = vmatprep.subr.bf16.mxu0 0
  %2195 = vmatpush1.bf16.msra.mxu0 %v1539
  %2196 = vmatprep.subr.bf16.mxu0 0
  %2197 = vmatpush1.bf16.msra.mxu0 %v1540
  %2198 = vmatprep.subr.bf16.mxu0 0
  %2199 = vmatpush1.bf16.msra.mxu0 %v1541
  %2200 = vmatprep.subr.bf16.mxu0 0
  %2201 = vmatpush1.bf16.msra.mxu0 %v1542
  %2202 = vmatprep.subr.bf16.mxu0 0
  %2203 = vmatpush1.bf16.msra.mxu0 %v1543
  %2204 = vmatprep.subr.bf16.mxu0 0
  %2205 = vmatpush1.bf16.msra.mxu0 %v1544
  %2206 = vmatprep.subr.bf16.mxu0 0
  %2207 = vmatpush1.bf16.msra.mxu0 %v1545
  %2208 = vmatprep.subr.bf16.mxu0 0
  %2209 = vmatpush1.bf16.msra.mxu0 %v1546
  %2210 = vmatprep.subr.bf16.mxu0 0
  %2211 = vmatpush1.bf16.msra.mxu0 %v1547
  %2212 = vmatprep.subr.bf16.mxu0 0
  %2213 = vmatpush1.bf16.msra.mxu0 %v1548
  %2214 = vmatprep.subr.bf16.mxu0 0
  %2215 = vmatpush1.bf16.msra.mxu0 %v1549
  %2216 = vmatprep.mubr.bf16.mxu0 %v545
  %2217 = vmatmul.mubr.bf16.gmra.mrb[0].mxu0 %v544
  %v2218 = vpop.f32.mrb[0].mxu0
  %v2219 = vadd.f32 %v2178, %v2218
  %v2220 = vpop.f32.mrb[0].mxu0
  %v2221 = vpop.f32.mrb[0].mxu0
  %v2222 = vadd.f32 %v2181, %v2221
  %v2223 = vpop.f32.mrb[0].mxu0
  %2224 = vdwg.mxu0
  %2225 = vmatprep.subr.bf16.mxu0 0
  %2226 = vmatpush1.bf16.msra.mxu0 %v1550
  %2227 = vmatprep.subr.bf16.mxu0 0
  %2228 = vmatpush1.bf16.msra.mxu0 %v1551
  %2229 = vmatprep.subr.bf16.mxu0 0
  %2230 = vmatpush1.bf16.msra.mxu0 %v1552
  %2231 = vmatprep.subr.bf16.mxu0 0
  %2232 = vmatpush1.bf16.msra.mxu0 %v1553
  %2233 = vmatprep.subr.bf16.mxu0 0
  %2234 = vmatpush1.bf16.msra.mxu0 %v1554
  %2235 = vmatprep.subr.bf16.mxu0 0
  %2236 = vmatpush1.bf16.msra.mxu0 %v1555
  %2237 = vmatprep.subr.bf16.mxu0 0
  %2238 = vmatpush1.bf16.msra.mxu0 %v1556
  %2239 = vmatprep.subr.bf16.mxu0 0
  %2240 = vmatpush1.bf16.msra.mxu0 %v1557
  %2241 = vmatprep.subr.bf16.mxu0 0
  %2242 = vmatpush1.bf16.msra.mxu0 %v1558
  %2243 = vmatprep.subr.bf16.mxu0 0
  %2244 = vmatpush1.bf16.msra.mxu0 %v1559
  %2245 = vmatprep.subr.bf16.mxu0 0
  %2246 = vmatpush1.bf16.msra.mxu0 %v1560
  %2247 = vmatprep.subr.bf16.mxu0 0
  %2248 = vmatpush1.bf16.msra.mxu0 %v1561
  %2249 = vmatprep.subr.bf16.mxu0 0
  %2250 = vmatpush1.bf16.msra.mxu0 %v1562
  %2251 = vmatprep.subr.bf16.mxu0 0
  %2252 = vmatpush1.bf16.msra.mxu0 %v1563
  %2253 = vmatprep.subr.bf16.mxu0 0
  %2254 = vmatpush1.bf16.msra.mxu0 %v1564
  %2255 = vmatprep.subr.bf16.mxu0 0
  %2256 = vmatpush1.bf16.msra.mxu0 %v1565
  %2257 = vmatprep.mubr.bf16.mxu0 %v547
  %2258 = vmatmul.mubr.bf16.gmra.mrb[0].mxu0 %v546
  %v2259 = vpop.f32.mrb[0].mxu0
  %v2260 = vadd.f32 %v2219, %v2259
  %v2261 = vpop.f32.mrb[0].mxu0
  %v2262 = vpop.f32.mrb[0].mxu0
  %v2263 = vadd.f32 %v2222, %v2262
  %v2264 = vpop.f32.mrb[0].mxu0
  %2265 = vdwg.mxu0
  %2266 = vmatprep.subr.bf16.mxu0 0
  %2267 = vmatpush1.bf16.msra.mxu0 %v1566
  %2268 = vmatprep.subr.bf16.mxu0 0
  %2269 = vmatpush1.bf16.msra.mxu0 %v1567
  %2270 = vmatprep.subr.bf16.mxu0 0
  %2271 = vmatpush1.bf16.msra.mxu0 %v1568
  %2272 = vmatprep.subr.bf16.mxu0 0
  %2273 = vmatpush1.bf16.msra.mxu0 %v1569
  %2274 = vmatprep.subr.bf16.mxu0 0
  %2275 = vmatpush1.bf16.msra.mxu0 %v1570
  %2276 = vmatprep.subr.bf16.mxu0 0
  %2277 = vmatpush1.bf16.msra.mxu0 %v1571
  %2278 = vmatprep.subr.bf16.mxu0 0
  %2279 = vmatpush1.bf16.msra.mxu0 %v1572
  %2280 = vmatprep.subr.bf16.mxu0 0
  %2281 = vmatpush1.bf16.msra.mxu0 %v1573
  %2282 = vmatprep.subr.bf16.mxu0 0
  %2283 = vmatpush1.bf16.msra.mxu0 0
  %2284 = vmatprep.subr.bf16.mxu0 0
  %2285 = vmatpush1.bf16.msra.mxu0 0
  %2286 = vmatprep.subr.bf16.mxu0 0
  %2287 = vmatpush1.bf16.msra.mxu0 0
  %2288 = vmatprep.subr.bf16.mxu0 0
  %2289 = vmatpush1.bf16.msra.mxu0 0
  %2290 = vmatprep.subr.bf16.mxu0 0
  %2291 = vmatpush1.bf16.msra.mxu0 0
  %2292 = vmatprep.subr.bf16.mxu0 0
  %2293 = vmatpush1.bf16.msra.mxu0 0
  %2294 = vmatprep.subr.bf16.mxu0 0
  %2295 = vmatpush1.bf16.msra.mxu0 0
  %2296 = vmatprep.subr.bf16.mxu0 0
  %2297 = vmatpush1.bf16.msra.mxu0 0
  %2298 = vmatprep.mubr.bf16.mxu0 0
  %2299 = vmatmul.mubr.bf16.gmra.mrb[0].mxu0 %v548
  %v2300 = vpop.f32.mrb[0].mxu0
  %v2301 = vadd.f32 %v2260, %v2300
  %v2302 = vpop.f32.mrb[0].mxu0
  %v2303 = vpop.f32.mrb[0].mxu0
  %v2304 = vadd.f32 %v2263, %v2303
  %v2305 = vpop.f32.mrb[0].mxu0
  %2306 = vdwg.mxu0
  %v2307 = vmax.f32 %v2301, 0.0
  %v2308 = vmax.f32 %v2304, 0.0
  %v2309 = vpack.c.bf16 %v2308, %v2307
  %v2311 = vunpack.c.l.b16 %v2309
  %v2312 = vunpack.c.h.b16 %v2309
  %v2313 = vpack.c.b16 %v2311, %v2311
  %v2314 = vpack.c.b16 %v2312, %v2312
  %2317 = vst [vmem:[%s3] sm:$0xf] %v2313
  %2318 = vst [vmem:[%s3 + $0x4] sm:$0xf] %v2314
  // Predicated region
  $region14: #{netx_forward.6} parent=0 // pred_check
    _
  $region15: #{netx_forward.6} parent=0 // pred_check_branch
    %2320 = sbr.rel (0) target = $region17
  $region16: #{netx_forward.6} parent=0 // pred_region
    _
  $region17: #{netx_forward.6} parent=0 // pred_fallthru
    _
  // Predicated region
  $region18: #{netx_forward.6} parent=0 // pred_check
    _
  $region19: #{netx_forward.6} parent=0 // pred_check_branch
    %2322 = sbr.rel (0) target = $region21
  $region20: #{netx_forward.6} parent=0 // pred_region
    _
  $region21: #{netx_forward.6} parent=0 // pred_fallthru
    _

// kernel: netx_forward.7
$region0: #{netx_forward.7}
  #allocation0 [shape = 'u32[]', space=smem, size = 0x4, offset = 0x4, fixed_abs, tag = 'smem constant byte address 0x4 - core index']
  #allocation1 [shape = 'u32[144,128]{1,0:T(1,128)}', space=vmem, size = 0x12000, scoped, tag = 'internal scratch']
  %s0 = inlined_call_operand.vmem [shape: bf16[16,512], index: 0, kind: input, shape index: {}]
  %s1 = inlined_call_operand.vmem [shape: bf16[512,64], index: 1, kind: input, shape index: {}]
  %s2 = inlined_call_operand.vmem [shape: f32[1,64], index: 2, kind: input, shape index: {}]
  %s3 = inlined_call_operand.vmem [shape: bf16[64,256], index: 3, kind: input, shape index: {}]
  %s4 = inlined_call_operand.vmem [shape: f32[1,256], index: 4, kind: input, shape index: {}]
  %s5 = inlined_call_operand.vmem [shape: bf16[256,512], index: 5, kind: input, shape index: {}]
  %s6 = inlined_call_operand.vmem [shape: f32[512,6], index: 6, kind: input, shape index: {}]
  %s7 = inlined_call_operand.vmem [shape: f32[1,6], index: 7, kind: input, shape index: {}]
  %s8 = inlined_call_operand.vmem [shape: f32[16,6], index: 8, kind: output, shape index: {}]
  %s9 = sld [smem:[#allocation0]]
  $region42: #{netx_forward.7} parent=0
    _
  %s11 = ssub.s32 1, %s9
  %s12 = scalar_select 0, %s11, %s9
  // Predicated region
  $region2: #{netx_forward.7} parent=0 // pred_check
    _
  $region3: #{netx_forward.7} parent=0 // pred_check_branch
    %14 = sbr.rel (0) target = $region5
  $region4: #{netx_forward.7} parent=0 // pred_region
    _
  $region5: #{netx_forward.7} parent=0 // pred_fallthru
    _
  // Predicated region
  $region6: #{netx_forward.7} parent=0 // pred_check
    _
  $region7: #{netx_forward.7} parent=0 // pred_check_branch
    %16 = sbr.rel (0) target = $region9
  $region8: #{netx_forward.7} parent=0 // pred_region
    _
  $region9: #{netx_forward.7} parent=0 // pred_fallthru
    _
  // Predicated region
  $region10: #{netx_forward.7} parent=0 // pred_check
    _
  $region11: #{netx_forward.7} parent=0 // pred_check_branch
    %18 = sbr.rel (0) target = $region13
  $region12: #{netx_forward.7} parent=0 // pred_region
    _
  $region13: #{netx_forward.7} parent=0 // pred_fallthru
    _
  // Predicated region
  $region14: #{netx_forward.7} parent=0 // pred_check
    _
  $region15: #{netx_forward.7} parent=0 // pred_check_branch
    %20 = sbr.rel (0) target = $region17
  $region16: #{netx_forward.7} parent=0 // pred_region
    _
  $region17: #{netx_forward.7} parent=0 // pred_fallthru
    _
  // Predicated region
  $region18: #{netx_forward.7} parent=0 // pred_check
    _
  $region19: #{netx_forward.7} parent=0 // pred_check_branch
    %22 = sbr.rel (0) target = $region21
  $region20: #{netx_forward.7} parent=0 // pred_region
    _
  $region21: #{netx_forward.7} parent=0 // pred_fallthru
    _
  // Predicated region
  $region22: #{netx_forward.7} parent=0 // pred_check
    _
  $region23: #{netx_forward.7} parent=0 // pred_check_branch
    %24 = sbr.rel (0) target = $region25
  $region24: #{netx_forward.7} parent=0 // pred_region
    _
  $region25: #{netx_forward.7} parent=0 // pred_fallthru
    _
  // Predicated region
  $region26: #{netx_forward.7} parent=0 // pred_check
    _
  $region27: #{netx_forward.7} parent=0 // pred_check_branch
    %26 = sbr.rel (0) target = $region29
  $region28: #{netx_forward.7} parent=0 // pred_region
    _
  $region29: #{netx_forward.7} parent=0 // pred_fallthru
    _
  // Predicated region
  $region30: #{netx_forward.7} parent=0 // pred_check
    _
  $region31: #{netx_forward.7} parent=0 // pred_check_branch
    %28 = sbr.rel (0) target = $region33
  $region32: #{netx_forward.7} parent=0 // pred_region
    _
  $region33: #{netx_forward.7} parent=0 // pred_fallthru
    _
  %v30 = vld [vmem:[%s0] sm:$0xff]
  %v31 = vld [vmem:[%s0 + $0x8] sm:$0xff]
  %v32 = vld [vmem:[%s0 + $0x10] sm:$0xff]
  %v33 = vld [vmem:[%s0 + $0x18] sm:$0xff]
  %v34 = vld [vmem:[%s1] sm:$0xf]
  %v35 = vld [vmem:[%s1 + $0x4] sm:$0xf]
  %v36 = vld [vmem:[%s1 + $0x8] sm:$0xf]
  %v37 = vld [vmem:[%s1 + $0xc] sm:$0xf]
  %v38 = vld [vmem:[%s1 + $0x10] sm:$0xf]
  %v39 = vld [vmem:[%s1 + $0x14] sm:$0xf]
  %v40 = vld [vmem:[%s1 + $0x18] sm:$0xf]
  %v41 = vld [vmem:[%s1 + $0x1c] sm:$0xf]
  %v42 = vld [vmem:[%s1 + $0x20] sm:$0xf]
  %v43 = vld [vmem:[%s1 + $0x24] sm:$0xf]
  %v44 = vld [vmem:[%s1 + $0x28] sm:$0xf]
  %v45 = vld [vmem:[%s1 + $0x2c] sm:$0xf]
  %v46 = vld [vmem:[%s1 + $0x30] sm:$0xf]
  %v47 = vld [vmem:[%s1 + $0x34] sm:$0xf]
  %v48 = vld [vmem:[%s1 + $0x38] sm:$0xf]
  %v49 = vld [vmem:[%s1 + $0x3c] sm:$0xf]
  %v50 = vld [vmem:[%s1 + $0x40] sm:$0xf]
  %v51 = vld [vmem:[%s1 + $0x44] sm:$0xf]
  %v52 = vld [vmem:[%s1 + $0x48] sm:$0xf]
  %v53 = vld [vmem:[%s1 + $0x4c] sm:$0xf]
  %v54 = vld [vmem:[%s1 + $0x50] sm:$0xf]
  %v55 = vld [vmem:[%s1 + $0x54] sm:$0xf]
  %v56 = vld [vmem:[%s1 + $0x58] sm:$0xf]
  %v57 = vld [vmem:[%s1 + $0x5c] sm:$0xf]
  %v58 = vld [vmem:[%s1 + $0x60] sm:$0xf]
  %v59 = vld [vmem:[%s1 + $0x64] sm:$0xf]
  %v60 = vld [vmem:[%s1 + $0x68] sm:$0xf]
  %v61 = vld [vmem:[%s1 + $0x6c] sm:$0xf]
  %v62 = vld [vmem:[%s1 + $0x70] sm:$0xf]
  %v63 = vld [vmem:[%s1 + $0x74] sm:$0xf]
  %v64 = vld [vmem:[%s1 + $0x78] sm:$0xf]
  %v65 = vld [vmem:[%s1 + $0x7c] sm:$0xf]
  %v66 = vld [vmem:[%s1 + $0x80] sm:$0xf]
  %v67 = vld [vmem:[%s1 + $0x84] sm:$0xf]
  %v68 = vld [vmem:[%s1 + $0x88] sm:$0xf]
  %v69 = vld [vmem:[%s1 + $0x8c] sm:$0xf]
  %v70 = vld [vmem:[%s1 + $0x90] sm:$0xf]
  %v71 = vld [vmem:[%s1 + $0x94] sm:$0xf]
  %v72 = vld [vmem:[%s1 + $0x98] sm:$0xf]
  %v73 = vld [vmem:[%s1 + $0x9c] sm:$0xf]
  %v74 = vld [vmem:[%s1 + $0xa0] sm:$0xf]
  %v75 = vld [vmem:[%s1 + $0xa4] sm:$0xf]
  %v76 = vld [vmem:[%s1 + $0xa8] sm:$0xf]
  %v77 = vld [vmem:[%s1 + $0xac] sm:$0xf]
  %v78 = vld [vmem:[%s1 + $0xb0] sm:$0xf]
  %v79 = vld [vmem:[%s1 + $0xb4] sm:$0xf]
  %v80 = vld [vmem:[%s1 + $0xb8] sm:$0xf]
  %v81 = vld [vmem:[%s1 + $0xbc] sm:$0xf]
  %v82 = vld [vmem:[%s1 + $0xc0] sm:$0xf]
  %v83 = vld [vmem:[%s1 + $0xc4] sm:$0xf]
  %v84 = vld [vmem:[%s1 + $0xc8] sm:$0xf]
  %v85 = vld [vmem:[%s1 + $0xcc] sm:$0xf]
  %v86 = vld [vmem:[%s1 + $0xd0] sm:$0xf]
  %v87 = vld [vmem:[%s1 + $0xd4] sm:$0xf]
  %v88 = vld [vmem:[%s1 + $0xd8] sm:$0xf]
  %v89 = vld [vmem:[%s1 + $0xdc] sm:$0xf]
  %v90 = vld [vmem:[%s1 + $0xe0] sm:$0xf]
  %v91 = vld [vmem:[%s1 + $0xe4] sm:$0xf]
  %v92 = vld [vmem:[%s1 + $0xe8] sm:$0xf]
  %v93 = vld [vmem:[%s1 + $0xec] sm:$0xf]
  %v94 = vld [vmem:[%s1 + $0xf0] sm:$0xf]
  %v95 = vld [vmem:[%s1 + $0xf4] sm:$0xf]
  %v96 = vld [vmem:[%s1 + $0xf8] sm:$0xf]
  %v97 = vld [vmem:[%s1 + $0xfc] sm:$0xf]
  %v98 = vld [vmem:[%s2] sm:$0x1]
  %v100 = vlaneseq
  %v101 = vshrl.u32 %v100, 7
  %v102 = vsub.s32 0, %v101
  %v103 = vrot.slane %v98, %v102
  %v109 = vunpack.c.l.b16 %v30
  %v110 = vunpack.c.h.b16 %v30
  %v111 = vunpack.c.l.b16 %v31
  %v112 = vunpack.c.h.b16 %v31
  %v113 = vunpack.c.l.b16 %v32
  %v114 = vunpack.c.h.b16 %v32
  %v115 = vunpack.c.l.b16 %v33
  %v116 = vunpack.c.h.b16 %v33
  %v117 = vpack.c.b16 %v113, %v109
  %v118 = vpack.c.b16 %v114, %v110
  %v119 = vpack.c.b16 %v115, %v111
  %v120 = vpack.c.b16 %v116, %v112
  %v189 = vunpack.c.l.b16 %v34
  %v190 = vunpack.c.l.b16 %v35
  %v191 = vunpack.c.l.b16 %v36
  %v192 = vunpack.c.l.b16 %v37
  %v193 = vunpack.c.l.b16 %v38
  %v194 = vunpack.c.l.b16 %v39
  %v195 = vunpack.c.l.b16 %v40
  %v196 = vunpack.c.l.b16 %v41
  %v197 = vunpack.c.l.b16 %v42
  %v198 = vunpack.c.l.b16 %v43
  %v199 = vunpack.c.l.b16 %v44
  %v200 = vunpack.c.l.b16 %v45
  %v201 = vunpack.c.l.b16 %v46
  %v202 = vunpack.c.l.b16 %v47
  %v203 = vunpack.c.l.b16 %v48
  %v204 = vunpack.c.l.b16 %v49
  %v205 = vunpack.c.l.b16 %v50
  %v206 = vunpack.c.l.b16 %v51
  %v207 = vunpack.c.l.b16 %v52
  %v208 = vunpack.c.l.b16 %v53
  %v209 = vunpack.c.l.b16 %v54
  %v210 = vunpack.c.l.b16 %v55
  %v211 = vunpack.c.l.b16 %v56
  %v212 = vunpack.c.l.b16 %v57
  %v213 = vunpack.c.l.b16 %v58
  %v214 = vunpack.c.l.b16 %v59
  %v215 = vunpack.c.l.b16 %v60
  %v216 = vunpack.c.l.b16 %v61
  %v217 = vunpack.c.l.b16 %v62
  %v218 = vunpack.c.l.b16 %v63
  %v219 = vunpack.c.l.b16 %v64
  %v220 = vunpack.c.l.b16 %v65
  %v221 = vunpack.c.l.b16 %v66
  %v222 = vunpack.c.l.b16 %v67
  %v223 = vunpack.c.l.b16 %v68
  %v224 = vunpack.c.l.b16 %v69
  %v225 = vunpack.c.l.b16 %v70
  %v226 = vunpack.c.l.b16 %v71
  %v227 = vunpack.c.l.b16 %v72
  %v228 = vunpack.c.l.b16 %v73
  %v229 = vunpack.c.l.b16 %v74
  %v230 = vunpack.c.l.b16 %v75
  %v231 = vunpack.c.l.b16 %v76
  %v232 = vunpack.c.l.b16 %v77
  %v233 = vunpack.c.l.b16 %v78
  %v234 = vunpack.c.l.b16 %v79
  %v235 = vunpack.c.l.b16 %v80
  %v236 = vunpack.c.l.b16 %v81
  %v237 = vunpack.c.l.b16 %v82
  %v238 = vunpack.c.l.b16 %v83
  %v239 = vunpack.c.l.b16 %v84
  %v240 = vunpack.c.l.b16 %v85
  %v241 = vunpack.c.l.b16 %v86
  %v242 = vunpack.c.l.b16 %v87
  %v243 = vunpack.c.l.b16 %v88
  %v244 = vunpack.c.l.b16 %v89
  %v245 = vunpack.c.l.b16 %v90
  %v246 = vunpack.c.l.b16 %v91
  %v247 = vunpack.c.l.b16 %v92
  %v248 = vunpack.c.l.b16 %v93
  %v249 = vunpack.c.l.b16 %v94
  %v250 = vunpack.c.l.b16 %v95
  %v251 = vunpack.c.l.b16 %v96
  %v252 = vunpack.c.l.b16 %v97
  %v253 = vpack.c.b16 %v190, %v189
  %v254 = vpack.c.b16 %v192, %v191
  %v255 = vpack.c.b16 %v194, %v193
  %v256 = vpack.c.b16 %v196, %v195
  %v257 = vpack.c.b16 %v198, %v197
  %v258 = vpack.c.b16 %v200, %v199
  %v259 = vpack.c.b16 %v202, %v201
  %v260 = vpack.c.b16 %v204, %v203
  %v261 = vpack.c.b16 %v206, %v205
  %v262 = vpack.c.b16 %v208, %v207
  %v263 = vpack.c.b16 %v210, %v209
  %v264 = vpack.c.b16 %v212, %v211
  %v265 = vpack.c.b16 %v214, %v213
  %v266 = vpack.c.b16 %v216, %v215
  %v267 = vpack.c.b16 %v218, %v217
  %v268 = vpack.c.b16 %v220, %v219
  %v269 = vpack.c.b16 %v222, %v221
  %v270 = vpack.c.b16 %v224, %v223
  %v271 = vpack.c.b16 %v226, %v225
  %v272 = vpack.c.b16 %v228, %v227
  %v273 = vpack.c.b16 %v230, %v229
  %v274 = vpack.c.b16 %v232, %v231
  %v275 = vpack.c.b16 %v234, %v233
  %v276 = vpack.c.b16 %v236, %v235
  %v277 = vpack.c.b16 %v238, %v237
  %v278 = vpack.c.b16 %v240, %v239
  %v279 = vpack.c.b16 %v242, %v241
  %v280 = vpack.c.b16 %v244, %v243
  %v281 = vpack.c.b16 %v246, %v245
  %v282 = vpack.c.b16 %v248, %v247
  %v283 = vpack.c.b16 %v250, %v249
  %v284 = vpack.c.b16 %v252, %v251
  %317 = vmatprep.subr.bf16.mxu0 0
  %318 = vmatpush1.bf16.msra.mxu0 %v253
  %319 = vmatprep.subr.bf16.mxu0 0
  %320 = vmatpush1.bf16.msra.mxu0 %v254
  %321 = vmatprep.subr.bf16.mxu0 0
  %322 = vmatpush1.bf16.msra.mxu0 %v255
  %323 = vmatprep.subr.bf16.mxu0 0
  %324 = vmatpush1.bf16.msra.mxu0 %v256
  %325 = vmatprep.subr.bf16.mxu0 0
  %326 = vmatpush1.bf16.msra.mxu0 %v257
  %327 = vmatprep.subr.bf16.mxu0 0
  %328 = vmatpush1.bf16.msra.mxu0 %v258
  %329 = vmatprep.subr.bf16.mxu0 0
  %330 = vmatpush1.bf16.msra.mxu0 %v259
  %331 = vmatprep.subr.bf16.mxu0 0
  %332 = vmatpush1.bf16.msra.mxu0 %v260
  %333 = vmatprep.subr.bf16.mxu0 0
  %334 = vmatpush1.bf16.msra.mxu0 %v261
  %335 = vmatprep.subr.bf16.mxu0 0
  %336 = vmatpush1.bf16.msra.mxu0 %v262
  %337 = vmatprep.subr.bf16.mxu0 0
  %338 = vmatpush1.bf16.msra.mxu0 %v263
  %339 = vmatprep.subr.bf16.mxu0 0
  %340 = vmatpush1.bf16.msra.mxu0 %v264
  %341 = vmatprep.subr.bf16.mxu0 0
  %342 = vmatpush1.bf16.msra.mxu0 %v265
  %343 = vmatprep.subr.bf16.mxu0 0
  %344 = vmatpush1.bf16.msra.mxu0 %v266
  %345 = vmatprep.subr.bf16.mxu0 0
  %346 = vmatpush1.bf16.msra.mxu0 %v267
  %347 = vmatprep.subr.bf16.mxu0 0
  %348 = vmatpush1.bf16.msra.mxu0 %v268
  %349 = vmatprep.mubr.bf16.mxu0 %v118
  %350 = vmatmul.mubr.bf16.gmra.mrb[0].mxu0 %v117
  %v351 = vpop.f32.mrb[0].mxu0
  %v352 = vadd.f32 %v103, %v351
  %v353 = vpop.f32.mrb[0].mxu0
  %v354 = vpop.f32.mrb[0].mxu0
  %v355 = vadd.f32 %v103, %v354
  %v356 = vpop.f32.mrb[0].mxu0
  %357 = vdwg.mxu0
  %358 = vmatprep.subr.bf16.mxu0 0
  %359 = vmatpush1.bf16.msra.mxu0 %v269
  %360 = vmatprep.subr.bf16.mxu0 0
  %361 = vmatpush1.bf16.msra.mxu0 %v270
  %362 = vmatprep.subr.bf16.mxu0 0
  %363 = vmatpush1.bf16.msra.mxu0 %v271
  %364 = vmatprep.subr.bf16.mxu0 0
  %365 = vmatpush1.bf16.msra.mxu0 %v272
  %366 = vmatprep.subr.bf16.mxu0 0
  %367 = vmatpush1.bf16.msra.mxu0 %v273
  %368 = vmatprep.subr.bf16.mxu0 0
  %369 = vmatpush1.bf16.msra.mxu0 %v274
  %370 = vmatprep.subr.bf16.mxu0 0
  %371 = vmatpush1.bf16.msra.mxu0 %v275
  %372 = vmatprep.subr.bf16.mxu0 0
  %373 = vmatpush1.bf16.msra.mxu0 %v276
  %374 = vmatprep.subr.bf16.mxu0 0
  %375 = vmatpush1.bf16.msra.mxu0 %v277
  %376 = vmatprep.subr.bf16.mxu0 0
  %377 = vmatpush1.bf16.msra.mxu0 %v278
  %378 = vmatprep.subr.bf16.mxu0 0
  %379 = vmatpush1.bf16.msra.mxu0 %v279
  %380 = vmatprep.subr.bf16.mxu0 0
  %381 = vmatpush1.bf16.msra.mxu0 %v280
  %382 = vmatprep.subr.bf16.mxu0 0
  %383 = vmatpush1.bf16.msra.mxu0 %v281
  %384 = vmatprep.subr.bf16.mxu0 0
  %385 = vmatpush1.bf16.msra.mxu0 %v282
  %386 = vmatprep.subr.bf16.mxu0 0
  %387 = vmatpush1.bf16.msra.mxu0 %v283
  %388 = vmatprep.subr.bf16.mxu0 0
  %389 = vmatpush1.bf16.msra.mxu0 %v284
  %390 = vmatprep.mubr.bf16.mxu0 %v120
  %391 = vmatmul.mubr.bf16.gmra.mrb[0].mxu0 %v119
  %v392 = vpop.f32.mrb[0].mxu0
  %v393 = vadd.f32 %v352, %v392
  %v394 = vpop.f32.mrb[0].mxu0
  %v395 = vpop.f32.mrb[0].mxu0
  %v396 = vadd.f32 %v355, %v395
  %v397 = vpop.f32.mrb[0].mxu0
  %398 = vdwg.mxu0
  %v399 = vmax.f32 %v393, 0.0
  %v400 = vmax.f32 %v396, 0.0
  %v401 = vpack.c.bf16 %v400, %v399
  %v402 = vld [vmem:[%s3] sm:$0xff]
  %v403 = vld [vmem:[%s3 + $0x8] sm:$0xff]
  %v404 = vld [vmem:[%s3 + $0x10] sm:$0xff]
  %v405 = vld [vmem:[%s3 + $0x18] sm:$0xff]
  %v406 = vld [vmem:[%s3 + $0x20] sm:$0xff]
  %v407 = vld [vmem:[%s3 + $0x28] sm:$0xff]
  %v408 = vld [vmem:[%s3 + $0x30] sm:$0xff]
  %v409 = vld [vmem:[%s3 + $0x38] sm:$0xff]
  %v410 = vld [vmem:[%s4] sm:$0x3]
  %v412 = vlaneseq
  %v413 = vshrl.u32 %v412, 7
  %v414 = vsub.s32 0, %v413
  %v415 = vrot.slane %v410, %v414
  %v416 = vlaneseq
  %v417 = vshrl.u32 %v416, 7
  %v418 = vsub.s32 1, %v417
  %v419 = vrot.slane %v410, %v418
  %v430 = vunpack.c.l.b16 %v402
  %v431 = vunpack.c.h.b16 %v402
  %v432 = vunpack.c.l.b16 %v403
  %v433 = vunpack.c.h.b16 %v403
  %v434 = vunpack.c.l.b16 %v404
  %v435 = vunpack.c.h.b16 %v404
  %v436 = vunpack.c.l.b16 %v405
  %v437 = vunpack.c.h.b16 %v405
  %v438 = vunpack.c.l.b16 %v406
  %v439 = vunpack.c.h.b16 %v406
  %v440 = vunpack.c.l.b16 %v407
  %v441 = vunpack.c.h.b16 %v407
  %v442 = vunpack.c.l.b16 %v408
  %v443 = vunpack.c.h.b16 %v408
  %v444 = vunpack.c.l.b16 %v409
  %v445 = vunpack.c.h.b16 %v409
  %v446 = vpack.c.b16 %v432, %v430
  %v447 = vpack.c.b16 %v433, %v431
  %v448 = vpack.c.b16 %v436, %v434
  %v449 = vpack.c.b16 %v437, %v435
  %v450 = vpack.c.b16 %v440, %v438
  %v451 = vpack.c.b16 %v441, %v439
  %v452 = vpack.c.b16 %v444, %v442
  %v453 = vpack.c.b16 %v445, %v443
  %vm462 = vcmask 523264
  %v464 = vsel %vm462, %v401, 0
  %466 = vmatprep.subr.bf16.mxu0 %v447
  %467 = vmatpush1.bf16.msra.mxu0 %v446
  %468 = vmatprep.subr.bf16.mxu0 %v449
  %469 = vmatpush1.bf16.msra.mxu0 %v448
  %470 = vmatprep.subr.bf16.mxu0 %v451
  %471 = vmatpush1.bf16.msra.mxu0 %v450
  %472 = vmatprep.subr.bf16.mxu0 %v453
  %473 = vmatpush1.bf16.msra.mxu0 %v452
  %474 = vmatprep.subr.bf16.mxu0 0
  %475 = vmatpush1.bf16.msra.mxu0 0
  %476 = vmatprep.subr.bf16.mxu0 0
  %477 = vmatpush1.bf16.msra.mxu0 0
  %478 = vmatprep.subr.bf16.mxu0 0
  %479 = vmatpush1.bf16.msra.mxu0 0
  %480 = vmatprep.subr.bf16.mxu0 0
  %481 = vmatpush1.bf16.msra.mxu0 0
  %482 = vmatprep.subr.bf16.mxu0 0
  %483 = vmatpush1.bf16.msra.mxu0 0
  %484 = vmatprep.subr.bf16.mxu0 0
  %485 = vmatpush1.bf16.msra.mxu0 0
  %486 = vmatprep.subr.bf16.mxu0 0
  %487 = vmatpush1.bf16.msra.mxu0 0
  %488 = vmatprep.subr.bf16.mxu0 0
  %489 = vmatpush1.bf16.msra.mxu0 0
  %490 = vmatprep.subr.bf16.mxu0 0
  %491 = vmatpush1.bf16.msra.mxu0 0
  %492 = vmatprep.subr.bf16.mxu0 0
  %493 = vmatpush1.bf16.msra.mxu0 0
  %494 = vmatprep.subr.bf16.mxu0 0
  %495 = vmatpush1.bf16.msra.mxu0 0
  %496 = vmatprep.subr.bf16.mxu0 0
  %497 = vmatpush1.bf16.msra.mxu0 0
  %498 = vmatprep.mubr.bf16.mxu0 0
  %499 = vmatmul.mubr.bf16.gmra.mrb[0].mxu0 %v464
  %v500 = vpop.f32.mrb[0].mxu0
  %v501 = vadd.f32 %v415, %v500
  %v502 = vpop.f32.mrb[0].mxu0
  %v503 = vadd.f32 %v419, %v502
  %v504 = vpop.f32.mrb[0].mxu0
  %v505 = vadd.f32 %v415, %v504
  %v506 = vpop.f32.mrb[0].mxu0
  %v507 = vadd.f32 %v419, %v506
  %508 = vdwg.mxu0
  %v509 = vmax.f32 %v501, 0.0
  %v510 = vmax.f32 %v503, 0.0
  %v511 = vmax.f32 %v505, 0.0
  %v512 = vmax.f32 %v507, 0.0
  %v513 = vpack.c.bf16 %v511, %v509
  %v514 = vpack.c.bf16 %v512, %v510
  %v515 = vld [vmem:[%s5] sm:$0xff]
  %v516 = vld [vmem:[%s5 + $0x8] sm:$0xff]
  %v517 = vld [vmem:[%s5 + $0x10] sm:$0xff]
  %v518 = vld [vmem:[%s5 + $0x18] sm:$0xff]
  %v519 = vld [vmem:[%s5 + $0x20] sm:$0xff]
  %v520 = vld [vmem:[%s5 + $0x28] sm:$0xff]
  %v521 = vld [vmem:[%s5 + $0x30] sm:$0xff]
  %v522 = vld [vmem:[%s5 + $0x38] sm:$0xff]
  %v523 = vld [vmem:[%s5 + $0x40] sm:$0xff]
  %v524 = vld [vmem:[%s5 + $0x48] sm:$0xff]
  %v525 = vld [vmem:[%s5 + $0x50] sm:$0xff]
  %v526 = vld [vmem:[%s5 + $0x58] sm:$0xff]
  %v527 = vld [vmem:[%s5 + $0x60] sm:$0xff]
  %v528 = vld [vmem:[%s5 + $0x68] sm:$0xff]
  %v529 = vld [vmem:[%s5 + $0x70] sm:$0xff]
  %v530 = vld [vmem:[%s5 + $0x78] sm:$0xff]
  %v531 = vld [vmem:[%s5 + $0x80] sm:$0xff]
  %v532 = vld [vmem:[%s5 + $0x88] sm:$0xff]
  %v533 = vld [vmem:[%s5 + $0x90] sm:$0xff]
  %v534 = vld [vmem:[%s5 + $0x98] sm:$0xff]
  %v535 = vld [vmem:[%s5 + $0xa0] sm:$0xff]
  %v536 = vld [vmem:[%s5 + $0xa8] sm:$0xff]
  %v537 = vld [vmem:[%s5 + $0xb0] sm:$0xff]
  %v538 = vld [vmem:[%s5 + $0xb8] sm:$0xff]
  %v539 = vld [vmem:[%s5 + $0xc0] sm:$0xff]
  %v540 = vld [vmem:[%s5 + $0xc8] sm:$0xff]
  %v541 = vld [vmem:[%s5 + $0xd0] sm:$0xff]
  %v542 = vld [vmem:[%s5 + $0xd8] sm:$0xff]
  %v543 = vld [vmem:[%s5 + $0xe0] sm:$0xff]
  %v544 = vld [vmem:[%s5 + $0xe8] sm:$0xff]
  %v545 = vld [vmem:[%s5 + $0xf0] sm:$0xff]
  %v546 = vld [vmem:[%s5 + $0xf8] sm:$0xff]
  %v547 = vld [vmem:[%s5 + $0x100] sm:$0xff]
  %v548 = vld [vmem:[%s5 + $0x108] sm:$0xff]
  %v549 = vld [vmem:[%s5 + $0x110] sm:$0xff]
  %v550 = vld [vmem:[%s5 + $0x118] sm:$0xff]
  %v551 = vld [vmem:[%s5 + $0x120] sm:$0xff]
  %v552 = vld [vmem:[%s5 + $0x128] sm:$0xff]
  %v553 = vld [vmem:[%s5 + $0x130] sm:$0xff]
  %v554 = vld [vmem:[%s5 + $0x138] sm:$0xff]
  %v555 = vld [vmem:[%s5 + $0x140] sm:$0xff]
  %v556 = vld [vmem:[%s5 + $0x148] sm:$0xff]
  %v557 = vld [vmem:[%s5 + $0x150] sm:$0xff]
  %v558 = vld [vmem:[%s5 + $0x158] sm:$0xff]
  %v559 = vld [vmem:[%s5 + $0x160] sm:$0xff]
  %v560 = vld [vmem:[%s5 + $0x168] sm:$0xff]
  %v561 = vld [vmem:[%s5 + $0x170] sm:$0xff]
  %v562 = vld [vmem:[%s5 + $0x178] sm:$0xff]
  %v563 = vld [vmem:[%s5 + $0x180] sm:$0xff]
  %v564 = vld [vmem:[%s5 + $0x188] sm:$0xff]
  %v565 = vld [vmem:[%s5 + $0x190] sm:$0xff]
  %v566 = vld [vmem:[%s5 + $0x198] sm:$0xff]
  %v567 = vld [vmem:[%s5 + $0x1a0] sm:$0xff]
  %v568 = vld [vmem:[%s5 + $0x1a8] sm:$0xff]
  %v569 = vld [vmem:[%s5 + $0x1b0] sm:$0xff]
  %v570 = vld [vmem:[%s5 + $0x1b8] sm:$0xff]
  %v571 = vld [vmem:[%s5 + $0x1c0] sm:$0xff]
  %v572 = vld [vmem:[%s5 + $0x1c8] sm:$0xff]
  %v573 = vld [vmem:[%s5 + $0x1d0] sm:$0xff]
  %v574 = vld [vmem:[%s5 + $0x1d8] sm:$0xff]
  %v575 = vld [vmem:[%s5 + $0x1e0] sm:$0xff]
  %v576 = vld [vmem:[%s5 + $0x1e8] sm:$0xff]
  %v577 = vld [vmem:[%s5 + $0x1f0] sm:$0xff]
  %v578 = vld [vmem:[%s5 + $0x1f8] sm:$0xff]
  %v643 = vunpack.c.l.b16 %v515
  %v644 = vunpack.c.h.b16 %v515
  %v645 = vunpack.c.l.b16 %v516
  %v646 = vunpack.c.h.b16 %v516
  %v647 = vunpack.c.l.b16 %v517
  %v648 = vunpack.c.h.b16 %v517
  %v649 = vunpack.c.l.b16 %v518
  %v650 = vunpack.c.h.b16 %v518
  %v651 = vunpack.c.l.b16 %v519
  %v652 = vunpack.c.h.b16 %v519
  %v653 = vunpack.c.l.b16 %v520
  %v654 = vunpack.c.h.b16 %v520
  %v655 = vunpack.c.l.b16 %v521
  %v656 = vunpack.c.h.b16 %v521
  %v657 = vunpack.c.l.b16 %v522
  %v658 = vunpack.c.h.b16 %v522
  %v659 = vunpack.c.l.b16 %v523
  %v660 = vunpack.c.h.b16 %v523
  %v661 = vunpack.c.l.b16 %v524
  %v662 = vunpack.c.h.b16 %v524
  %v663 = vunpack.c.l.b16 %v525
  %v664 = vunpack.c.h.b16 %v525
  %v665 = vunpack.c.l.b16 %v526
  %v666 = vunpack.c.h.b16 %v526
  %v667 = vunpack.c.l.b16 %v527
  %v668 = vunpack.c.h.b16 %v527
  %v669 = vunpack.c.l.b16 %v528
  %v670 = vunpack.c.h.b16 %v528
  %v671 = vunpack.c.l.b16 %v529
  %v672 = vunpack.c.h.b16 %v529
  %v673 = vunpack.c.l.b16 %v530
  %v674 = vunpack.c.h.b16 %v530
  %v675 = vunpack.c.l.b16 %v531
  %v676 = vunpack.c.h.b16 %v531
  %v677 = vunpack.c.l.b16 %v532
  %v678 = vunpack.c.h.b16 %v532
  %v679 = vunpack.c.l.b16 %v533
  %v680 = vunpack.c.h.b16 %v533
  %v681 = vunpack.c.l.b16 %v534
  %v682 = vunpack.c.h.b16 %v534
  %v683 = vunpack.c.l.b16 %v535
  %v684 = vunpack.c.h.b16 %v535
  %v685 = vunpack.c.l.b16 %v536
  %v686 = vunpack.c.h.b16 %v536
  %v687 = vunpack.c.l.b16 %v537
  %v688 = vunpack.c.h.b16 %v537
  %v689 = vunpack.c.l.b16 %v538
  %v690 = vunpack.c.h.b16 %v538
  %v691 = vunpack.c.l.b16 %v539
  %v692 = vunpack.c.h.b16 %v539
  %v693 = vunpack.c.l.b16 %v540
  %v694 = vunpack.c.h.b16 %v540
  %v695 = vunpack.c.l.b16 %v541
  %v696 = vunpack.c.h.b16 %v541
  %v697 = vunpack.c.l.b16 %v542
  %v698 = vunpack.c.h.b16 %v542
  %v699 = vunpack.c.l.b16 %v543
  %v700 = vunpack.c.h.b16 %v543
  %v701 = vunpack.c.l.b16 %v544
  %v702 = vunpack.c.h.b16 %v544
  %v703 = vunpack.c.l.b16 %v545
  %v704 = vunpack.c.h.b16 %v545
  %v705 = vunpack.c.l.b16 %v546
  %v706 = vunpack.c.h.b16 %v546
  %v707 = vunpack.c.l.b16 %v547
  %v708 = vunpack.c.h.b16 %v547
  %v709 = vunpack.c.l.b16 %v548
  %v710 = vunpack.c.h.b16 %v548
  %v711 = vunpack.c.l.b16 %v549
  %v712 = vunpack.c.h.b16 %v549
  %v713 = vunpack.c.l.b16 %v550
  %v714 = vunpack.c.h.b16 %v550
  %v715 = vunpack.c.l.b16 %v551
  %v716 = vunpack.c.h.b16 %v551
  %v717 = vunpack.c.l.b16 %v552
  %v718 = vunpack.c.h.b16 %v552
  %v719 = vunpack.c.l.b16 %v553
  %v720 = vunpack.c.h.b16 %v553
  %v721 = vunpack.c.l.b16 %v554
  %v722 = vunpack.c.h.b16 %v554
  %v723 = vunpack.c.l.b16 %v555
  %v724 = vunpack.c.h.b16 %v555
  %v725 = vunpack.c.l.b16 %v556
  %v726 = vunpack.c.h.b16 %v556
  %v727 = vunpack.c.l.b16 %v557
  %v728 = vunpack.c.h.b16 %v557
  %v729 = vunpack.c.l.b16 %v558
  %v730 = vunpack.c.h.b16 %v558
  %v731 = vunpack.c.l.b16 %v559
  %v732 = vunpack.c.h.b16 %v559
  %v733 = vunpack.c.l.b16 %v560
  %v734 = vunpack.c.h.b16 %v560
  %v735 = vunpack.c.l.b16 %v561
  %v736 = vunpack.c.h.b16 %v561
  %v737 = vunpack.c.l.b16 %v562
  %v738 = vunpack.c.h.b16 %v562
  %v739 = vunpack.c.l.b16 %v563
  %v740 = vunpack.c.h.b16 %v563
  %v741 = vunpack.c.l.b16 %v564
  %v742 = vunpack.c.h.b16 %v564
  %v743 = vunpack.c.l.b16 %v565
  %v744 = vunpack.c.h.b16 %v565
  %v745 = vunpack.c.l.b16 %v566
  %v746 = vunpack.c.h.b16 %v566
  %v747 = vunpack.c.l.b16 %v567
  %v748 = vunpack.c.h.b16 %v567
  %v749 = vunpack.c.l.b16 %v568
  %v750 = vunpack.c.h.b16 %v568
  %v751 = vunpack.c.l.b16 %v569
  %v752 = vunpack.c.h.b16 %v569
  %v753 = vunpack.c.l.b16 %v570
  %v754 = vunpack.c.h.b16 %v570
  %v755 = vunpack.c.l.b16 %v571
  %v756 = vunpack.c.h.b16 %v571
  %v757 = vunpack.c.l.b16 %v572
  %v758 = vunpack.c.h.b16 %v572
  %v759 = vunpack.c.l.b16 %v573
  %v760 = vunpack.c.h.b16 %v573
  %v761 = vunpack.c.l.b16 %v574
  %v762 = vunpack.c.h.b16 %v574
  %v763 = vunpack.c.l.b16 %v575
  %v764 = vunpack.c.h.b16 %v575
  %v765 = vunpack.c.l.b16 %v576
  %v766 = vunpack.c.h.b16 %v576
  %v767 = vunpack.c.l.b16 %v577
  %v768 = vunpack.c.h.b16 %v577
  %v769 = vunpack.c.l.b16 %v578
  %v770 = vunpack.c.h.b16 %v578
  %v771 = vpack.c.b16 %v647, %v643
  %v772 = vpack.c.b16 %v648, %v644
  %v773 = vpack.c.b16 %v649, %v645
  %v774 = vpack.c.b16 %v650, %v646
  %v775 = vpack.c.b16 %v655, %v651
  %v776 = vpack.c.b16 %v656, %v652
  %v777 = vpack.c.b16 %v657, %v653
  %v778 = vpack.c.b16 %v658, %v654
  %v779 = vpack.c.b16 %v663, %v659
  %v780 = vpack.c.b16 %v664, %v660
  %v781 = vpack.c.b16 %v665, %v661
  %v782 = vpack.c.b16 %v666, %v662
  %v783 = vpack.c.b16 %v671, %v667
  %v784 = vpack.c.b16 %v672, %v668
  %v785 = vpack.c.b16 %v673, %v669
  %v786 = vpack.c.b16 %v674, %v670
  %v787 = vpack.c.b16 %v679, %v675
  %v788 = vpack.c.b16 %v680, %v676
  %v789 = vpack.c.b16 %v681, %v677
  %v790 = vpack.c.b16 %v682, %v678
  %v791 = vpack.c.b16 %v687, %v683
  %v792 = vpack.c.b16 %v688, %v684
  %v793 = vpack.c.b16 %v689, %v685
  %v794 = vpack.c.b16 %v690, %v686
  %v795 = vpack.c.b16 %v695, %v691
  %v796 = vpack.c.b16 %v696, %v692
  %v797 = vpack.c.b16 %v697, %v693
  %v798 = vpack.c.b16 %v698, %v694
  %v799 = vpack.c.b16 %v703, %v699
  %v800 = vpack.c.b16 %v704, %v700
  %v801 = vpack.c.b16 %v705, %v701
  %v802 = vpack.c.b16 %v706, %v702
  %v803 = vpack.c.b16 %v711, %v707
  %v804 = vpack.c.b16 %v712, %v708
  %v805 = vpack.c.b16 %v713, %v709
  %v806 = vpack.c.b16 %v714, %v710
  %v807 = vpack.c.b16 %v719, %v715
  %v808 = vpack.c.b16 %v720, %v716
  %v809 = vpack.c.b16 %v721, %v717
  %v810 = vpack.c.b16 %v722, %v718
  %v811 = vpack.c.b16 %v727, %v723
  %v812 = vpack.c.b16 %v728, %v724
  %v813 = vpack.c.b16 %v729, %v725
  %v814 = vpack.c.b16 %v730, %v726
  %v815 = vpack.c.b16 %v735, %v731
  %v816 = vpack.c.b16 %v736, %v732
  %v817 = vpack.c.b16 %v737, %v733
  %v818 = vpack.c.b16 %v738, %v734
  %v819 = vpack.c.b16 %v743, %v739
  %v820 = vpack.c.b16 %v744, %v740
  %v821 = vpack.c.b16 %v745, %v741
  %v822 = vpack.c.b16 %v746, %v742
  %v823 = vpack.c.b16 %v751, %v747
  %v824 = vpack.c.b16 %v752, %v748
  %v825 = vpack.c.b16 %v753, %v749
  %v826 = vpack.c.b16 %v754, %v750
  %v827 = vpack.c.b16 %v759, %v755
  %v828 = vpack.c.b16 %v760, %v756
  %v829 = vpack.c.b16 %v761, %v757
  %v830 = vpack.c.b16 %v762, %v758
  %v831 = vpack.c.b16 %v767, %v763
  %v832 = vpack.c.b16 %v768, %v764
  %v833 = vpack.c.b16 %v769, %v765
  %v834 = vpack.c.b16 %v770, %v766
  %899 = vmatprep.subr.bf16.mxu0 %v772
  %900 = vmatpush1.bf16.msra.mxu0 %v771
  %901 = vmatprep.subr.bf16.mxu0 %v776
  %902 = vmatpush1.bf16.msra.mxu0 %v775
  %903 = vmatprep.subr.bf16.mxu0 %v780
  %904 = vmatpush1.bf16.msra.mxu0 %v779
  %905 = vmatprep.subr.bf16.mxu0 %v784
  %906 = vmatpush1.bf16.msra.mxu0 %v783
  %907 = vmatprep.subr.bf16.mxu0 %v788
  %908 = vmatpush1.bf16.msra.mxu0 %v787
  %909 = vmatprep.subr.bf16.mxu0 %v792
  %910 = vmatpush1.bf16.msra.mxu0 %v791
  %911 = vmatprep.subr.bf16.mxu0 %v796
  %912 = vmatpush1.bf16.msra.mxu0 %v795
  %913 = vmatprep.subr.bf16.mxu0 %v800
  %914 = vmatpush1.bf16.msra.mxu0 %v799
  %915 = vmatprep.subr.bf16.mxu0 %v804
  %916 = vmatpush1.bf16.msra.mxu0 %v803
  %917 = vmatprep.subr.bf16.mxu0 %v808
  %918 = vmatpush1.bf16.msra.mxu0 %v807
  %919 = vmatprep.subr.bf16.mxu0 %v812
  %920 = vmatpush1.bf16.msra.mxu0 %v811
  %921 = vmatprep.subr.bf16.mxu0 %v816
  %922 = vmatpush1.bf16.msra.mxu0 %v815
  %923 = vmatprep.subr.bf16.mxu0 %v820
  %924 = vmatpush1.bf16.msra.mxu0 %v819
  %925 = vmatprep.subr.bf16.mxu0 %v824
  %926 = vmatpush1.bf16.msra.mxu0 %v823
  %927 = vmatprep.subr.bf16.mxu0 %v828
  %928 = vmatpush1.bf16.msra.mxu0 %v827
  %929 = vmatprep.subr.bf16.mxu0 %v832
  %930 = vmatpush1.bf16.msra.mxu0 %v831
  %931 = vmatprep.mubr.bf16.mxu0 %v514
  %932 = vmatmul.mubr.bf16.gmra.mrb[0].mxu0 %v513
  %v933 = vpop.f32.mrb[0].mxu0
  %v934 = vadd.f32 0.0, %v933
  %v935 = vpop.f32.mrb[0].mxu0
  %v936 = vadd.f32 0.0, %v935
  %v937 = vpop.f32.mrb[0].mxu0
  %v938 = vadd.f32 0.0, %v937
  %v939 = vpop.f32.mrb[0].mxu0
  %v940 = vadd.f32 0.0, %v939
  %941 = vdwg.mxu0
  %942 = vmatprep.subr.bf16.mxu0 %v774
  %943 = vmatpush1.bf16.msra.mxu0 %v773
  %944 = vmatprep.subr.bf16.mxu0 %v778
  %945 = vmatpush1.bf16.msra.mxu0 %v777
  %946 = vmatprep.subr.bf16.mxu0 %v782
  %947 = vmatpush1.bf16.msra.mxu0 %v781
  %948 = vmatprep.subr.bf16.mxu0 %v786
  %949 = vmatpush1.bf16.msra.mxu0 %v785
  %950 = vmatprep.subr.bf16.mxu0 %v790
  %951 = vmatpush1.bf16.msra.mxu0 %v789
  %952 = vmatprep.subr.bf16.mxu0 %v794
  %953 = vmatpush1.bf16.msra.mxu0 %v793
  %954 = vmatprep.subr.bf16.mxu0 %v798
  %955 = vmatpush1.bf16.msra.mxu0 %v797
  %956 = vmatprep.subr.bf16.mxu0 %v802
  %957 = vmatpush1.bf16.msra.mxu0 %v801
  %958 = vmatprep.subr.bf16.mxu0 %v806
  %959 = vmatpush1.bf16.msra.mxu0 %v805
  %960 = vmatprep.subr.bf16.mxu0 %v810
  %961 = vmatpush1.bf16.msra.mxu0 %v809
  %962 = vmatprep.subr.bf16.mxu0 %v814
  %963 = vmatpush1.bf16.msra.mxu0 %v813
  %964 = vmatprep.subr.bf16.mxu0 %v818
  %965 = vmatpush1.bf16.msra.mxu0 %v817
  %966 = vmatprep.subr.bf16.mxu0 %v822
  %967 = vmatpush1.bf16.msra.mxu0 %v821
  %968 = vmatprep.subr.bf16.mxu0 %v826
  %969 = vmatpush1.bf16.msra.mxu0 %v825
  %970 = vmatprep.subr.bf16.mxu0 %v830
  %971 = vmatpush1.bf16.msra.mxu0 %v829
  %972 = vmatprep.subr.bf16.mxu0 %v834
  %973 = vmatpush1.bf16.msra.mxu0 %v833
  %974 = vmatprep.mubr.bf16.mxu0 %v514
  %975 = vmatmul.mubr.bf16.gmra.mrb[0].mxu0 %v513
  %v976 = vpop.f32.mrb[0].mxu0
  %v977 = vadd.f32 0.0, %v976
  %v978 = vpop.f32.mrb[0].mxu0
  %v979 = vadd.f32 0.0, %v978
  %v980 = vpop.f32.mrb[0].mxu0
  %v981 = vadd.f32 0.0, %v980
  %v982 = vpop.f32.mrb[0].mxu0
  %v983 = vadd.f32 0.0, %v982
  %984 = vdwg.mxu0
  %v985 = vld [vmem:[%s6] sm:$0xff]
  %v986 = vld [vmem:[%s6 + $0x8] sm:$0xff]
  %v987 = vld [vmem:[%s6 + $0x10] sm:$0xff]
  %v988 = vld [vmem:[%s6 + $0x18] sm:$0xff]
  %v989 = vld [vmem:[%s6 + $0x20] sm:$0xff]
  %v990 = vld [vmem:[%s6 + $0x28] sm:$0xff]
  %v991 = vld [vmem:[%s6 + $0x30] sm:$0xff]
  %v992 = vld [vmem:[%s6 + $0x38] sm:$0xff]
  %v993 = vld [vmem:[%s6 + $0x40] sm:$0xff]
  %v994 = vld [vmem:[%s6 + $0x48] sm:$0xff]
  %v995 = vld [vmem:[%s6 + $0x50] sm:$0xff]
  %v996 = vld [vmem:[%s6 + $0x58] sm:$0xff]
  %v997 = vld [vmem:[%s6 + $0x60] sm:$0xff]
  %v998 = vld [vmem:[%s6 + $0x68] sm:$0xff]
  %v999 = vld [vmem:[%s6 + $0x70] sm:$0xff]
  %v1000 = vld [vmem:[%s6 + $0x78] sm:$0xff]
  %v1001 = vld [vmem:[%s6 + $0x80] sm:$0xff]
  %v1002 = vld [vmem:[%s6 + $0x88] sm:$0xff]
  %v1003 = vld [vmem:[%s6 + $0x90] sm:$0xff]
  %v1004 = vld [vmem:[%s6 + $0x98] sm:$0xff]
  %v1005 = vld [vmem:[%s6 + $0xa0] sm:$0xff]
  %v1006 = vld [vmem:[%s6 + $0xa8] sm:$0xff]
  %v1007 = vld [vmem:[%s6 + $0xb0] sm:$0xff]
  %v1008 = vld [vmem:[%s6 + $0xb8] sm:$0xff]
  %v1009 = vld [vmem:[%s6 + $0xc0] sm:$0xff]
  %v1010 = vld [vmem:[%s6 + $0xc8] sm:$0xff]
  %v1011 = vld [vmem:[%s6 + $0xd0] sm:$0xff]
  %v1012 = vld [vmem:[%s6 + $0xd8] sm:$0xff]
  %v1013 = vld [vmem:[%s6 + $0xe0] sm:$0xff]
  %v1014 = vld [vmem:[%s6 + $0xe8] sm:$0xff]
  %v1015 = vld [vmem:[%s6 + $0xf0] sm:$0xff]
  %v1016 = vld [vmem:[%s6 + $0xf8] sm:$0xff]
  %v1017 = vld [vmem:[%s6 + $0x100] sm:$0xff]
  %v1018 = vld [vmem:[%s6 + $0x108] sm:$0xff]
  %v1019 = vld [vmem:[%s6 + $0x110] sm:$0xff]
  %v1020 = vld [vmem:[%s6 + $0x118] sm:$0xff]
  %v1021 = vld [vmem:[%s6 + $0x120] sm:$0xff]
  %v1022 = vld [vmem:[%s6 + $0x128] sm:$0xff]
  %v1023 = vld [vmem:[%s6 + $0x130] sm:$0xff]
  %v1024 = vld [vmem:[%s6 + $0x138] sm:$0xff]
  %v1025 = vld [vmem:[%s6 + $0x140] sm:$0xff]
  %v1026 = vld [vmem:[%s6 + $0x148] sm:$0xff]
  %v1027 = vld [vmem:[%s6 + $0x150] sm:$0xff]
  %v1028 = vld [vmem:[%s6 + $0x158] sm:$0xff]
  %v1029 = vld [vmem:[%s6 + $0x160] sm:$0xff]
  %v1030 = vld [vmem:[%s6 + $0x168] sm:$0xff]
  %v1031 = vld [vmem:[%s6 + $0x170] sm:$0xff]
  %v1032 = vld [vmem:[%s6 + $0x178] sm:$0xff]
  %v1033 = vld [vmem:[%s6 + $0x180] sm:$0xff]
  %v1034 = vld [vmem:[%s6 + $0x188] sm:$0xff]
  %v1035 = vld [vmem:[%s6 + $0x190] sm:$0xff]
  %v1036 = vld [vmem:[%s6 + $0x198] sm:$0xff]
  %v1037 = vld [vmem:[%s6 + $0x1a0] sm:$0xff]
  %v1038 = vld [vmem:[%s6 + $0x1a8] sm:$0xff]
  %v1039 = vld [vmem:[%s6 + $0x1b0] sm:$0xff]
  %v1040 = vld [vmem:[%s6 + $0x1b8] sm:$0xff]
  %v1041 = vld [vmem:[%s6 + $0x1c0] sm:$0xff]
  %v1042 = vld [vmem:[%s6 + $0x1c8] sm:$0xff]
  %v1043 = vld [vmem:[%s6 + $0x1d0] sm:$0xff]
  %v1044 = vld [vmem:[%s6 + $0x1d8] sm:$0xff]
  %v1045 = vld [vmem:[%s6 + $0x1e0] sm:$0xff]
  %v1046 = vld [vmem:[%s6 + $0x1e8] sm:$0xff]
  %v1047 = vld [vmem:[%s6 + $0x1f0] sm:$0xff]
  %v1048 = vld [vmem:[%s6 + $0x1f8] sm:$0xff]
  %v1049 = vld [vmem:[%s7] sm:$0x1]
  %v1051 = vlaneseq
  %v1052 = vshrl.u32 %v1051, 7
  %v1053 = vsub.s32 0, %v1052
  %v1054 = vrot.slane %v1049, %v1053
  %1056 = vmatprep.subr.mxu0 0.0
  %1057 = vmatpush1.msra.mxu0 %v985
  %1058 = vmatprep.subr.mxu0 0.0
  %1059 = vmatpush1.msra.mxu0 %v986
  %1060 = vmatprep.subr.mxu0 0.0
  %1061 = vmatpush1.msra.mxu0 %v987
  %1062 = vmatprep.subr.mxu0 0.0
  %1063 = vmatpush1.msra.mxu0 %v988
  %1064 = vmatprep.subr.mxu0 0.0
  %1065 = vmatpush1.msra.mxu0 %v989
  %1066 = vmatprep.subr.mxu0 0.0
  %1067 = vmatpush1.msra.mxu0 %v990
  %1068 = vmatprep.subr.mxu0 0.0
  %1069 = vmatpush1.msra.mxu0 %v991
  %1070 = vmatprep.subr.mxu0 0.0
  %1071 = vmatpush1.msra.mxu0 %v992
  %1072 = vmatprep.subr.mxu0 0.0
  %1073 = vmatpush1.msra.mxu0 %v993
  %1074 = vmatprep.subr.mxu0 0.0
  %1075 = vmatpush1.msra.mxu0 %v994
  %1076 = vmatprep.subr.mxu0 0.0
  %1077 = vmatpush1.msra.mxu0 %v995
  %1078 = vmatprep.subr.mxu0 0.0
  %1079 = vmatpush1.msra.mxu0 %v996
  %1080 = vmatprep.subr.mxu0 0.0
  %1081 = vmatpush1.msra.mxu0 %v997
  %1082 = vmatprep.subr.mxu0 0.0
  %1083 = vmatpush1.msra.mxu0 %v998
  %1084 = vmatprep.subr.mxu0 0.0
  %1085 = vmatpush1.msra.mxu0 %v999
  %1086 = vmatprep.subr.mxu0 0.0
  %1087 = vmatpush1.msra.mxu0 %v1000
  %1088 = vmatprep.subr.mxu0 0.0
  %1089 = vmatpush1.msra.mxu0 %v1001
  %1090 = vmatprep.subr.mxu0 0.0
  %1091 = vmatpush1.msra.mxu0 %v1002
  %1092 = vmatprep.subr.mxu0 0.0
  %1093 = vmatpush1.msra.mxu0 %v1003
  %1094 = vmatprep.subr.mxu0 0.0
  %1095 = vmatpush1.msra.mxu0 %v1004
  %1096 = vmatprep.subr.mxu0 0.0
  %1097 = vmatpush1.msra.mxu0 %v1005
  %1098 = vmatprep.subr.mxu0 0.0
  %1099 = vmatpush1.msra.mxu0 %v1006
  %1100 = vmatprep.subr.mxu0 0.0
  %1101 = vmatpush1.msra.mxu0 %v1007
  %1102 = vmatprep.subr.mxu0 0.0
  %1103 = vmatpush1.msra.mxu0 %v1008
  %1104 = vmatprep.subr.mxu0 0.0
  %1105 = vmatpush1.msra.mxu0 %v1009
  %1106 = vmatprep.subr.mxu0 0.0
  %1107 = vmatpush1.msra.mxu0 %v1010
  %1108 = vmatprep.subr.mxu0 0.0
  %1109 = vmatpush1.msra.mxu0 %v1011
  %1110 = vmatprep.subr.mxu0 0.0
  %1111 = vmatpush1.msra.mxu0 %v1012
  %1112 = vmatprep.subr.mxu0 0.0
  %1113 = vmatpush1.msra.mxu0 %v1013
  %1114 = vmatprep.subr.mxu0 0.0
  %1115 = vmatpush1.msra.mxu0 %v1014
  %1116 = vmatprep.subr.mxu0 0.0
  %1117 = vmatpush1.msra.mxu0 %v1015
  %1118 = vmatprep.subr.mxu0 0.0
  %1119 = vmatpush1.msra.mxu0 %v1016
  %1120 = vmatprep.mubr.f32.mxu0 %v936
  %1121 = vmatmul.mubr.f32.gmra.mrb[0].mxu0 %v934
  %v1122 = vpop.f32.mrb[0].mxu0
  %v1123 = vadd.f32 %v1054, %v1122
  %v1124 = vpop.f32.mrb[0].mxu0
  %1125 = vmatprep.mubr.f32.mxu0 %v940
  %1126 = vmatmul.mubr.f32.gmra.mrb[0].mxu0 %v938
  %v1127 = vpop.f32.mrb[0].mxu0
  %v1128 = vadd.f32 %v1054, %v1127
  %v1129 = vpop.f32.mrb[0].mxu0
  %1130 = vdwg.mxu0
  %1131 = vmatprep.subr.mxu0 0.0
  %1132 = vmatpush1.msra.mxu0 %v1017
  %1133 = vmatprep.subr.mxu0 0.0
  %1134 = vmatpush1.msra.mxu0 %v1018
  %1135 = vmatprep.subr.mxu0 0.0
  %1136 = vmatpush1.msra.mxu0 %v1019
  %1137 = vmatprep.subr.mxu0 0.0
  %1138 = vmatpush1.msra.mxu0 %v1020
  %1139 = vmatprep.subr.mxu0 0.0
  %1140 = vmatpush1.msra.mxu0 %v1021
  %1141 = vmatprep.subr.mxu0 0.0
  %1142 = vmatpush1.msra.mxu0 %v1022
  %1143 = vmatprep.subr.mxu0 0.0
  %1144 = vmatpush1.msra.mxu0 %v1023
  %1145 = vmatprep.subr.mxu0 0.0
  %1146 = vmatpush1.msra.mxu0 %v1024
  %1147 = vmatprep.subr.mxu0 0.0
  %1148 = vmatpush1.msra.mxu0 %v1025
  %1149 = vmatprep.subr.mxu0 0.0
  %1150 = vmatpush1.msra.mxu0 %v1026
  %1151 = vmatprep.subr.mxu0 0.0
  %1152 = vmatpush1.msra.mxu0 %v1027
  %1153 = vmatprep.subr.mxu0 0.0
  %1154 = vmatpush1.msra.mxu0 %v1028
  %1155 = vmatprep.subr.mxu0 0.0
  %1156 = vmatpush1.msra.mxu0 %v1029
  %1157 = vmatprep.subr.mxu0 0.0
  %1158 = vmatpush1.msra.mxu0 %v1030
  %1159 = vmatprep.subr.mxu0 0.0
  %1160 = vmatpush1.msra.mxu0 %v1031
  %1161 = vmatprep.subr.mxu0 0.0
  %1162 = vmatpush1.msra.mxu0 %v1032
  %1163 = vmatprep.subr.mxu0 0.0
  %1164 = vmatpush1.msra.mxu0 %v1033
  %1165 = vmatprep.subr.mxu0 0.0
  %1166 = vmatpush1.msra.mxu0 %v1034
  %1167 = vmatprep.subr.mxu0 0.0
  %1168 = vmatpush1.msra.mxu0 %v1035
  %1169 = vmatprep.subr.mxu0 0.0
  %1170 = vmatpush1.msra.mxu0 %v1036
  %1171 = vmatprep.subr.mxu0 0.0
  %1172 = vmatpush1.msra.mxu0 %v1037
  %1173 = vmatprep.subr.mxu0 0.0
  %1174 = vmatpush1.msra.mxu0 %v1038
  %1175 = vmatprep.subr.mxu0 0.0
  %1176 = vmatpush1.msra.mxu0 %v1039
  %1177 = vmatprep.subr.mxu0 0.0
  %1178 = vmatpush1.msra.mxu0 %v1040
  %1179 = vmatprep.subr.mxu0 0.0
  %1180 = vmatpush1.msra.mxu0 %v1041
  %1181 = vmatprep.subr.mxu0 0.0
  %1182 = vmatpush1.msra.mxu0 %v1042
  %1183 = vmatprep.subr.mxu0 0.0
  %1184 = vmatpush1.msra.mxu0 %v1043
  %1185 = vmatprep.subr.mxu0 0.0
  %1186 = vmatpush1.msra.mxu0 %v1044
  %1187 = vmatprep.subr.mxu0 0.0
  %1188 = vmatpush1.msra.mxu0 %v1045
  %1189 = vmatprep.subr.mxu0 0.0
  %1190 = vmatpush1.msra.mxu0 %v1046
  %1191 = vmatprep.subr.mxu0 0.0
  %1192 = vmatpush1.msra.mxu0 %v1047
  %1193 = vmatprep.subr.mxu0 0.0
  %1194 = vmatpush1.msra.mxu0 %v1048
  %1195 = vmatprep.mubr.f32.mxu0 %v979
  %1196 = vmatmul.mubr.f32.gmra.mrb[0].mxu0 %v977
  %v1197 = vpop.f32.mrb[0].mxu0
  %v1198 = vadd.f32 %v1123, %v1197
  %v1199 = vpop.f32.mrb[0].mxu0
  %1200 = vmatprep.mubr.f32.mxu0 %v983
  %1201 = vmatmul.mubr.f32.gmra.mrb[0].mxu0 %v981
  %v1202 = vpop.f32.mrb[0].mxu0
  %v1203 = vadd.f32 %v1128, %v1202
  %v1204 = vpop.f32.mrb[0].mxu0
  %1205 = vdwg.mxu0
  %v1206 = vlaneseq
  %v1207 = vand.u32 %v1206, 127
  %vm1208 = vcmp.lt.s32.totalorder %v1207, 3
  %v1209 = vsel %vm1208, %v1198, -1e+30
  %v1210 = vsel %vm1208, %v1203, -1e+30
  %vm1211 = vcmask 48128
  %v1212 = vsel %vm1211, %v1209, -inf
  %1213 = vmax.xlane.f32.xlu0 %v1212
  %v1214 = vpop.xlane.xlu0 %1213
  %v1215 = vsel %vm1211, %v1210, -inf
  %1216 = vmax.xlane.f32.xlu0 %v1215
  %v1217 = vpop.xlane.xlu0 %1216
  %v1218 = vsel %vm1208, -1e+30, %v1198
  %v1219 = vsel %vm1208, -1e+30, %v1203
  %v1220 = vsel %vm1211, %v1218, -inf
  %1221 = vmax.xlane.f32.xlu0 %v1220
  %v1222 = vpop.xlane.xlu0 %1221
  %v1223 = vsel %vm1211, %v1219, -inf
  %1224 = vmax.xlane.f32.xlu0 %v1223
  %v1225 = vpop.xlane.xlu0 %1224
  %v1226 = vsel %vm1208, %v1214, %v1222
  %v1227 = vsel %vm1208, %v1217, %v1225
  %v1228 = vsub.f32 %v1198, %v1226
  %v1229 = vsub.f32 %v1203, %v1227
  %v1230 = vmul.f32 %v1228, 1.442695
  %v1231 = vpow.pop %v1230
  %v1232 = vmul.f32 %v1229, 1.442695
  %v1233 = vpow.pop %v1232
  %v1234 = vsel %vm1208, %v1231, 0.0
  %v1235 = vsel %vm1208, %v1233, 0.0
  %v1236 = vsel %vm1211, %v1234, 0.0
  %1237 = vadd.xlane.f32.xlu0 %v1236
  %v1238 = vpop.xlane.xlu0 %1237
  %v1239 = vsel %vm1211, %v1235, 0.0
  %1240 = vadd.xlane.f32.xlu0 %v1239
  %v1241 = vpop.xlane.xlu0 %1240
  %v1242 = vsel %vm1208, 0.0, %v1231
  %v1243 = vsel %vm1208, 0.0, %v1233
  %v1244 = vsel %vm1211, %v1242, 0.0
  %1245 = vadd.xlane.f32.xlu0 %v1244
  %v1246 = vpop.xlane.xlu0 %1245
  %v1247 = vsel %vm1211, %v1243, 0.0
  %1248 = vadd.xlane.f32.xlu0 %v1247
  %v1249 = vpop.xlane.xlu0 %1248
  %v1250 = vsel %vm1208, %v1238, %v1246
  %v1251 = vsel %vm1208, %v1241, %v1249
  %v1252 = vrcp.pop %v1250
  %v1253 = vmul.f32 %v1231, %v1252
  %v1254 = vrcp.pop %v1251
  %v1255 = vmul.f32 %v1233, %v1254
  %1256 = vst.msk [vmem:[%s8] sm:$0xff] %vm1211, %v1253
  %1257 = vst.msk [vmem:[%s8 + $0x8] sm:$0xff] %vm1211, %v1255
  // Predicated region
  $region34: #{netx_forward.7} parent=0 // pred_check
    _
  $region35: #{netx_forward.7} parent=0 // pred_check_branch
    %1259 = sbr.rel (0) target = $region37
  $region36: #{netx_forward.7} parent=0 // pred_region
    _
  $region37: #{netx_forward.7} parent=0 // pred_fallthru
    _
  // Predicated region
  $region38: #{netx_forward.7} parent=0 // pred_check
    _
  $region39: #{netx_forward.7} parent=0 // pred_check_branch
    %1261 = sbr.rel (0) target = $region41
  $region40: #{netx_forward.7} parent=0 // pred_region
    _
  $region41: #{netx_forward.7} parent=0 // pred_fallthru
    _

</llo_original>
